<compile_context>
chip_gen: v7x
topology: tpu7x:2x2x1
jax: 0.10.0
libtpu: 0.0.40
codegen_flags: <defaults>
</compile_context>

<pallas_src>
import numpy as np
import jax
import jax.numpy as jnp
from jax.experimental import pallas as pl
from jax.experimental.pallas import tpu as pltpu


# ----------------------------- Pallas kernel ------------------------------ #

def fft_conv_kernel(x_ref,                 # (Bs*Cin, HW)  bf16 image rows
                    mfwd_ref,              # (HW, 2*HW)    bf16 [Mr | Mi]
                    minv_ref,              # (2*HW, HW)    bf16 [Mr ; Mi]/HW
                    f1r_ref, f1i_ref,      # (Cin, C1, HW) f32
                    f2r_ref, f2i_ref,      # (C1,  C2, HW) f32
                    f3r_ref, f3i_ref,      # (C2,  C3, HW) f32
                    out_ref):              # (Bs*C3, HW)   f32 spatial output
    hw = x_ref.shape[-1]
    cin = f1r_ref.shape[0]
    bs = x_ref.shape[0] // cin             # batches handled by this grid step

    # ---- forward 2-D DFT of every image row: ONE fused MXU matmul --------- #
    xf = jnp.dot(x_ref[...], mfwd_ref[...],
                 preferred_element_type=jnp.float32)         # (bs*cin, 2*hw)
    x_re = xf[:, :hw]
    x_im = xf[:, hw:]

    # ---- one dft_conv stage: per-bin complex multiply + Ci reduction ------ #
    def stage(in_r, in_i, fr_ref, fi_ref):
        # in_r/in_i: (ci, hw) SSA values.  Filter rows are read per input
        # channel straight from the refs to keep vreg pressure low.
        ci, co, _ = fr_ref.shape
        acc_r = jnp.zeros((co, hw), jnp.float32)
        acc_i = jnp.zeros((co, hw), jnp.float32)
        for i in range(ci):                       # static unroll, ci <= 8
            xr = in_r[i:i + 1, :]                 # (1, hw) -> broadcast to co
            xi = in_i[i:i + 1, :]
            kr = fr_ref[i]                        # (co, hw)
            ki = fi_ref[i]
            # naive 4-mult complex product, fused into the accumulators
            acc_r = acc_r + (xr * kr - xi * ki)
            acc_i = acc_i + (xr * ki + xi * kr)
        return acc_r, acc_i

    # ---- per-batch stage chain; stack [Yr | Yi] rows for one inverse mm --- #
    y_rows = []
    for b in range(bs):                           # static unroll, bs is small
        r = x_re[b * cin:(b + 1) * cin, :]
        im = x_im[b * cin:(b + 1) * cin, :]
        r, im = stage(r, im, f1r_ref, f1i_ref)
        r, im = stage(r, im, f2r_ref, f2i_ref)
        r, im = stage(r, im, f3r_ref, f3i_ref)
        y_rows.append(jnp.concatenate([r, im], axis=-1))     # (c3, 2*hw)
    y = y_rows[0] if bs == 1 else jnp.concatenate(y_rows, axis=0)

    # ---- inverse 2-D DFT, real part only (1/HW folded into minv): one mm -- #
    out_ref[...] = jnp.dot(y.astype(minv_ref.dtype), minv_ref[...],
                           preferred_element_type=jnp.float32)


# ------------------------------ JAX wrapper -------------------------------- #

def _num_batch_shards(batch):
    """v7x has 2 TensorCores per chip -> shard the batch across them via the
    grid; on single-TC v5e/v6e (or if the query fails) fold the whole batch
    into one grid step."""
    cores = 1
    try:
        info = pltpu.get_tpu_info()
        for name in ("num_cores", "tensorcore_count", "num_tensorcores",
                     "core_count"):
            val = getattr(info, name, None)
            if val:
                cores = int(val)
                break
    except Exception:
        cores = 1
    shards = max(1, min(cores, batch))
    while batch % shards:
        shards -= 1
    return shards


def fft_conv_layer(imgs, filts1, filts2, filts3, img_size):
    """Forward pass of FFT_Conv_Layer.  imgs: (B, Cin, H, W) float32, NCHW."""
    B, Cin, H, W = imgs.shape
    assert H == img_size and W == img_size
    p = (img_size - 4) // 2
    HW = img_size * img_size

    # Flattened row-major 2-D DFT matrix M = kron(W16, W16) (symmetric).
    # Real/imag halves are merged so forward/inverse DFTs are single matmuls;
    # 1/HW (a power of two, exact in bf16) is folded into the inverse matrix.
    n = np.arange(img_size)
    w1 = np.exp(-2j * np.pi * np.outer(n, n) / img_size)
    M = np.kron(w1, w1)                                          # (HW, HW)
    m_fwd = jnp.asarray(np.concatenate([M.real, M.imag], axis=1),
                        jnp.bfloat16)                            # (HW, 2*HW)
    m_inv = jnp.asarray(np.concatenate([M.real, M.imag], axis=0) / HW,
                        jnp.bfloat16)                            # (2*HW, HW)

    def prep_filter(f):
        # f: (ci, co, 2, k, k).  Pad spatial dims to imgSize, reproduce the
        # PyTorch `.view(ci, co, H, W, 2)` raw memory reinterpret (NOT a
        # transpose), then complex 2-D FFT.  One-time parameter prep (glue).
        ci, co = f.shape[0], f.shape[1]
        fp = jnp.pad(f.astype(jnp.float32),
                     ((0, 0), (0, 0), (0, 0), (p, p), (p, p)))
        fv = fp.reshape(ci, co, img_size, img_size, 2)
        Fc = jnp.fft.fft2(fv[..., 0] + 1j * fv[..., 1])
        return (jnp.real(Fc).astype(jnp.float32).reshape(ci, co, HW),
                jnp.imag(Fc).astype(jnp.float32).reshape(ci, co, HW))

    f1R, f1I = prep_filter(filts1)
    f2R, f2I = prep_filter(filts2)
    f3R, f3I = prep_filter(filts3)
    C1, C2, C3 = filts1.shape[1], filts2.shape[1], filts3.shape[1]

    G = _num_batch_shards(B)        # grid steps (1 on v5e/v6e, cores on v7x)
    Bs = B // G                     # batches folded into each grid step
    x_rows = imgs.astype(jnp.float32).reshape(B, Cin, HW).astype(jnp.bfloat16)
    x_rows = x_rows.reshape(G, Bs * Cin, HW)

    # Advisory cost estimate: two fused DFT matmuls + the three VPU stages.
    flops = (2 * B * Cin * HW * 2 * HW + 2 * B * C3 * 2 * HW * HW +
             8 * B * HW * (Cin * C1 + C1 * C2 + C2 * C3))
    bytes_accessed = (x_rows.size * 2 + m_fwd.size * 2 + m_inv.size * 2 +
                      4 * (f1R.size + f1I.size + f2R.size + f2I.size +
                           f3R.size + f3I.size) + 4 * B * C3 * HW)
    cost = pl.CostEstimate(flops=flops, transcendentals=0,
                           bytes_accessed=bytes_accessed)

    const3 = lambda ci, co: pl.BlockSpec((ci, co, HW), lambda g: (0, 0, 0))

    out_rows = pl.pallas_call(
        fft_conv_kernel,
        out_shape=jax.ShapeDtypeStruct((G, Bs * C3, HW), jnp.float32),
        grid=(G,),
        in_specs=[
            pl.BlockSpec((None, Bs * Cin, HW), lambda g: (g, 0, 0)),  # images
            pl.BlockSpec((HW, 2 * HW), lambda g: (0, 0)),             # fwd DFT
            pl.BlockSpec((2 * HW, HW), lambda g: (0, 0)),             # inv DFT
            const3(Cin, C1), const3(Cin, C1),                         # filt1
            const3(C1, C2), const3(C1, C2),                           # filt2
            const3(C2, C3), const3(C2, C3),                           # filt3
        ],
        out_specs=pl.BlockSpec((None, Bs * C3, HW), lambda g: (g, 0, 0)),
        compiler_params=pltpu.CompilerParams(
            dimension_semantics=("parallel",)),   # v7x: shard batch over TCs
        cost_estimate=cost,
    )(x_rows, m_fwd, m_inv, f1R, f1I, f2R, f2I, f3R, f3I)

    out_img = out_rows.reshape(B, C3, img_size, img_size)
    # matches imgs[:, :, 1:-1, 1:-1, 0]: real part, crop 1-pixel border.
    return out_img[:, :, 1:-1, 1:-1]


# --------------------------- pure-JAX reference ----------------------------- #

def ref_forward(imgs, filts1, filts2, filts3, img_size):
    p = (img_size - 4) // 2
    F_img = jnp.fft.fft2(imgs.astype(jnp.float32))
    iR = jnp.real(F_img)[:, :, None]        # (B, Ci, 1, H, W)
    iIm = jnp.imag(F_img)[:, :, None]

    def prep(f):
        ci, co = f.shape[0], f.shape[1]
        fp = jnp.pad(f.astype(jnp.float32),
                     ((0, 0), (0, 0), (0, 0), (p, p), (p, p)))
        fv = fp.reshape(ci, co, img_size, img_size, 2)
        Fc = jnp.fft.fft2(fv[..., 0] + 1j * fv[..., 1])
        return jnp.real(Fc)[None], jnp.imag(Fc)[None]   # (1, ci, co, H, W)

    def dft_conv(imgR, imgIm, kR, kIm):
        ac = kR * imgR
        bd = kIm * imgIm
        ab_cd = (kR + kIm) * (imgR + imgIm)
        return (ac - bd).sum(1), (ab_cd - ac - bd).sum(1)

    f1R, f1Im = prep(filts1)
    f2R, f2Im = prep(filts2)
    f3R, f3Im = prep(filts3)
    r, im = dft_conv(iR, iIm, f1R, f1Im)
    r, im = dft_conv(r[:, :, None], im[:, :, None], f2R, f2Im)
    r, im = dft_conv(r[:, :, None], im[:, :, None], f3R, f3Im)
    out = jnp.fft.ifft2(r + 1j * im)
    return jnp.real(out[:, :, 1:-1, 1:-1]).astype(jnp.float32)


# --------------------------------- main ------------------------------------ #

if __name__ == "__main__":
    B, imgSize = 2, 16
    inCs, outCs1, outCs2, outCs3 = 4, 8, 8, 8
    imagDim, filtSize = 2, 4

    key = jax.random.PRNGKey(0)
    k_img, k1, k2, k3 = jax.random.split(key, 4)
    imgs = jax.random.normal(k_img, (B, inCs, imgSize, imgSize), jnp.float32)
    # Deterministic stand-ins for np.random.normal(0, 0.01, ...) filter init.
    filts1 = 0.01 * jax.random.normal(k1, (inCs, outCs1, imagDim, filtSize, filtSize), jnp.float32)
    filts2 = 0.01 * jax.random.normal(k2, (outCs1, outCs2, imagDim, filtSize, filtSize), jnp.float32)
    filts3 = 0.01 * jax.random.normal(k3, (outCs2, outCs3, imagDim, filtSize, filtSize), jnp.float32)

    out = fft_conv_layer(imgs, filts1, filts2, filts3, imgSize)
    out = jax.block_until_ready(out)
    assert out.shape == (B, outCs3, imgSize - 2, imgSize - 2), out.shape

    ref = jax.block_until_ready(ref_forward(imgs, filts1, filts2, filts3, imgSize))
    np.testing.assert_allclose(np.asarray(out), np.asarray(ref), rtol=2e-3, atol=2e-3)

    print("KERNEL_OK")
</pallas_src>

<mosaic_0001>
module attributes {stable_mosaic.version = 11 : i64} {
  func.func @fft_conv_kernel(%arg0: i32, %arg1: memref<1x8x256xbf16, #tpu.memory_space<vmem>>, %arg2: memref<256x512xbf16, #tpu.memory_space<vmem>>, %arg3: memref<512x256xbf16, #tpu.memory_space<vmem>>, %arg4: memref<4x8x256xf32, #tpu.memory_space<vmem>>, %arg5: memref<4x8x256xf32, #tpu.memory_space<vmem>>, %arg6: memref<8x8x256xf32, #tpu.memory_space<vmem>>, %arg7: memref<8x8x256xf32, #tpu.memory_space<vmem>>, %arg8: memref<8x8x256xf32, #tpu.memory_space<vmem>>, %arg9: memref<8x8x256xf32, #tpu.memory_space<vmem>>, %arg10: memref<1x16x256xf32, #tpu.memory_space<vmem>>) attributes {dimension_semantics = [#tpu.dimension_semantics<parallel>], iteration_bounds = array<i64: 1>, scalar_prefetch = 0 : i64, scratch_operands = 0 : i64, tpu.core_type = #tpu.core_type<tc>, window_params = [{transform_indices = @transform_0, window_bounds = array<i64: 1, 8, 256>}, {pipeline_mode = #tpu.pipeline_mode<synchronous>, transform_indices = @transform_1, window_bounds = array<i64: 256, 512>}, {pipeline_mode = #tpu.pipeline_mode<synchronous>, transform_indices = @transform_2, window_bounds = array<i64: 512, 256>}, {pipeline_mode = #tpu.pipeline_mode<synchronous>, transform_indices = @transform_3, window_bounds = array<i64: 4, 8, 256>}, {pipeline_mode = #tpu.pipeline_mode<synchronous>, transform_indices = @transform_4, window_bounds = array<i64: 4, 8, 256>}, {pipeline_mode = #tpu.pipeline_mode<synchronous>, transform_indices = @transform_5, window_bounds = array<i64: 8, 8, 256>}, {pipeline_mode = #tpu.pipeline_mode<synchronous>, transform_indices = @transform_6, window_bounds = array<i64: 8, 8, 256>}, {pipeline_mode = #tpu.pipeline_mode<synchronous>, transform_indices = @transform_7, window_bounds = array<i64: 8, 8, 256>}, {pipeline_mode = #tpu.pipeline_mode<synchronous>, transform_indices = @transform_8, window_bounds = array<i64: 8, 8, 256>}, {transform_indices = @transform_9, window_bounds = array<i64: 1, 16, 256>}]} {
    %c0 = arith.constant 0 : index
    %c0_0 = arith.constant 0 : index
    %c0_1 = arith.constant 0 : index
    %0 = vector.load %arg1[%c0, %c0_0, %c0_1] : memref<1x8x256xbf16, #tpu.memory_space<vmem>>, vector<1x8x256xbf16>
    %1 = vector.shape_cast %0 : vector<1x8x256xbf16> to vector<8x256xbf16>
    %c0_2 = arith.constant 0 : index
    %c0_3 = arith.constant 0 : index
    %2 = vector.load %arg2[%c0_2, %c0_3] : memref<256x512xbf16, #tpu.memory_space<vmem>>, vector<256x512xbf16>
    %cst = arith.constant dense<0.000000e+00> : vector<8x512xf32>
    %3 = tpu.matmul %1, %2, %cst {dimension_numbers = #tpu.dot_dimension_numbers<[1], [0], [0], [1], [0, 0, 1, 1], [], []>} : vector<8x256xbf16>, vector<256x512xbf16>, vector<8x512xf32> -> vector<8x512xf32>
    %4 = vector.extract_strided_slice %3 {offsets = [0, 0], sizes = [8, 256], strides = [1, 1]} : vector<8x512xf32> to vector<8x256xf32>
    %5 = vector.extract_strided_slice %3 {offsets = [0, 256], sizes = [8, 256], strides = [1, 1]} : vector<8x512xf32> to vector<8x256xf32>
    %6 = vector.extract_strided_slice %4 {offsets = [0, 0], sizes = [4, 256], strides = [1, 1]} : vector<8x256xf32> to vector<4x256xf32>
    %7 = vector.extract_strided_slice %5 {offsets = [0, 0], sizes = [4, 256], strides = [1, 1]} : vector<8x256xf32> to vector<4x256xf32>
    %cst_4 = arith.constant 0.000000e+00 : f32
    %8 = vector.broadcast %cst_4 : f32 to vector<8x256xf32>
    %cst_5 = arith.constant 0.000000e+00 : f32
    %9 = vector.broadcast %cst_5 : f32 to vector<8x256xf32>
    %10 = vector.extract_strided_slice %6 {offsets = [0, 0], sizes = [1, 256], strides = [1, 1]} : vector<4x256xf32> to vector<1x256xf32>
    %11 = vector.extract_strided_slice %7 {offsets = [0, 0], sizes = [1, 256], strides = [1, 1]} : vector<4x256xf32> to vector<1x256xf32>
    %c0_6 = arith.constant 0 : index
    %c0_7 = arith.constant 0 : index
    %c0_8 = arith.constant 0 : index
    %12 = vector.load %arg4[%c0_6, %c0_7, %c0_8] : memref<4x8x256xf32, #tpu.memory_space<vmem>>, vector<1x8x256xf32>
    %13 = vector.shape_cast %12 : vector<1x8x256xf32> to vector<8x256xf32>
    %c0_9 = arith.constant 0 : index
    %c0_10 = arith.constant 0 : index
    %c0_11 = arith.constant 0 : index
    %14 = vector.load %arg5[%c0_9, %c0_10, %c0_11] : memref<4x8x256xf32, #tpu.memory_space<vmem>>, vector<1x8x256xf32>
    %15 = vector.shape_cast %14 : vector<1x8x256xf32> to vector<8x256xf32>
    %16 = vector.broadcast %10 : vector<1x256xf32> to vector<8x256xf32>
    %17 = arith.mulf %16, %13 : vector<8x256xf32>
    %18 = vector.broadcast %11 : vector<1x256xf32> to vector<8x256xf32>
    %19 = arith.mulf %18, %15 : vector<8x256xf32>
    %20 = arith.subf %17, %19 : vector<8x256xf32>
    %21 = arith.addf %8, %20 : vector<8x256xf32>
    %22 = vector.broadcast %10 : vector<1x256xf32> to vector<8x256xf32>
    %23 = arith.mulf %22, %15 : vector<8x256xf32>
    %24 = vector.broadcast %11 : vector<1x256xf32> to vector<8x256xf32>
    %25 = arith.mulf %24, %13 : vector<8x256xf32>
    %26 = arith.addf %23, %25 : vector<8x256xf32>
    %27 = arith.addf %9, %26 : vector<8x256xf32>
    %28 = vector.extract_strided_slice %6 {offsets = [1, 0], sizes = [1, 256], strides = [1, 1]} : vector<4x256xf32> to vector<1x256xf32>
    %29 = vector.extract_strided_slice %7 {offsets = [1, 0], sizes = [1, 256], strides = [1, 1]} : vector<4x256xf32> to vector<1x256xf32>
    %c1 = arith.constant 1 : index
    %c0_12 = arith.constant 0 : index
    %c0_13 = arith.constant 0 : index
    %30 = vector.load %arg4[%c1, %c0_12, %c0_13] : memref<4x8x256xf32, #tpu.memory_space<vmem>>, vector<1x8x256xf32>
    %31 = vector.shape_cast %30 : vector<1x8x256xf32> to vector<8x256xf32>
    %c1_14 = arith.constant 1 : index
    %c0_15 = arith.constant 0 : index
    %c0_16 = arith.constant 0 : index
    %32 = vector.load %arg5[%c1_14, %c0_15, %c0_16] : memref<4x8x256xf32, #tpu.memory_space<vmem>>, vector<1x8x256xf32>
    %33 = vector.shape_cast %32 : vector<1x8x256xf32> to vector<8x256xf32>
    %34 = vector.broadcast %28 : vector<1x256xf32> to vector<8x256xf32>
    %35 = arith.mulf %34, %31 : vector<8x256xf32>
    %36 = vector.broadcast %29 : vector<1x256xf32> to vector<8x256xf32>
    %37 = arith.mulf %36, %33 : vector<8x256xf32>
    %38 = arith.subf %35, %37 : vector<8x256xf32>
    %39 = arith.addf %21, %38 : vector<8x256xf32>
    %40 = vector.broadcast %28 : vector<1x256xf32> to vector<8x256xf32>
    %41 = arith.mulf %40, %33 : vector<8x256xf32>
    %42 = vector.broadcast %29 : vector<1x256xf32> to vector<8x256xf32>
    %43 = arith.mulf %42, %31 : vector<8x256xf32>
    %44 = arith.addf %41, %43 : vector<8x256xf32>
    %45 = arith.addf %27, %44 : vector<8x256xf32>
    %46 = vector.extract_strided_slice %6 {offsets = [2, 0], sizes = [1, 256], strides = [1, 1]} : vector<4x256xf32> to vector<1x256xf32>
    %47 = vector.extract_strided_slice %7 {offsets = [2, 0], sizes = [1, 256], strides = [1, 1]} : vector<4x256xf32> to vector<1x256xf32>
    %c2 = arith.constant 2 : index
    %c0_17 = arith.constant 0 : index
    %c0_18 = arith.constant 0 : index
    %48 = vector.load %arg4[%c2, %c0_17, %c0_18] : memref<4x8x256xf32, #tpu.memory_space<vmem>>, vector<1x8x256xf32>
    %49 = vector.shape_cast %48 : vector<1x8x256xf32> to vector<8x256xf32>
    %c2_19 = arith.constant 2 : index
    %c0_20 = arith.constant 0 : index
    %c0_21 = arith.constant 0 : index
    %50 = vector.load %arg5[%c2_19, %c0_20, %c0_21] : memref<4x8x256xf32, #tpu.memory_space<vmem>>, vector<1x8x256xf32>
    %51 = vector.shape_cast %50 : vector<1x8x256xf32> to vector<8x256xf32>
    %52 = vector.broadcast %46 : vector<1x256xf32> to vector<8x256xf32>
    %53 = arith.mulf %52, %49 : vector<8x256xf32>
    %54 = vector.broadcast %47 : vector<1x256xf32> to vector<8x256xf32>
    %55 = arith.mulf %54, %51 : vector<8x256xf32>
    %56 = arith.subf %53, %55 : vector<8x256xf32>
    %57 = arith.addf %39, %56 : vector<8x256xf32>
    %58 = vector.broadcast %46 : vector<1x256xf32> to vector<8x256xf32>
    %59 = arith.mulf %58, %51 : vector<8x256xf32>
    %60 = vector.broadcast %47 : vector<1x256xf32> to vector<8x256xf32>
    %61 = arith.mulf %60, %49 : vector<8x256xf32>
    %62 = arith.addf %59, %61 : vector<8x256xf32>
    %63 = arith.addf %45, %62 : vector<8x256xf32>
    %64 = vector.extract_strided_slice %6 {offsets = [3, 0], sizes = [1, 256], strides = [1, 1]} : vector<4x256xf32> to vector<1x256xf32>
    %65 = vector.extract_strided_slice %7 {offsets = [3, 0], sizes = [1, 256], strides = [1, 1]} : vector<4x256xf32> to vector<1x256xf32>
    %c3 = arith.constant 3 : index
    %c0_22 = arith.constant 0 : index
    %c0_23 = arith.constant 0 : index
    %66 = vector.load %arg4[%c3, %c0_22, %c0_23] : memref<4x8x256xf32, #tpu.memory_space<vmem>>, vector<1x8x256xf32>
    %67 = vector.shape_cast %66 : vector<1x8x256xf32> to vector<8x256xf32>
    %c3_24 = arith.constant 3 : index
    %c0_25 = arith.constant 0 : index
    %c0_26 = arith.constant 0 : index
    %68 = vector.load %arg5[%c3_24, %c0_25, %c0_26] : memref<4x8x256xf32, #tpu.memory_space<vmem>>, vector<1x8x256xf32>
    %69 = vector.shape_cast %68 : vector<1x8x256xf32> to vector<8x256xf32>
    %70 = vector.broadcast %64 : vector<1x256xf32> to vector<8x256xf32>
    %71 = arith.mulf %70, %67 : vector<8x256xf32>
    %72 = vector.broadcast %65 : vector<1x256xf32> to vector<8x256xf32>
    %73 = arith.mulf %72, %69 : vector<8x256xf32>
    %74 = arith.subf %71, %73 : vector<8x256xf32>
    %75 = arith.addf %57, %74 : vector<8x256xf32>
    %76 = vector.broadcast %64 : vector<1x256xf32> to vector<8x256xf32>
    %77 = arith.mulf %76, %69 : vector<8x256xf32>
    %78 = vector.broadcast %65 : vector<1x256xf32> to vector<8x256xf32>
    %79 = arith.mulf %78, %67 : vector<8x256xf32>
    %80 = arith.addf %77, %79 : vector<8x256xf32>
    %81 = arith.addf %63, %80 : vector<8x256xf32>
    %cst_27 = arith.constant 0.000000e+00 : f32
    %82 = vector.broadcast %cst_27 : f32 to vector<8x256xf32>
    %cst_28 = arith.constant 0.000000e+00 : f32
    %83 = vector.broadcast %cst_28 : f32 to vector<8x256xf32>
    %84 = vector.extract_strided_slice %75 {offsets = [0, 0], sizes = [1, 256], strides = [1, 1]} : vector<8x256xf32> to vector<1x256xf32>
    %85 = vector.extract_strided_slice %81 {offsets = [0, 0], sizes = [1, 256], strides = [1, 1]} : vector<8x256xf32> to vector<1x256xf32>
    %c0_29 = arith.constant 0 : index
    %c0_30 = arith.constant 0 : index
    %c0_31 = arith.constant 0 : index
    %86 = vector.load %arg6[%c0_29, %c0_30, %c0_31] : memref<8x8x256xf32, #tpu.memory_space<vmem>>, vector<1x8x256xf32>
    %87 = vector.shape_cast %86 : vector<1x8x256xf32> to vector<8x256xf32>
    %c0_32 = arith.constant 0 : index
    %c0_33 = arith.constant 0 : index
    %c0_34 = arith.constant 0 : index
    %88 = vector.load %arg7[%c0_32, %c0_33, %c0_34] : memref<8x8x256xf32, #tpu.memory_space<vmem>>, vector<1x8x256xf32>
    %89 = vector.shape_cast %88 : vector<1x8x256xf32> to vector<8x256xf32>
    %90 = vector.broadcast %84 : vector<1x256xf32> to vector<8x256xf32>
    %91 = arith.mulf %90, %87 : vector<8x256xf32>
    %92 = vector.broadcast %85 : vector<1x256xf32> to vector<8x256xf32>
    %93 = arith.mulf %92, %89 : vector<8x256xf32>
    %94 = arith.subf %91, %93 : vector<8x256xf32>
    %95 = arith.addf %82, %94 : vector<8x256xf32>
    %96 = vector.broadcast %84 : vector<1x256xf32> to vector<8x256xf32>
    %97 = arith.mulf %96, %89 : vector<8x256xf32>
    %98 = vector.broadcast %85 : vector<1x256xf32> to vector<8x256xf32>
    %99 = arith.mulf %98, %87 : vector<8x256xf32>
    %100 = arith.addf %97, %99 : vector<8x256xf32>
    %101 = arith.addf %83, %100 : vector<8x256xf32>
    %102 = vector.extract_strided_slice %75 {offsets = [1, 0], sizes = [1, 256], strides = [1, 1]} : vector<8x256xf32> to vector<1x256xf32>
    %103 = vector.extract_strided_slice %81 {offsets = [1, 0], sizes = [1, 256], strides = [1, 1]} : vector<8x256xf32> to vector<1x256xf32>
    %c1_35 = arith.constant 1 : index
    %c0_36 = arith.constant 0 : index
    %c0_37 = arith.constant 0 : index
    %104 = vector.load %arg6[%c1_35, %c0_36, %c0_37] : memref<8x8x256xf32, #tpu.memory_space<vmem>>, vector<1x8x256xf32>
    %105 = vector.shape_cast %104 : vector<1x8x256xf32> to vector<8x256xf32>
    %c1_38 = arith.constant 1 : index
    %c0_39 = arith.constant 0 : index
    %c0_40 = arith.constant 0 : index
    %106 = vector.load %arg7[%c1_38, %c0_39, %c0_40] : memref<8x8x256xf32, #tpu.memory_space<vmem>>, vector<1x8x256xf32>
    %107 = vector.shape_cast %106 : vector<1x8x256xf32> to vector<8x256xf32>
    %108 = vector.broadcast %102 : vector<1x256xf32> to vector<8x256xf32>
    %109 = arith.mulf %108, %105 : vector<8x256xf32>
    %110 = vector.broadcast %103 : vector<1x256xf32> to vector<8x256xf32>
    %111 = arith.mulf %110, %107 : vector<8x256xf32>
    %112 = arith.subf %109, %111 : vector<8x256xf32>
    %113 = arith.addf %95, %112 : vector<8x256xf32>
    %114 = vector.broadcast %102 : vector<1x256xf32> to vector<8x256xf32>
    %115 = arith.mulf %114, %107 : vector<8x256xf32>
    %116 = vector.broadcast %103 : vector<1x256xf32> to vector<8x256xf32>
    %117 = arith.mulf %116, %105 : vector<8x256xf32>
    %118 = arith.addf %115, %117 : vector<8x256xf32>
    %119 = arith.addf %101, %118 : vector<8x256xf32>
    %120 = vector.extract_strided_slice %75 {offsets = [2, 0], sizes = [1, 256], strides = [1, 1]} : vector<8x256xf32> to vector<1x256xf32>
    %121 = vector.extract_strided_slice %81 {offsets = [2, 0], sizes = [1, 256], strides = [1, 1]} : vector<8x256xf32> to vector<1x256xf32>
    %c2_41 = arith.constant 2 : index
    %c0_42 = arith.constant 0 : index
    %c0_43 = arith.constant 0 : index
    %122 = vector.load %arg6[%c2_41, %c0_42, %c0_43] : memref<8x8x256xf32, #tpu.memory_space<vmem>>, vector<1x8x256xf32>
    %123 = vector.shape_cast %122 : vector<1x8x256xf32> to vector<8x256xf32>
    %c2_44 = arith.constant 2 : index
    %c0_45 = arith.constant 0 : index
    %c0_46 = arith.constant 0 : index
    %124 = vector.load %arg7[%c2_44, %c0_45, %c0_46] : memref<8x8x256xf32, #tpu.memory_space<vmem>>, vector<1x8x256xf32>
    %125 = vector.shape_cast %124 : vector<1x8x256xf32> to vector<8x256xf32>
    %126 = vector.broadcast %120 : vector<1x256xf32> to vector<8x256xf32>
    %127 = arith.mulf %126, %123 : vector<8x256xf32>
    %128 = vector.broadcast %121 : vector<1x256xf32> to vector<8x256xf32>
    %129 = arith.mulf %128, %125 : vector<8x256xf32>
    %130 = arith.subf %127, %129 : vector<8x256xf32>
    %131 = arith.addf %113, %130 : vector<8x256xf32>
    %132 = vector.broadcast %120 : vector<1x256xf32> to vector<8x256xf32>
    %133 = arith.mulf %132, %125 : vector<8x256xf32>
    %134 = vector.broadcast %121 : vector<1x256xf32> to vector<8x256xf32>
    %135 = arith.mulf %134, %123 : vector<8x256xf32>
    %136 = arith.addf %133, %135 : vector<8x256xf32>
    %137 = arith.addf %119, %136 : vector<8x256xf32>
    %138 = vector.extract_strided_slice %75 {offsets = [3, 0], sizes = [1, 256], strides = [1, 1]} : vector<8x256xf32> to vector<1x256xf32>
    %139 = vector.extract_strided_slice %81 {offsets = [3, 0], sizes = [1, 256], strides = [1, 1]} : vector<8x256xf32> to vector<1x256xf32>
    %c3_47 = arith.constant 3 : index
    %c0_48 = arith.constant 0 : index
    %c0_49 = arith.constant 0 : index
    %140 = vector.load %arg6[%c3_47, %c0_48, %c0_49] : memref<8x8x256xf32, #tpu.memory_space<vmem>>, vector<1x8x256xf32>
    %141 = vector.shape_cast %140 : vector<1x8x256xf32> to vector<8x256xf32>
    %c3_50 = arith.constant 3 : index
    %c0_51 = arith.constant 0 : index
    %c0_52 = arith.constant 0 : index
    %142 = vector.load %arg7[%c3_50, %c0_51, %c0_52] : memref<8x8x256xf32, #tpu.memory_space<vmem>>, vector<1x8x256xf32>
    %143 = vector.shape_cast %142 : vector<1x8x256xf32> to vector<8x256xf32>
    %144 = vector.broadcast %138 : vector<1x256xf32> to vector<8x256xf32>
    %145 = arith.mulf %144, %141 : vector<8x256xf32>
    %146 = vector.broadcast %139 : vector<1x256xf32> to vector<8x256xf32>
    %147 = arith.mulf %146, %143 : vector<8x256xf32>
    %148 = arith.subf %145, %147 : vector<8x256xf32>
    %149 = arith.addf %131, %148 : vector<8x256xf32>
    %150 = vector.broadcast %138 : vector<1x256xf32> to vector<8x256xf32>
    %151 = arith.mulf %150, %143 : vector<8x256xf32>
    %152 = vector.broadcast %139 : vector<1x256xf32> to vector<8x256xf32>
    %153 = arith.mulf %152, %141 : vector<8x256xf32>
    %154 = arith.addf %151, %153 : vector<8x256xf32>
    %155 = arith.addf %137, %154 : vector<8x256xf32>
    %156 = vector.extract_strided_slice %75 {offsets = [4, 0], sizes = [1, 256], strides = [1, 1]} : vector<8x256xf32> to vector<1x256xf32>
    %157 = vector.extract_strided_slice %81 {offsets = [4, 0], sizes = [1, 256], strides = [1, 1]} : vector<8x256xf32> to vector<1x256xf32>
    %c4 = arith.constant 4 : index
    %c0_53 = arith.constant 0 : index
    %c0_54 = arith.constant 0 : index
    %158 = vector.load %arg6[%c4, %c0_53, %c0_54] : memref<8x8x256xf32, #tpu.memory_space<vmem>>, vector<1x8x256xf32>
    %159 = vector.shape_cast %158 : vector<1x8x256xf32> to vector<8x256xf32>
    %c4_55 = arith.constant 4 : index
    %c0_56 = arith.constant 0 : index
    %c0_57 = arith.constant 0 : index
    %160 = vector.load %arg7[%c4_55, %c0_56, %c0_57] : memref<8x8x256xf32, #tpu.memory_space<vmem>>, vector<1x8x256xf32>
    %161 = vector.shape_cast %160 : vector<1x8x256xf32> to vector<8x256xf32>
    %162 = vector.broadcast %156 : vector<1x256xf32> to vector<8x256xf32>
    %163 = arith.mulf %162, %159 : vector<8x256xf32>
    %164 = vector.broadcast %157 : vector<1x256xf32> to vector<8x256xf32>
    %165 = arith.mulf %164, %161 : vector<8x256xf32>
    %166 = arith.subf %163, %165 : vector<8x256xf32>
    %167 = arith.addf %149, %166 : vector<8x256xf32>
    %168 = vector.broadcast %156 : vector<1x256xf32> to vector<8x256xf32>
    %169 = arith.mulf %168, %161 : vector<8x256xf32>
    %170 = vector.broadcast %157 : vector<1x256xf32> to vector<8x256xf32>
    %171 = arith.mulf %170, %159 : vector<8x256xf32>
    %172 = arith.addf %169, %171 : vector<8x256xf32>
    %173 = arith.addf %155, %172 : vector<8x256xf32>
    %174 = vector.extract_strided_slice %75 {offsets = [5, 0], sizes = [1, 256], strides = [1, 1]} : vector<8x256xf32> to vector<1x256xf32>
    %175 = vector.extract_strided_slice %81 {offsets = [5, 0], sizes = [1, 256], strides = [1, 1]} : vector<8x256xf32> to vector<1x256xf32>
    %c5 = arith.constant 5 : index
    %c0_58 = arith.constant 0 : index
    %c0_59 = arith.constant 0 : index
    %176 = vector.load %arg6[%c5, %c0_58, %c0_59] : memref<8x8x256xf32, #tpu.memory_space<vmem>>, vector<1x8x256xf32>
    %177 = vector.shape_cast %176 : vector<1x8x256xf32> to vector<8x256xf32>
    %c5_60 = arith.constant 5 : index
    %c0_61 = arith.constant 0 : index
    %c0_62 = arith.constant 0 : index
    %178 = vector.load %arg7[%c5_60, %c0_61, %c0_62] : memref<8x8x256xf32, #tpu.memory_space<vmem>>, vector<1x8x256xf32>
    %179 = vector.shape_cast %178 : vector<1x8x256xf32> to vector<8x256xf32>
    %180 = vector.broadcast %174 : vector<1x256xf32> to vector<8x256xf32>
    %181 = arith.mulf %180, %177 : vector<8x256xf32>
    %182 = vector.broadcast %175 : vector<1x256xf32> to vector<8x256xf32>
    %183 = arith.mulf %182, %179 : vector<8x256xf32>
    %184 = arith.subf %181, %183 : vector<8x256xf32>
    %185 = arith.addf %167, %184 : vector<8x256xf32>
    %186 = vector.broadcast %174 : vector<1x256xf32> to vector<8x256xf32>
    %187 = arith.mulf %186, %179 : vector<8x256xf32>
    %188 = vector.broadcast %175 : vector<1x256xf32> to vector<8x256xf32>
    %189 = arith.mulf %188, %177 : vector<8x256xf32>
    %190 = arith.addf %187, %189 : vector<8x256xf32>
    %191 = arith.addf %173, %190 : vector<8x256xf32>
    %192 = vector.extract_strided_slice %75 {offsets = [6, 0], sizes = [1, 256], strides = [1, 1]} : vector<8x256xf32> to vector<1x256xf32>
    %193 = vector.extract_strided_slice %81 {offsets = [6, 0], sizes = [1, 256], strides = [1, 1]} : vector<8x256xf32> to vector<1x256xf32>
    %c6 = arith.constant 6 : index
    %c0_63 = arith.constant 0 : index
    %c0_64 = arith.constant 0 : index
    %194 = vector.load %arg6[%c6, %c0_63, %c0_64] : memref<8x8x256xf32, #tpu.memory_space<vmem>>, vector<1x8x256xf32>
    %195 = vector.shape_cast %194 : vector<1x8x256xf32> to vector<8x256xf32>
    %c6_65 = arith.constant 6 : index
    %c0_66 = arith.constant 0 : index
    %c0_67 = arith.constant 0 : index
    %196 = vector.load %arg7[%c6_65, %c0_66, %c0_67] : memref<8x8x256xf32, #tpu.memory_space<vmem>>, vector<1x8x256xf32>
    %197 = vector.shape_cast %196 : vector<1x8x256xf32> to vector<8x256xf32>
    %198 = vector.broadcast %192 : vector<1x256xf32> to vector<8x256xf32>
    %199 = arith.mulf %198, %195 : vector<8x256xf32>
    %200 = vector.broadcast %193 : vector<1x256xf32> to vector<8x256xf32>
    %201 = arith.mulf %200, %197 : vector<8x256xf32>
    %202 = arith.subf %199, %201 : vector<8x256xf32>
    %203 = arith.addf %185, %202 : vector<8x256xf32>
    %204 = vector.broadcast %192 : vector<1x256xf32> to vector<8x256xf32>
    %205 = arith.mulf %204, %197 : vector<8x256xf32>
    %206 = vector.broadcast %193 : vector<1x256xf32> to vector<8x256xf32>
    %207 = arith.mulf %206, %195 : vector<8x256xf32>
    %208 = arith.addf %205, %207 : vector<8x256xf32>
    %209 = arith.addf %191, %208 : vector<8x256xf32>
    %210 = vector.extract_strided_slice %75 {offsets = [7, 0], sizes = [1, 256], strides = [1, 1]} : vector<8x256xf32> to vector<1x256xf32>
    %211 = vector.extract_strided_slice %81 {offsets = [7, 0], sizes = [1, 256], strides = [1, 1]} : vector<8x256xf32> to vector<1x256xf32>
    %c7 = arith.constant 7 : index
    %c0_68 = arith.constant 0 : index
    %c0_69 = arith.constant 0 : index
    %212 = vector.load %arg6[%c7, %c0_68, %c0_69] : memref<8x8x256xf32, #tpu.memory_space<vmem>>, vector<1x8x256xf32>
    %213 = vector.shape_cast %212 : vector<1x8x256xf32> to vector<8x256xf32>
    %c7_70 = arith.constant 7 : index
    %c0_71 = arith.constant 0 : index
    %c0_72 = arith.constant 0 : index
    %214 = vector.load %arg7[%c7_70, %c0_71, %c0_72] : memref<8x8x256xf32, #tpu.memory_space<vmem>>, vector<1x8x256xf32>
    %215 = vector.shape_cast %214 : vector<1x8x256xf32> to vector<8x256xf32>
    %216 = vector.broadcast %210 : vector<1x256xf32> to vector<8x256xf32>
    %217 = arith.mulf %216, %213 : vector<8x256xf32>
    %218 = vector.broadcast %211 : vector<1x256xf32> to vector<8x256xf32>
    %219 = arith.mulf %218, %215 : vector<8x256xf32>
    %220 = arith.subf %217, %219 : vector<8x256xf32>
    %221 = arith.addf %203, %220 : vector<8x256xf32>
    %222 = vector.broadcast %210 : vector<1x256xf32> to vector<8x256xf32>
    %223 = arith.mulf %222, %215 : vector<8x256xf32>
    %224 = vector.broadcast %211 : vector<1x256xf32> to vector<8x256xf32>
    %225 = arith.mulf %224, %213 : vector<8x256xf32>
    %226 = arith.addf %223, %225 : vector<8x256xf32>
    %227 = arith.addf %209, %226 : vector<8x256xf32>
    %cst_73 = arith.constant 0.000000e+00 : f32
    %228 = vector.broadcast %cst_73 : f32 to vector<8x256xf32>
    %cst_74 = arith.constant 0.000000e+00 : f32
    %229 = vector.broadcast %cst_74 : f32 to vector<8x256xf32>
    %230 = vector.extract_strided_slice %221 {offsets = [0, 0], sizes = [1, 256], strides = [1, 1]} : vector<8x256xf32> to vector<1x256xf32>
    %231 = vector.extract_strided_slice %227 {offsets = [0, 0], sizes = [1, 256], strides = [1, 1]} : vector<8x256xf32> to vector<1x256xf32>
    %c0_75 = arith.constant 0 : index
    %c0_76 = arith.constant 0 : index
    %c0_77 = arith.constant 0 : index
    %232 = vector.load %arg8[%c0_75, %c0_76, %c0_77] : memref<8x8x256xf32, #tpu.memory_space<vmem>>, vector<1x8x256xf32>
    %233 = vector.shape_cast %232 : vector<1x8x256xf32> to vector<8x256xf32>
    %c0_78 = arith.constant 0 : index
    %c0_79 = arith.constant 0 : index
    %c0_80 = arith.constant 0 : index
    %234 = vector.load %arg9[%c0_78, %c0_79, %c0_80] : memref<8x8x256xf32, #tpu.memory_space<vmem>>, vector<1x8x256xf32>
    %235 = vector.shape_cast %234 : vector<1x8x256xf32> to vector<8x256xf32>
    %236 = vector.broadcast %230 : vector<1x256xf32> to vector<8x256xf32>
    %237 = arith.mulf %236, %233 : vector<8x256xf32>
    %238 = vector.broadcast %231 : vector<1x256xf32> to vector<8x256xf32>
    %239 = arith.mulf %238, %235 : vector<8x256xf32>
    %240 = arith.subf %237, %239 : vector<8x256xf32>
    %241 = arith.addf %228, %240 : vector<8x256xf32>
    %242 = vector.broadcast %230 : vector<1x256xf32> to vector<8x256xf32>
    %243 = arith.mulf %242, %235 : vector<8x256xf32>
    %244 = vector.broadcast %231 : vector<1x256xf32> to vector<8x256xf32>
    %245 = arith.mulf %244, %233 : vector<8x256xf32>
    %246 = arith.addf %243, %245 : vector<8x256xf32>
    %247 = arith.addf %229, %246 : vector<8x256xf32>
    %248 = vector.extract_strided_slice %221 {offsets = [1, 0], sizes = [1, 256], strides = [1, 1]} : vector<8x256xf32> to vector<1x256xf32>
    %249 = vector.extract_strided_slice %227 {offsets = [1, 0], sizes = [1, 256], strides = [1, 1]} : vector<8x256xf32> to vector<1x256xf32>
    %c1_81 = arith.constant 1 : index
    %c0_82 = arith.constant 0 : index
    %c0_83 = arith.constant 0 : index
    %250 = vector.load %arg8[%c1_81, %c0_82, %c0_83] : memref<8x8x256xf32, #tpu.memory_space<vmem>>, vector<1x8x256xf32>
    %251 = vector.shape_cast %250 : vector<1x8x256xf32> to vector<8x256xf32>
    %c1_84 = arith.constant 1 : index
    %c0_85 = arith.constant 0 : index
    %c0_86 = arith.constant 0 : index
    %252 = vector.load %arg9[%c1_84, %c0_85, %c0_86] : memref<8x8x256xf32, #tpu.memory_space<vmem>>, vector<1x8x256xf32>
    %253 = vector.shape_cast %252 : vector<1x8x256xf32> to vector<8x256xf32>
    %254 = vector.broadcast %248 : vector<1x256xf32> to vector<8x256xf32>
    %255 = arith.mulf %254, %251 : vector<8x256xf32>
    %256 = vector.broadcast %249 : vector<1x256xf32> to vector<8x256xf32>
    %257 = arith.mulf %256, %253 : vector<8x256xf32>
    %258 = arith.subf %255, %257 : vector<8x256xf32>
    %259 = arith.addf %241, %258 : vector<8x256xf32>
    %260 = vector.broadcast %248 : vector<1x256xf32> to vector<8x256xf32>
    %261 = arith.mulf %260, %253 : vector<8x256xf32>
    %262 = vector.broadcast %249 : vector<1x256xf32> to vector<8x256xf32>
    %263 = arith.mulf %262, %251 : vector<8x256xf32>
    %264 = arith.addf %261, %263 : vector<8x256xf32>
    %265 = arith.addf %247, %264 : vector<8x256xf32>
    %266 = vector.extract_strided_slice %221 {offsets = [2, 0], sizes = [1, 256], strides = [1, 1]} : vector<8x256xf32> to vector<1x256xf32>
    %267 = vector.extract_strided_slice %227 {offsets = [2, 0], sizes = [1, 256], strides = [1, 1]} : vector<8x256xf32> to vector<1x256xf32>
    %c2_87 = arith.constant 2 : index
    %c0_88 = arith.constant 0 : index
    %c0_89 = arith.constant 0 : index
    %268 = vector.load %arg8[%c2_87, %c0_88, %c0_89] : memref<8x8x256xf32, #tpu.memory_space<vmem>>, vector<1x8x256xf32>
    %269 = vector.shape_cast %268 : vector<1x8x256xf32> to vector<8x256xf32>
    %c2_90 = arith.constant 2 : index
    %c0_91 = arith.constant 0 : index
    %c0_92 = arith.constant 0 : index
    %270 = vector.load %arg9[%c2_90, %c0_91, %c0_92] : memref<8x8x256xf32, #tpu.memory_space<vmem>>, vector<1x8x256xf32>
    %271 = vector.shape_cast %270 : vector<1x8x256xf32> to vector<8x256xf32>
    %272 = vector.broadcast %266 : vector<1x256xf32> to vector<8x256xf32>
    %273 = arith.mulf %272, %269 : vector<8x256xf32>
    %274 = vector.broadcast %267 : vector<1x256xf32> to vector<8x256xf32>
    %275 = arith.mulf %274, %271 : vector<8x256xf32>
    %276 = arith.subf %273, %275 : vector<8x256xf32>
    %277 = arith.addf %259, %276 : vector<8x256xf32>
    %278 = vector.broadcast %266 : vector<1x256xf32> to vector<8x256xf32>
    %279 = arith.mulf %278, %271 : vector<8x256xf32>
    %280 = vector.broadcast %267 : vector<1x256xf32> to vector<8x256xf32>
    %281 = arith.mulf %280, %269 : vector<8x256xf32>
    %282 = arith.addf %279, %281 : vector<8x256xf32>
    %283 = arith.addf %265, %282 : vector<8x256xf32>
    %284 = vector.extract_strided_slice %221 {offsets = [3, 0], sizes = [1, 256], strides = [1, 1]} : vector<8x256xf32> to vector<1x256xf32>
    %285 = vector.extract_strided_slice %227 {offsets = [3, 0], sizes = [1, 256], strides = [1, 1]} : vector<8x256xf32> to vector<1x256xf32>
    %c3_93 = arith.constant 3 : index
    %c0_94 = arith.constant 0 : index
    %c0_95 = arith.constant 0 : index
    %286 = vector.load %arg8[%c3_93, %c0_94, %c0_95] : memref<8x8x256xf32, #tpu.memory_space<vmem>>, vector<1x8x256xf32>
    %287 = vector.shape_cast %286 : vector<1x8x256xf32> to vector<8x256xf32>
    %c3_96 = arith.constant 3 : index
    %c0_97 = arith.constant 0 : index
    %c0_98 = arith.constant 0 : index
    %288 = vector.load %arg9[%c3_96, %c0_97, %c0_98] : memref<8x8x256xf32, #tpu.memory_space<vmem>>, vector<1x8x256xf32>
    %289 = vector.shape_cast %288 : vector<1x8x256xf32> to vector<8x256xf32>
    %290 = vector.broadcast %284 : vector<1x256xf32> to vector<8x256xf32>
    %291 = arith.mulf %290, %287 : vector<8x256xf32>
    %292 = vector.broadcast %285 : vector<1x256xf32> to vector<8x256xf32>
    %293 = arith.mulf %292, %289 : vector<8x256xf32>
    %294 = arith.subf %291, %293 : vector<8x256xf32>
    %295 = arith.addf %277, %294 : vector<8x256xf32>
    %296 = vector.broadcast %284 : vector<1x256xf32> to vector<8x256xf32>
    %297 = arith.mulf %296, %289 : vector<8x256xf32>
    %298 = vector.broadcast %285 : vector<1x256xf32> to vector<8x256xf32>
    %299 = arith.mulf %298, %287 : vector<8x256xf32>
    %300 = arith.addf %297, %299 : vector<8x256xf32>
    %301 = arith.addf %283, %300 : vector<8x256xf32>
    %302 = vector.extract_strided_slice %221 {offsets = [4, 0], sizes = [1, 256], strides = [1, 1]} : vector<8x256xf32> to vector<1x256xf32>
    %303 = vector.extract_strided_slice %227 {offsets = [4, 0], sizes = [1, 256], strides = [1, 1]} : vector<8x256xf32> to vector<1x256xf32>
    %c4_99 = arith.constant 4 : index
    %c0_100 = arith.constant 0 : index
    %c0_101 = arith.constant 0 : index
    %304 = vector.load %arg8[%c4_99, %c0_100, %c0_101] : memref<8x8x256xf32, #tpu.memory_space<vmem>>, vector<1x8x256xf32>
    %305 = vector.shape_cast %304 : vector<1x8x256xf32> to vector<8x256xf32>
    %c4_102 = arith.constant 4 : index
    %c0_103 = arith.constant 0 : index
    %c0_104 = arith.constant 0 : index
    %306 = vector.load %arg9[%c4_102, %c0_103, %c0_104] : memref<8x8x256xf32, #tpu.memory_space<vmem>>, vector<1x8x256xf32>
    %307 = vector.shape_cast %306 : vector<1x8x256xf32> to vector<8x256xf32>
    %308 = vector.broadcast %302 : vector<1x256xf32> to vector<8x256xf32>
    %309 = arith.mulf %308, %305 : vector<8x256xf32>
    %310 = vector.broadcast %303 : vector<1x256xf32> to vector<8x256xf32>
    %311 = arith.mulf %310, %307 : vector<8x256xf32>
    %312 = arith.subf %309, %311 : vector<8x256xf32>
    %313 = arith.addf %295, %312 : vector<8x256xf32>
    %314 = vector.broadcast %302 : vector<1x256xf32> to vector<8x256xf32>
    %315 = arith.mulf %314, %307 : vector<8x256xf32>
    %316 = vector.broadcast %303 : vector<1x256xf32> to vector<8x256xf32>
    %317 = arith.mulf %316, %305 : vector<8x256xf32>
    %318 = arith.addf %315, %317 : vector<8x256xf32>
    %319 = arith.addf %301, %318 : vector<8x256xf32>
    %320 = vector.extract_strided_slice %221 {offsets = [5, 0], sizes = [1, 256], strides = [1, 1]} : vector<8x256xf32> to vector<1x256xf32>
    %321 = vector.extract_strided_slice %227 {offsets = [5, 0], sizes = [1, 256], strides = [1, 1]} : vector<8x256xf32> to vector<1x256xf32>
    %c5_105 = arith.constant 5 : index
    %c0_106 = arith.constant 0 : index
    %c0_107 = arith.constant 0 : index
    %322 = vector.load %arg8[%c5_105, %c0_106, %c0_107] : memref<8x8x256xf32, #tpu.memory_space<vmem>>, vector<1x8x256xf32>
    %323 = vector.shape_cast %322 : vector<1x8x256xf32> to vector<8x256xf32>
    %c5_108 = arith.constant 5 : index
    %c0_109 = arith.constant 0 : index
    %c0_110 = arith.constant 0 : index
    %324 = vector.load %arg9[%c5_108, %c0_109, %c0_110] : memref<8x8x256xf32, #tpu.memory_space<vmem>>, vector<1x8x256xf32>
    %325 = vector.shape_cast %324 : vector<1x8x256xf32> to vector<8x256xf32>
    %326 = vector.broadcast %320 : vector<1x256xf32> to vector<8x256xf32>
    %327 = arith.mulf %326, %323 : vector<8x256xf32>
    %328 = vector.broadcast %321 : vector<1x256xf32> to vector<8x256xf32>
    %329 = arith.mulf %328, %325 : vector<8x256xf32>
    %330 = arith.subf %327, %329 : vector<8x256xf32>
    %331 = arith.addf %313, %330 : vector<8x256xf32>
    %332 = vector.broadcast %320 : vector<1x256xf32> to vector<8x256xf32>
    %333 = arith.mulf %332, %325 : vector<8x256xf32>
    %334 = vector.broadcast %321 : vector<1x256xf32> to vector<8x256xf32>
    %335 = arith.mulf %334, %323 : vector<8x256xf32>
    %336 = arith.addf %333, %335 : vector<8x256xf32>
    %337 = arith.addf %319, %336 : vector<8x256xf32>
    %338 = vector.extract_strided_slice %221 {offsets = [6, 0], sizes = [1, 256], strides = [1, 1]} : vector<8x256xf32> to vector<1x256xf32>
    %339 = vector.extract_strided_slice %227 {offsets = [6, 0], sizes = [1, 256], strides = [1, 1]} : vector<8x256xf32> to vector<1x256xf32>
    %c6_111 = arith.constant 6 : index
    %c0_112 = arith.constant 0 : index
    %c0_113 = arith.constant 0 : index
    %340 = vector.load %arg8[%c6_111, %c0_112, %c0_113] : memref<8x8x256xf32, #tpu.memory_space<vmem>>, vector<1x8x256xf32>
    %341 = vector.shape_cast %340 : vector<1x8x256xf32> to vector<8x256xf32>
    %c6_114 = arith.constant 6 : index
    %c0_115 = arith.constant 0 : index
    %c0_116 = arith.constant 0 : index
    %342 = vector.load %arg9[%c6_114, %c0_115, %c0_116] : memref<8x8x256xf32, #tpu.memory_space<vmem>>, vector<1x8x256xf32>
    %343 = vector.shape_cast %342 : vector<1x8x256xf32> to vector<8x256xf32>
    %344 = vector.broadcast %338 : vector<1x256xf32> to vector<8x256xf32>
    %345 = arith.mulf %344, %341 : vector<8x256xf32>
    %346 = vector.broadcast %339 : vector<1x256xf32> to vector<8x256xf32>
    %347 = arith.mulf %346, %343 : vector<8x256xf32>
    %348 = arith.subf %345, %347 : vector<8x256xf32>
    %349 = arith.addf %331, %348 : vector<8x256xf32>
    %350 = vector.broadcast %338 : vector<1x256xf32> to vector<8x256xf32>
    %351 = arith.mulf %350, %343 : vector<8x256xf32>
    %352 = vector.broadcast %339 : vector<1x256xf32> to vector<8x256xf32>
    %353 = arith.mulf %352, %341 : vector<8x256xf32>
    %354 = arith.addf %351, %353 : vector<8x256xf32>
    %355 = arith.addf %337, %354 : vector<8x256xf32>
    %356 = vector.extract_strided_slice %221 {offsets = [7, 0], sizes = [1, 256], strides = [1, 1]} : vector<8x256xf32> to vector<1x256xf32>
    %357 = vector.extract_strided_slice %227 {offsets = [7, 0], sizes = [1, 256], strides = [1, 1]} : vector<8x256xf32> to vector<1x256xf32>
    %c7_117 = arith.constant 7 : index
    %c0_118 = arith.constant 0 : index
    %c0_119 = arith.constant 0 : index
    %358 = vector.load %arg8[%c7_117, %c0_118, %c0_119] : memref<8x8x256xf32, #tpu.memory_space<vmem>>, vector<1x8x256xf32>
    %359 = vector.shape_cast %358 : vector<1x8x256xf32> to vector<8x256xf32>
    %c7_120 = arith.constant 7 : index
    %c0_121 = arith.constant 0 : index
    %c0_122 = arith.constant 0 : index
    %360 = vector.load %arg9[%c7_120, %c0_121, %c0_122] : memref<8x8x256xf32, #tpu.memory_space<vmem>>, vector<1x8x256xf32>
    %361 = vector.shape_cast %360 : vector<1x8x256xf32> to vector<8x256xf32>
    %362 = vector.broadcast %356 : vector<1x256xf32> to vector<8x256xf32>
    %363 = arith.mulf %362, %359 : vector<8x256xf32>
    %364 = vector.broadcast %357 : vector<1x256xf32> to vector<8x256xf32>
    %365 = arith.mulf %364, %361 : vector<8x256xf32>
    %366 = arith.subf %363, %365 : vector<8x256xf32>
    %367 = arith.addf %349, %366 : vector<8x256xf32>
    %368 = vector.broadcast %356 : vector<1x256xf32> to vector<8x256xf32>
    %369 = arith.mulf %368, %361 : vector<8x256xf32>
    %370 = vector.broadcast %357 : vector<1x256xf32> to vector<8x256xf32>
    %371 = arith.mulf %370, %359 : vector<8x256xf32>
    %372 = arith.addf %369, %371 : vector<8x256xf32>
    %373 = arith.addf %355, %372 : vector<8x256xf32>
    %374 = tpu.concatenate %367, %373 in 1 : vector<8x256xf32>, vector<8x256xf32> -> vector<8x512xf32>
    %375 = vector.extract_strided_slice %4 {offsets = [4, 0], sizes = [4, 256], strides = [1, 1]} : vector<8x256xf32> to vector<4x256xf32>
    %376 = vector.extract_strided_slice %5 {offsets = [4, 0], sizes = [4, 256], strides = [1, 1]} : vector<8x256xf32> to vector<4x256xf32>
    %cst_123 = arith.constant 0.000000e+00 : f32
    %377 = vector.broadcast %cst_123 : f32 to vector<8x256xf32>
    %cst_124 = arith.constant 0.000000e+00 : f32
    %378 = vector.broadcast %cst_124 : f32 to vector<8x256xf32>
    %379 = vector.extract_strided_slice %375 {offsets = [0, 0], sizes = [1, 256], strides = [1, 1]} : vector<4x256xf32> to vector<1x256xf32>
    %380 = vector.extract_strided_slice %376 {offsets = [0, 0], sizes = [1, 256], strides = [1, 1]} : vector<4x256xf32> to vector<1x256xf32>
    %c0_125 = arith.constant 0 : index
    %c0_126 = arith.constant 0 : index
    %c0_127 = arith.constant 0 : index
    %381 = vector.load %arg4[%c0_125, %c0_126, %c0_127] : memref<4x8x256xf32, #tpu.memory_space<vmem>>, vector<1x8x256xf32>
    %382 = vector.shape_cast %381 : vector<1x8x256xf32> to vector<8x256xf32>
    %c0_128 = arith.constant 0 : index
    %c0_129 = arith.constant 0 : index
    %c0_130 = arith.constant 0 : index
    %383 = vector.load %arg5[%c0_128, %c0_129, %c0_130] : memref<4x8x256xf32, #tpu.memory_space<vmem>>, vector<1x8x256xf32>
    %384 = vector.shape_cast %383 : vector<1x8x256xf32> to vector<8x256xf32>
    %385 = vector.broadcast %379 : vector<1x256xf32> to vector<8x256xf32>
    %386 = arith.mulf %385, %382 : vector<8x256xf32>
    %387 = vector.broadcast %380 : vector<1x256xf32> to vector<8x256xf32>
    %388 = arith.mulf %387, %384 : vector<8x256xf32>
    %389 = arith.subf %386, %388 : vector<8x256xf32>
    %390 = arith.addf %377, %389 : vector<8x256xf32>
    %391 = vector.broadcast %379 : vector<1x256xf32> to vector<8x256xf32>
    %392 = arith.mulf %391, %384 : vector<8x256xf32>
    %393 = vector.broadcast %380 : vector<1x256xf32> to vector<8x256xf32>
    %394 = arith.mulf %393, %382 : vector<8x256xf32>
    %395 = arith.addf %392, %394 : vector<8x256xf32>
    %396 = arith.addf %378, %395 : vector<8x256xf32>
    %397 = vector.extract_strided_slice %375 {offsets = [1, 0], sizes = [1, 256], strides = [1, 1]} : vector<4x256xf32> to vector<1x256xf32>
    %398 = vector.extract_strided_slice %376 {offsets = [1, 0], sizes = [1, 256], strides = [1, 1]} : vector<4x256xf32> to vector<1x256xf32>
    %c1_131 = arith.constant 1 : index
    %c0_132 = arith.constant 0 : index
    %c0_133 = arith.constant 0 : index
    %399 = vector.load %arg4[%c1_131, %c0_132, %c0_133] : memref<4x8x256xf32, #tpu.memory_space<vmem>>, vector<1x8x256xf32>
    %400 = vector.shape_cast %399 : vector<1x8x256xf32> to vector<8x256xf32>
    %c1_134 = arith.constant 1 : index
    %c0_135 = arith.constant 0 : index
    %c0_136 = arith.constant 0 : index
    %401 = vector.load %arg5[%c1_134, %c0_135, %c0_136] : memref<4x8x256xf32, #tpu.memory_space<vmem>>, vector<1x8x256xf32>
    %402 = vector.shape_cast %401 : vector<1x8x256xf32> to vector<8x256xf32>
    %403 = vector.broadcast %397 : vector<1x256xf32> to vector<8x256xf32>
    %404 = arith.mulf %403, %400 : vector<8x256xf32>
    %405 = vector.broadcast %398 : vector<1x256xf32> to vector<8x256xf32>
    %406 = arith.mulf %405, %402 : vector<8x256xf32>
    %407 = arith.subf %404, %406 : vector<8x256xf32>
    %408 = arith.addf %390, %407 : vector<8x256xf32>
    %409 = vector.broadcast %397 : vector<1x256xf32> to vector<8x256xf32>
    %410 = arith.mulf %409, %402 : vector<8x256xf32>
    %411 = vector.broadcast %398 : vector<1x256xf32> to vector<8x256xf32>
    %412 = arith.mulf %411, %400 : vector<8x256xf32>
    %413 = arith.addf %410, %412 : vector<8x256xf32>
    %414 = arith.addf %396, %413 : vector<8x256xf32>
    %415 = vector.extract_strided_slice %375 {offsets = [2, 0], sizes = [1, 256], strides = [1, 1]} : vector<4x256xf32> to vector<1x256xf32>
    %416 = vector.extract_strided_slice %376 {offsets = [2, 0], sizes = [1, 256], strides = [1, 1]} : vector<4x256xf32> to vector<1x256xf32>
    %c2_137 = arith.constant 2 : index
    %c0_138 = arith.constant 0 : index
    %c0_139 = arith.constant 0 : index
    %417 = vector.load %arg4[%c2_137, %c0_138, %c0_139] : memref<4x8x256xf32, #tpu.memory_space<vmem>>, vector<1x8x256xf32>
    %418 = vector.shape_cast %417 : vector<1x8x256xf32> to vector<8x256xf32>
    %c2_140 = arith.constant 2 : index
    %c0_141 = arith.constant 0 : index
    %c0_142 = arith.constant 0 : index
    %419 = vector.load %arg5[%c2_140, %c0_141, %c0_142] : memref<4x8x256xf32, #tpu.memory_space<vmem>>, vector<1x8x256xf32>
    %420 = vector.shape_cast %419 : vector<1x8x256xf32> to vector<8x256xf32>
    %421 = vector.broadcast %415 : vector<1x256xf32> to vector<8x256xf32>
    %422 = arith.mulf %421, %418 : vector<8x256xf32>
    %423 = vector.broadcast %416 : vector<1x256xf32> to vector<8x256xf32>
    %424 = arith.mulf %423, %420 : vector<8x256xf32>
    %425 = arith.subf %422, %424 : vector<8x256xf32>
    %426 = arith.addf %408, %425 : vector<8x256xf32>
    %427 = vector.broadcast %415 : vector<1x256xf32> to vector<8x256xf32>
    %428 = arith.mulf %427, %420 : vector<8x256xf32>
    %429 = vector.broadcast %416 : vector<1x256xf32> to vector<8x256xf32>
    %430 = arith.mulf %429, %418 : vector<8x256xf32>
    %431 = arith.addf %428, %430 : vector<8x256xf32>
    %432 = arith.addf %414, %431 : vector<8x256xf32>
    %433 = vector.extract_strided_slice %375 {offsets = [3, 0], sizes = [1, 256], strides = [1, 1]} : vector<4x256xf32> to vector<1x256xf32>
    %434 = vector.extract_strided_slice %376 {offsets = [3, 0], sizes = [1, 256], strides = [1, 1]} : vector<4x256xf32> to vector<1x256xf32>
    %c3_143 = arith.constant 3 : index
    %c0_144 = arith.constant 0 : index
    %c0_145 = arith.constant 0 : index
    %435 = vector.load %arg4[%c3_143, %c0_144, %c0_145] : memref<4x8x256xf32, #tpu.memory_space<vmem>>, vector<1x8x256xf32>
    %436 = vector.shape_cast %435 : vector<1x8x256xf32> to vector<8x256xf32>
    %c3_146 = arith.constant 3 : index
    %c0_147 = arith.constant 0 : index
    %c0_148 = arith.constant 0 : index
    %437 = vector.load %arg5[%c3_146, %c0_147, %c0_148] : memref<4x8x256xf32, #tpu.memory_space<vmem>>, vector<1x8x256xf32>
    %438 = vector.shape_cast %437 : vector<1x8x256xf32> to vector<8x256xf32>
    %439 = vector.broadcast %433 : vector<1x256xf32> to vector<8x256xf32>
    %440 = arith.mulf %439, %436 : vector<8x256xf32>
    %441 = vector.broadcast %434 : vector<1x256xf32> to vector<8x256xf32>
    %442 = arith.mulf %441, %438 : vector<8x256xf32>
    %443 = arith.subf %440, %442 : vector<8x256xf32>
    %444 = arith.addf %426, %443 : vector<8x256xf32>
    %445 = vector.broadcast %433 : vector<1x256xf32> to vector<8x256xf32>
    %446 = arith.mulf %445, %438 : vector<8x256xf32>
    %447 = vector.broadcast %434 : vector<1x256xf32> to vector<8x256xf32>
    %448 = arith.mulf %447, %436 : vector<8x256xf32>
    %449 = arith.addf %446, %448 : vector<8x256xf32>
    %450 = arith.addf %432, %449 : vector<8x256xf32>
    %cst_149 = arith.constant 0.000000e+00 : f32
    %451 = vector.broadcast %cst_149 : f32 to vector<8x256xf32>
    %cst_150 = arith.constant 0.000000e+00 : f32
    %452 = vector.broadcast %cst_150 : f32 to vector<8x256xf32>
    %453 = vector.extract_strided_slice %444 {offsets = [0, 0], sizes = [1, 256], strides = [1, 1]} : vector<8x256xf32> to vector<1x256xf32>
    %454 = vector.extract_strided_slice %450 {offsets = [0, 0], sizes = [1, 256], strides = [1, 1]} : vector<8x256xf32> to vector<1x256xf32>
    %c0_151 = arith.constant 0 : index
    %c0_152 = arith.constant 0 : index
    %c0_153 = arith.constant 0 : index
    %455 = vector.load %arg6[%c0_151, %c0_152, %c0_153] : memref<8x8x256xf32, #tpu.memory_space<vmem>>, vector<1x8x256xf32>
    %456 = vector.shape_cast %455 : vector<1x8x256xf32> to vector<8x256xf32>
    %c0_154 = arith.constant 0 : index
    %c0_155 = arith.constant 0 : index
    %c0_156 = arith.constant 0 : index
    %457 = vector.load %arg7[%c0_154, %c0_155, %c0_156] : memref<8x8x256xf32, #tpu.memory_space<vmem>>, vector<1x8x256xf32>
    %458 = vector.shape_cast %457 : vector<1x8x256xf32> to vector<8x256xf32>
    %459 = vector.broadcast %453 : vector<1x256xf32> to vector<8x256xf32>
    %460 = arith.mulf %459, %456 : vector<8x256xf32>
    %461 = vector.broadcast %454 : vector<1x256xf32> to vector<8x256xf32>
    %462 = arith.mulf %461, %458 : vector<8x256xf32>
    %463 = arith.subf %460, %462 : vector<8x256xf32>
    %464 = arith.addf %451, %463 : vector<8x256xf32>
    %465 = vector.broadcast %453 : vector<1x256xf32> to vector<8x256xf32>
    %466 = arith.mulf %465, %458 : vector<8x256xf32>
    %467 = vector.broadcast %454 : vector<1x256xf32> to vector<8x256xf32>
    %468 = arith.mulf %467, %456 : vector<8x256xf32>
    %469 = arith.addf %466, %468 : vector<8x256xf32>
    %470 = arith.addf %452, %469 : vector<8x256xf32>
    %471 = vector.extract_strided_slice %444 {offsets = [1, 0], sizes = [1, 256], strides = [1, 1]} : vector<8x256xf32> to vector<1x256xf32>
    %472 = vector.extract_strided_slice %450 {offsets = [1, 0], sizes = [1, 256], strides = [1, 1]} : vector<8x256xf32> to vector<1x256xf32>
    %c1_157 = arith.constant 1 : index
    %c0_158 = arith.constant 0 : index
    %c0_159 = arith.constant 0 : index
    %473 = vector.load %arg6[%c1_157, %c0_158, %c0_159] : memref<8x8x256xf32, #tpu.memory_space<vmem>>, vector<1x8x256xf32>
    %474 = vector.shape_cast %473 : vector<1x8x256xf32> to vector<8x256xf32>
    %c1_160 = arith.constant 1 : index
    %c0_161 = arith.constant 0 : index
    %c0_162 = arith.constant 0 : index
    %475 = vector.load %arg7[%c1_160, %c0_161, %c0_162] : memref<8x8x256xf32, #tpu.memory_space<vmem>>, vector<1x8x256xf32>
    %476 = vector.shape_cast %475 : vector<1x8x256xf32> to vector<8x256xf32>
    %477 = vector.broadcast %471 : vector<1x256xf32> to vector<8x256xf32>
    %478 = arith.mulf %477, %474 : vector<8x256xf32>
    %479 = vector.broadcast %472 : vector<1x256xf32> to vector<8x256xf32>
    %480 = arith.mulf %479, %476 : vector<8x256xf32>
    %481 = arith.subf %478, %480 : vector<8x256xf32>
    %482 = arith.addf %464, %481 : vector<8x256xf32>
    %483 = vector.broadcast %471 : vector<1x256xf32> to vector<8x256xf32>
    %484 = arith.mulf %483, %476 : vector<8x256xf32>
    %485 = vector.broadcast %472 : vector<1x256xf32> to vector<8x256xf32>
    %486 = arith.mulf %485, %474 : vector<8x256xf32>
    %487 = arith.addf %484, %486 : vector<8x256xf32>
    %488 = arith.addf %470, %487 : vector<8x256xf32>
    %489 = vector.extract_strided_slice %444 {offsets = [2, 0], sizes = [1, 256], strides = [1, 1]} : vector<8x256xf32> to vector<1x256xf32>
    %490 = vector.extract_strided_slice %450 {offsets = [2, 0], sizes = [1, 256], strides = [1, 1]} : vector<8x256xf32> to vector<1x256xf32>
    %c2_163 = arith.constant 2 : index
    %c0_164 = arith.constant 0 : index
    %c0_165 = arith.constant 0 : index
    %491 = vector.load %arg6[%c2_163, %c0_164, %c0_165] : memref<8x8x256xf32, #tpu.memory_space<vmem>>, vector<1x8x256xf32>
    %492 = vector.shape_cast %491 : vector<1x8x256xf32> to vector<8x256xf32>
    %c2_166 = arith.constant 2 : index
    %c0_167 = arith.constant 0 : index
    %c0_168 = arith.constant 0 : index
    %493 = vector.load %arg7[%c2_166, %c0_167, %c0_168] : memref<8x8x256xf32, #tpu.memory_space<vmem>>, vector<1x8x256xf32>
    %494 = vector.shape_cast %493 : vector<1x8x256xf32> to vector<8x256xf32>
    %495 = vector.broadcast %489 : vector<1x256xf32> to vector<8x256xf32>
    %496 = arith.mulf %495, %492 : vector<8x256xf32>
    %497 = vector.broadcast %490 : vector<1x256xf32> to vector<8x256xf32>
    %498 = arith.mulf %497, %494 : vector<8x256xf32>
    %499 = arith.subf %496, %498 : vector<8x256xf32>
    %500 = arith.addf %482, %499 : vector<8x256xf32>
    %501 = vector.broadcast %489 : vector<1x256xf32> to vector<8x256xf32>
    %502 = arith.mulf %501, %494 : vector<8x256xf32>
    %503 = vector.broadcast %490 : vector<1x256xf32> to vector<8x256xf32>
    %504 = arith.mulf %503, %492 : vector<8x256xf32>
    %505 = arith.addf %502, %504 : vector<8x256xf32>
    %506 = arith.addf %488, %505 : vector<8x256xf32>
    %507 = vector.extract_strided_slice %444 {offsets = [3, 0], sizes = [1, 256], strides = [1, 1]} : vector<8x256xf32> to vector<1x256xf32>
    %508 = vector.extract_strided_slice %450 {offsets = [3, 0], sizes = [1, 256], strides = [1, 1]} : vector<8x256xf32> to vector<1x256xf32>
    %c3_169 = arith.constant 3 : index
    %c0_170 = arith.constant 0 : index
    %c0_171 = arith.constant 0 : index
    %509 = vector.load %arg6[%c3_169, %c0_170, %c0_171] : memref<8x8x256xf32, #tpu.memory_space<vmem>>, vector<1x8x256xf32>
    %510 = vector.shape_cast %509 : vector<1x8x256xf32> to vector<8x256xf32>
    %c3_172 = arith.constant 3 : index
    %c0_173 = arith.constant 0 : index
    %c0_174 = arith.constant 0 : index
    %511 = vector.load %arg7[%c3_172, %c0_173, %c0_174] : memref<8x8x256xf32, #tpu.memory_space<vmem>>, vector<1x8x256xf32>
    %512 = vector.shape_cast %511 : vector<1x8x256xf32> to vector<8x256xf32>
    %513 = vector.broadcast %507 : vector<1x256xf32> to vector<8x256xf32>
    %514 = arith.mulf %513, %510 : vector<8x256xf32>
    %515 = vector.broadcast %508 : vector<1x256xf32> to vector<8x256xf32>
    %516 = arith.mulf %515, %512 : vector<8x256xf32>
    %517 = arith.subf %514, %516 : vector<8x256xf32>
    %518 = arith.addf %500, %517 : vector<8x256xf32>
    %519 = vector.broadcast %507 : vector<1x256xf32> to vector<8x256xf32>
    %520 = arith.mulf %519, %512 : vector<8x256xf32>
    %521 = vector.broadcast %508 : vector<1x256xf32> to vector<8x256xf32>
    %522 = arith.mulf %521, %510 : vector<8x256xf32>
    %523 = arith.addf %520, %522 : vector<8x256xf32>
    %524 = arith.addf %506, %523 : vector<8x256xf32>
    %525 = vector.extract_strided_slice %444 {offsets = [4, 0], sizes = [1, 256], strides = [1, 1]} : vector<8x256xf32> to vector<1x256xf32>
    %526 = vector.extract_strided_slice %450 {offsets = [4, 0], sizes = [1, 256], strides = [1, 1]} : vector<8x256xf32> to vector<1x256xf32>
    %c4_175 = arith.constant 4 : index
    %c0_176 = arith.constant 0 : index
    %c0_177 = arith.constant 0 : index
    %527 = vector.load %arg6[%c4_175, %c0_176, %c0_177] : memref<8x8x256xf32, #tpu.memory_space<vmem>>, vector<1x8x256xf32>
    %528 = vector.shape_cast %527 : vector<1x8x256xf32> to vector<8x256xf32>
    %c4_178 = arith.constant 4 : index
    %c0_179 = arith.constant 0 : index
    %c0_180 = arith.constant 0 : index
    %529 = vector.load %arg7[%c4_178, %c0_179, %c0_180] : memref<8x8x256xf32, #tpu.memory_space<vmem>>, vector<1x8x256xf32>
    %530 = vector.shape_cast %529 : vector<1x8x256xf32> to vector<8x256xf32>
    %531 = vector.broadcast %525 : vector<1x256xf32> to vector<8x256xf32>
    %532 = arith.mulf %531, %528 : vector<8x256xf32>
    %533 = vector.broadcast %526 : vector<1x256xf32> to vector<8x256xf32>
    %534 = arith.mulf %533, %530 : vector<8x256xf32>
    %535 = arith.subf %532, %534 : vector<8x256xf32>
    %536 = arith.addf %518, %535 : vector<8x256xf32>
    %537 = vector.broadcast %525 : vector<1x256xf32> to vector<8x256xf32>
    %538 = arith.mulf %537, %530 : vector<8x256xf32>
    %539 = vector.broadcast %526 : vector<1x256xf32> to vector<8x256xf32>
    %540 = arith.mulf %539, %528 : vector<8x256xf32>
    %541 = arith.addf %538, %540 : vector<8x256xf32>
    %542 = arith.addf %524, %541 : vector<8x256xf32>
    %543 = vector.extract_strided_slice %444 {offsets = [5, 0], sizes = [1, 256], strides = [1, 1]} : vector<8x256xf32> to vector<1x256xf32>
    %544 = vector.extract_strided_slice %450 {offsets = [5, 0], sizes = [1, 256], strides = [1, 1]} : vector<8x256xf32> to vector<1x256xf32>
    %c5_181 = arith.constant 5 : index
    %c0_182 = arith.constant 0 : index
    %c0_183 = arith.constant 0 : index
    %545 = vector.load %arg6[%c5_181, %c0_182, %c0_183] : memref<8x8x256xf32, #tpu.memory_space<vmem>>, vector<1x8x256xf32>
    %546 = vector.shape_cast %545 : vector<1x8x256xf32> to vector<8x256xf32>
    %c5_184 = arith.constant 5 : index
    %c0_185 = arith.constant 0 : index
    %c0_186 = arith.constant 0 : index
    %547 = vector.load %arg7[%c5_184, %c0_185, %c0_186] : memref<8x8x256xf32, #tpu.memory_space<vmem>>, vector<1x8x256xf32>
    %548 = vector.shape_cast %547 : vector<1x8x256xf32> to vector<8x256xf32>
    %549 = vector.broadcast %543 : vector<1x256xf32> to vector<8x256xf32>
    %550 = arith.mulf %549, %546 : vector<8x256xf32>
    %551 = vector.broadcast %544 : vector<1x256xf32> to vector<8x256xf32>
    %552 = arith.mulf %551, %548 : vector<8x256xf32>
    %553 = arith.subf %550, %552 : vector<8x256xf32>
    %554 = arith.addf %536, %553 : vector<8x256xf32>
    %555 = vector.broadcast %543 : vector<1x256xf32> to vector<8x256xf32>
    %556 = arith.mulf %555, %548 : vector<8x256xf32>
    %557 = vector.broadcast %544 : vector<1x256xf32> to vector<8x256xf32>
    %558 = arith.mulf %557, %546 : vector<8x256xf32>
    %559 = arith.addf %556, %558 : vector<8x256xf32>
    %560 = arith.addf %542, %559 : vector<8x256xf32>
    %561 = vector.extract_strided_slice %444 {offsets = [6, 0], sizes = [1, 256], strides = [1, 1]} : vector<8x256xf32> to vector<1x256xf32>
    %562 = vector.extract_strided_slice %450 {offsets = [6, 0], sizes = [1, 256], strides = [1, 1]} : vector<8x256xf32> to vector<1x256xf32>
    %c6_187 = arith.constant 6 : index
    %c0_188 = arith.constant 0 : index
    %c0_189 = arith.constant 0 : index
    %563 = vector.load %arg6[%c6_187, %c0_188, %c0_189] : memref<8x8x256xf32, #tpu.memory_space<vmem>>, vector<1x8x256xf32>
    %564 = vector.shape_cast %563 : vector<1x8x256xf32> to vector<8x256xf32>
    %c6_190 = arith.constant 6 : index
    %c0_191 = arith.constant 0 : index
    %c0_192 = arith.constant 0 : index
    %565 = vector.load %arg7[%c6_190, %c0_191, %c0_192] : memref<8x8x256xf32, #tpu.memory_space<vmem>>, vector<1x8x256xf32>
    %566 = vector.shape_cast %565 : vector<1x8x256xf32> to vector<8x256xf32>
    %567 = vector.broadcast %561 : vector<1x256xf32> to vector<8x256xf32>
    %568 = arith.mulf %567, %564 : vector<8x256xf32>
    %569 = vector.broadcast %562 : vector<1x256xf32> to vector<8x256xf32>
    %570 = arith.mulf %569, %566 : vector<8x256xf32>
    %571 = arith.subf %568, %570 : vector<8x256xf32>
    %572 = arith.addf %554, %571 : vector<8x256xf32>
    %573 = vector.broadcast %561 : vector<1x256xf32> to vector<8x256xf32>
    %574 = arith.mulf %573, %566 : vector<8x256xf32>
    %575 = vector.broadcast %562 : vector<1x256xf32> to vector<8x256xf32>
    %576 = arith.mulf %575, %564 : vector<8x256xf32>
    %577 = arith.addf %574, %576 : vector<8x256xf32>
    %578 = arith.addf %560, %577 : vector<8x256xf32>
    %579 = vector.extract_strided_slice %444 {offsets = [7, 0], sizes = [1, 256], strides = [1, 1]} : vector<8x256xf32> to vector<1x256xf32>
    %580 = vector.extract_strided_slice %450 {offsets = [7, 0], sizes = [1, 256], strides = [1, 1]} : vector<8x256xf32> to vector<1x256xf32>
    %c7_193 = arith.constant 7 : index
    %c0_194 = arith.constant 0 : index
    %c0_195 = arith.constant 0 : index
    %581 = vector.load %arg6[%c7_193, %c0_194, %c0_195] : memref<8x8x256xf32, #tpu.memory_space<vmem>>, vector<1x8x256xf32>
    %582 = vector.shape_cast %581 : vector<1x8x256xf32> to vector<8x256xf32>
    %c7_196 = arith.constant 7 : index
    %c0_197 = arith.constant 0 : index
    %c0_198 = arith.constant 0 : index
    %583 = vector.load %arg7[%c7_196, %c0_197, %c0_198] : memref<8x8x256xf32, #tpu.memory_space<vmem>>, vector<1x8x256xf32>
    %584 = vector.shape_cast %583 : vector<1x8x256xf32> to vector<8x256xf32>
    %585 = vector.broadcast %579 : vector<1x256xf32> to vector<8x256xf32>
    %586 = arith.mulf %585, %582 : vector<8x256xf32>
    %587 = vector.broadcast %580 : vector<1x256xf32> to vector<8x256xf32>
    %588 = arith.mulf %587, %584 : vector<8x256xf32>
    %589 = arith.subf %586, %588 : vector<8x256xf32>
    %590 = arith.addf %572, %589 : vector<8x256xf32>
    %591 = vector.broadcast %579 : vector<1x256xf32> to vector<8x256xf32>
    %592 = arith.mulf %591, %584 : vector<8x256xf32>
    %593 = vector.broadcast %580 : vector<1x256xf32> to vector<8x256xf32>
    %594 = arith.mulf %593, %582 : vector<8x256xf32>
    %595 = arith.addf %592, %594 : vector<8x256xf32>
    %596 = arith.addf %578, %595 : vector<8x256xf32>
    %cst_199 = arith.constant 0.000000e+00 : f32
    %597 = vector.broadcast %cst_199 : f32 to vector<8x256xf32>
    %cst_200 = arith.constant 0.000000e+00 : f32
    %598 = vector.broadcast %cst_200 : f32 to vector<8x256xf32>
    %599 = vector.extract_strided_slice %590 {offsets = [0, 0], sizes = [1, 256], strides = [1, 1]} : vector<8x256xf32> to vector<1x256xf32>
    %600 = vector.extract_strided_slice %596 {offsets = [0, 0], sizes = [1, 256], strides = [1, 1]} : vector<8x256xf32> to vector<1x256xf32>
    %c0_201 = arith.constant 0 : index
    %c0_202 = arith.constant 0 : index
    %c0_203 = arith.constant 0 : index
    %601 = vector.load %arg8[%c0_201, %c0_202, %c0_203] : memref<8x8x256xf32, #tpu.memory_space<vmem>>, vector<1x8x256xf32>
    %602 = vector.shape_cast %601 : vector<1x8x256xf32> to vector<8x256xf32>
    %c0_204 = arith.constant 0 : index
    %c0_205 = arith.constant 0 : index
    %c0_206 = arith.constant 0 : index
    %603 = vector.load %arg9[%c0_204, %c0_205, %c0_206] : memref<8x8x256xf32, #tpu.memory_space<vmem>>, vector<1x8x256xf32>
    %604 = vector.shape_cast %603 : vector<1x8x256xf32> to vector<8x256xf32>
    %605 = vector.broadcast %599 : vector<1x256xf32> to vector<8x256xf32>
    %606 = arith.mulf %605, %602 : vector<8x256xf32>
    %607 = vector.broadcast %600 : vector<1x256xf32> to vector<8x256xf32>
    %608 = arith.mulf %607, %604 : vector<8x256xf32>
    %609 = arith.subf %606, %608 : vector<8x256xf32>
    %610 = arith.addf %597, %609 : vector<8x256xf32>
    %611 = vector.broadcast %599 : vector<1x256xf32> to vector<8x256xf32>
    %612 = arith.mulf %611, %604 : vector<8x256xf32>
    %613 = vector.broadcast %600 : vector<1x256xf32> to vector<8x256xf32>
    %614 = arith.mulf %613, %602 : vector<8x256xf32>
    %615 = arith.addf %612, %614 : vector<8x256xf32>
    %616 = arith.addf %598, %615 : vector<8x256xf32>
    %617 = vector.extract_strided_slice %590 {offsets = [1, 0], sizes = [1, 256], strides = [1, 1]} : vector<8x256xf32> to vector<1x256xf32>
    %618 = vector.extract_strided_slice %596 {offsets = [1, 0], sizes = [1, 256], strides = [1, 1]} : vector<8x256xf32> to vector<1x256xf32>
    %c1_207 = arith.constant 1 : index
    %c0_208 = arith.constant 0 : index
    %c0_209 = arith.constant 0 : index
    %619 = vector.load %arg8[%c1_207, %c0_208, %c0_209] : memref<8x8x256xf32, #tpu.memory_space<vmem>>, vector<1x8x256xf32>
    %620 = vector.shape_cast %619 : vector<1x8x256xf32> to vector<8x256xf32>
    %c1_210 = arith.constant 1 : index
    %c0_211 = arith.constant 0 : index
    %c0_212 = arith.constant 0 : index
    %621 = vector.load %arg9[%c1_210, %c0_211, %c0_212] : memref<8x8x256xf32, #tpu.memory_space<vmem>>, vector<1x8x256xf32>
    %622 = vector.shape_cast %621 : vector<1x8x256xf32> to vector<8x256xf32>
    %623 = vector.broadcast %617 : vector<1x256xf32> to vector<8x256xf32>
    %624 = arith.mulf %623, %620 : vector<8x256xf32>
    %625 = vector.broadcast %618 : vector<1x256xf32> to vector<8x256xf32>
    %626 = arith.mulf %625, %622 : vector<8x256xf32>
    %627 = arith.subf %624, %626 : vector<8x256xf32>
    %628 = arith.addf %610, %627 : vector<8x256xf32>
    %629 = vector.broadcast %617 : vector<1x256xf32> to vector<8x256xf32>
    %630 = arith.mulf %629, %622 : vector<8x256xf32>
    %631 = vector.broadcast %618 : vector<1x256xf32> to vector<8x256xf32>
    %632 = arith.mulf %631, %620 : vector<8x256xf32>
    %633 = arith.addf %630, %632 : vector<8x256xf32>
    %634 = arith.addf %616, %633 : vector<8x256xf32>
    %635 = vector.extract_strided_slice %590 {offsets = [2, 0], sizes = [1, 256], strides = [1, 1]} : vector<8x256xf32> to vector<1x256xf32>
    %636 = vector.extract_strided_slice %596 {offsets = [2, 0], sizes = [1, 256], strides = [1, 1]} : vector<8x256xf32> to vector<1x256xf32>
    %c2_213 = arith.constant 2 : index
    %c0_214 = arith.constant 0 : index
    %c0_215 = arith.constant 0 : index
    %637 = vector.load %arg8[%c2_213, %c0_214, %c0_215] : memref<8x8x256xf32, #tpu.memory_space<vmem>>, vector<1x8x256xf32>
    %638 = vector.shape_cast %637 : vector<1x8x256xf32> to vector<8x256xf32>
    %c2_216 = arith.constant 2 : index
    %c0_217 = arith.constant 0 : index
    %c0_218 = arith.constant 0 : index
    %639 = vector.load %arg9[%c2_216, %c0_217, %c0_218] : memref<8x8x256xf32, #tpu.memory_space<vmem>>, vector<1x8x256xf32>
    %640 = vector.shape_cast %639 : vector<1x8x256xf32> to vector<8x256xf32>
    %641 = vector.broadcast %635 : vector<1x256xf32> to vector<8x256xf32>
    %642 = arith.mulf %641, %638 : vector<8x256xf32>
    %643 = vector.broadcast %636 : vector<1x256xf32> to vector<8x256xf32>
    %644 = arith.mulf %643, %640 : vector<8x256xf32>
    %645 = arith.subf %642, %644 : vector<8x256xf32>
    %646 = arith.addf %628, %645 : vector<8x256xf32>
    %647 = vector.broadcast %635 : vector<1x256xf32> to vector<8x256xf32>
    %648 = arith.mulf %647, %640 : vector<8x256xf32>
    %649 = vector.broadcast %636 : vector<1x256xf32> to vector<8x256xf32>
    %650 = arith.mulf %649, %638 : vector<8x256xf32>
    %651 = arith.addf %648, %650 : vector<8x256xf32>
    %652 = arith.addf %634, %651 : vector<8x256xf32>
    %653 = vector.extract_strided_slice %590 {offsets = [3, 0], sizes = [1, 256], strides = [1, 1]} : vector<8x256xf32> to vector<1x256xf32>
    %654 = vector.extract_strided_slice %596 {offsets = [3, 0], sizes = [1, 256], strides = [1, 1]} : vector<8x256xf32> to vector<1x256xf32>
    %c3_219 = arith.constant 3 : index
    %c0_220 = arith.constant 0 : index
    %c0_221 = arith.constant 0 : index
    %655 = vector.load %arg8[%c3_219, %c0_220, %c0_221] : memref<8x8x256xf32, #tpu.memory_space<vmem>>, vector<1x8x256xf32>
    %656 = vector.shape_cast %655 : vector<1x8x256xf32> to vector<8x256xf32>
    %c3_222 = arith.constant 3 : index
    %c0_223 = arith.constant 0 : index
    %c0_224 = arith.constant 0 : index
    %657 = vector.load %arg9[%c3_222, %c0_223, %c0_224] : memref<8x8x256xf32, #tpu.memory_space<vmem>>, vector<1x8x256xf32>
    %658 = vector.shape_cast %657 : vector<1x8x256xf32> to vector<8x256xf32>
    %659 = vector.broadcast %653 : vector<1x256xf32> to vector<8x256xf32>
    %660 = arith.mulf %659, %656 : vector<8x256xf32>
    %661 = vector.broadcast %654 : vector<1x256xf32> to vector<8x256xf32>
    %662 = arith.mulf %661, %658 : vector<8x256xf32>
    %663 = arith.subf %660, %662 : vector<8x256xf32>
    %664 = arith.addf %646, %663 : vector<8x256xf32>
    %665 = vector.broadcast %653 : vector<1x256xf32> to vector<8x256xf32>
    %666 = arith.mulf %665, %658 : vector<8x256xf32>
    %667 = vector.broadcast %654 : vector<1x256xf32> to vector<8x256xf32>
    %668 = arith.mulf %667, %656 : vector<8x256xf32>
    %669 = arith.addf %666, %668 : vector<8x256xf32>
    %670 = arith.addf %652, %669 : vector<8x256xf32>
    %671 = vector.extract_strided_slice %590 {offsets = [4, 0], sizes = [1, 256], strides = [1, 1]} : vector<8x256xf32> to vector<1x256xf32>
    %672 = vector.extract_strided_slice %596 {offsets = [4, 0], sizes = [1, 256], strides = [1, 1]} : vector<8x256xf32> to vector<1x256xf32>
    %c4_225 = arith.constant 4 : index
    %c0_226 = arith.constant 0 : index
    %c0_227 = arith.constant 0 : index
    %673 = vector.load %arg8[%c4_225, %c0_226, %c0_227] : memref<8x8x256xf32, #tpu.memory_space<vmem>>, vector<1x8x256xf32>
    %674 = vector.shape_cast %673 : vector<1x8x256xf32> to vector<8x256xf32>
    %c4_228 = arith.constant 4 : index
    %c0_229 = arith.constant 0 : index
    %c0_230 = arith.constant 0 : index
    %675 = vector.load %arg9[%c4_228, %c0_229, %c0_230] : memref<8x8x256xf32, #tpu.memory_space<vmem>>, vector<1x8x256xf32>
    %676 = vector.shape_cast %675 : vector<1x8x256xf32> to vector<8x256xf32>
    %677 = vector.broadcast %671 : vector<1x256xf32> to vector<8x256xf32>
    %678 = arith.mulf %677, %674 : vector<8x256xf32>
    %679 = vector.broadcast %672 : vector<1x256xf32> to vector<8x256xf32>
    %680 = arith.mulf %679, %676 : vector<8x256xf32>
    %681 = arith.subf %678, %680 : vector<8x256xf32>
    %682 = arith.addf %664, %681 : vector<8x256xf32>
    %683 = vector.broadcast %671 : vector<1x256xf32> to vector<8x256xf32>
    %684 = arith.mulf %683, %676 : vector<8x256xf32>
    %685 = vector.broadcast %672 : vector<1x256xf32> to vector<8x256xf32>
    %686 = arith.mulf %685, %674 : vector<8x256xf32>
    %687 = arith.addf %684, %686 : vector<8x256xf32>
    %688 = arith.addf %670, %687 : vector<8x256xf32>
    %689 = vector.extract_strided_slice %590 {offsets = [5, 0], sizes = [1, 256], strides = [1, 1]} : vector<8x256xf32> to vector<1x256xf32>
    %690 = vector.extract_strided_slice %596 {offsets = [5, 0], sizes = [1, 256], strides = [1, 1]} : vector<8x256xf32> to vector<1x256xf32>
    %c5_231 = arith.constant 5 : index
    %c0_232 = arith.constant 0 : index
    %c0_233 = arith.constant 0 : index
    %691 = vector.load %arg8[%c5_231, %c0_232, %c0_233] : memref<8x8x256xf32, #tpu.memory_space<vmem>>, vector<1x8x256xf32>
    %692 = vector.shape_cast %691 : vector<1x8x256xf32> to vector<8x256xf32>
    %c5_234 = arith.constant 5 : index
    %c0_235 = arith.constant 0 : index
    %c0_236 = arith.constant 0 : index
    %693 = vector.load %arg9[%c5_234, %c0_235, %c0_236] : memref<8x8x256xf32, #tpu.memory_space<vmem>>, vector<1x8x256xf32>
    %694 = vector.shape_cast %693 : vector<1x8x256xf32> to vector<8x256xf32>
    %695 = vector.broadcast %689 : vector<1x256xf32> to vector<8x256xf32>
    %696 = arith.mulf %695, %692 : vector<8x256xf32>
    %697 = vector.broadcast %690 : vector<1x256xf32> to vector<8x256xf32>
    %698 = arith.mulf %697, %694 : vector<8x256xf32>
    %699 = arith.subf %696, %698 : vector<8x256xf32>
    %700 = arith.addf %682, %699 : vector<8x256xf32>
    %701 = vector.broadcast %689 : vector<1x256xf32> to vector<8x256xf32>
    %702 = arith.mulf %701, %694 : vector<8x256xf32>
    %703 = vector.broadcast %690 : vector<1x256xf32> to vector<8x256xf32>
    %704 = arith.mulf %703, %692 : vector<8x256xf32>
    %705 = arith.addf %702, %704 : vector<8x256xf32>
    %706 = arith.addf %688, %705 : vector<8x256xf32>
    %707 = vector.extract_strided_slice %590 {offsets = [6, 0], sizes = [1, 256], strides = [1, 1]} : vector<8x256xf32> to vector<1x256xf32>
    %708 = vector.extract_strided_slice %596 {offsets = [6, 0], sizes = [1, 256], strides = [1, 1]} : vector<8x256xf32> to vector<1x256xf32>
    %c6_237 = arith.constant 6 : index
    %c0_238 = arith.constant 0 : index
    %c0_239 = arith.constant 0 : index
    %709 = vector.load %arg8[%c6_237, %c0_238, %c0_239] : memref<8x8x256xf32, #tpu.memory_space<vmem>>, vector<1x8x256xf32>
    %710 = vector.shape_cast %709 : vector<1x8x256xf32> to vector<8x256xf32>
    %c6_240 = arith.constant 6 : index
    %c0_241 = arith.constant 0 : index
    %c0_242 = arith.constant 0 : index
    %711 = vector.load %arg9[%c6_240, %c0_241, %c0_242] : memref<8x8x256xf32, #tpu.memory_space<vmem>>, vector<1x8x256xf32>
    %712 = vector.shape_cast %711 : vector<1x8x256xf32> to vector<8x256xf32>
    %713 = vector.broadcast %707 : vector<1x256xf32> to vector<8x256xf32>
    %714 = arith.mulf %713, %710 : vector<8x256xf32>
    %715 = vector.broadcast %708 : vector<1x256xf32> to vector<8x256xf32>
    %716 = arith.mulf %715, %712 : vector<8x256xf32>
    %717 = arith.subf %714, %716 : vector<8x256xf32>
    %718 = arith.addf %700, %717 : vector<8x256xf32>
    %719 = vector.broadcast %707 : vector<1x256xf32> to vector<8x256xf32>
    %720 = arith.mulf %719, %712 : vector<8x256xf32>
    %721 = vector.broadcast %708 : vector<1x256xf32> to vector<8x256xf32>
    %722 = arith.mulf %721, %710 : vector<8x256xf32>
    %723 = arith.addf %720, %722 : vector<8x256xf32>
    %724 = arith.addf %706, %723 : vector<8x256xf32>
    %725 = vector.extract_strided_slice %590 {offsets = [7, 0], sizes = [1, 256], strides = [1, 1]} : vector<8x256xf32> to vector<1x256xf32>
    %726 = vector.extract_strided_slice %596 {offsets = [7, 0], sizes = [1, 256], strides = [1, 1]} : vector<8x256xf32> to vector<1x256xf32>
    %c7_243 = arith.constant 7 : index
    %c0_244 = arith.constant 0 : index
    %c0_245 = arith.constant 0 : index
    %727 = vector.load %arg8[%c7_243, %c0_244, %c0_245] : memref<8x8x256xf32, #tpu.memory_space<vmem>>, vector<1x8x256xf32>
    %728 = vector.shape_cast %727 : vector<1x8x256xf32> to vector<8x256xf32>
    %c7_246 = arith.constant 7 : index
    %c0_247 = arith.constant 0 : index
    %c0_248 = arith.constant 0 : index
    %729 = vector.load %arg9[%c7_246, %c0_247, %c0_248] : memref<8x8x256xf32, #tpu.memory_space<vmem>>, vector<1x8x256xf32>
    %730 = vector.shape_cast %729 : vector<1x8x256xf32> to vector<8x256xf32>
    %731 = vector.broadcast %725 : vector<1x256xf32> to vector<8x256xf32>
    %732 = arith.mulf %731, %728 : vector<8x256xf32>
    %733 = vector.broadcast %726 : vector<1x256xf32> to vector<8x256xf32>
    %734 = arith.mulf %733, %730 : vector<8x256xf32>
    %735 = arith.subf %732, %734 : vector<8x256xf32>
    %736 = arith.addf %718, %735 : vector<8x256xf32>
    %737 = vector.broadcast %725 : vector<1x256xf32> to vector<8x256xf32>
    %738 = arith.mulf %737, %730 : vector<8x256xf32>
    %739 = vector.broadcast %726 : vector<1x256xf32> to vector<8x256xf32>
    %740 = arith.mulf %739, %728 : vector<8x256xf32>
    %741 = arith.addf %738, %740 : vector<8x256xf32>
    %742 = arith.addf %724, %741 : vector<8x256xf32>
    %743 = tpu.concatenate %736, %742 in 1 : vector<8x256xf32>, vector<8x256xf32> -> vector<8x512xf32>
    %744 = tpu.concatenate %374, %743 in 0 : vector<8x512xf32>, vector<8x512xf32> -> vector<16x512xf32>
    %745 = arith.truncf %744 : vector<16x512xf32> to vector<16x512xbf16>
    %c0_249 = arith.constant 0 : index
    %c0_250 = arith.constant 0 : index
    %746 = vector.load %arg3[%c0_249, %c0_250] : memref<512x256xbf16, #tpu.memory_space<vmem>>, vector<512x256xbf16>
    %cst_251 = arith.constant dense<0.000000e+00> : vector<16x256xf32>
    %747 = tpu.matmul %745, %746, %cst_251 {dimension_numbers = #tpu.dot_dimension_numbers<[1], [0], [0], [1], [0, 0, 1, 1], [], []>} : vector<16x512xbf16>, vector<512x256xbf16>, vector<16x256xf32> -> vector<16x256xf32>
    %c0_252 = arith.constant 0 : index
    %c0_253 = arith.constant 0 : index
    %c0_254 = arith.constant 0 : index
    %748 = vector.load %arg10[%c0_252, %c0_253, %c0_254] : memref<1x16x256xf32, #tpu.memory_space<vmem>>, vector<1x16x256xf32>
    %749 = vector.shape_cast %748 : vector<1x16x256xf32> to vector<16x256xf32>
    %750 = vector.shape_cast %747 : vector<16x256xf32> to vector<1x16x256xf32>
    tpu.vector_store %arg10[%c0_252, %c0_253, %c0_254], %750 {strides = array<i32>} : memref<1x16x256xf32, #tpu.memory_space<vmem>>, vector<1x16x256xf32>,
    return
  }
  func.func @transform_0(%arg0: i32) -> (i32, i32, i32) {
    %c0_i32 = arith.constant 0 : i32
    %c0_i32_0 = arith.constant 0 : i32
    %c0_i32_1 = arith.constant 0 : i32
    return %arg0, %c0_i32, %c0_i32_0 : i32, i32, i32
  }
  func.func @transform_1(%arg0: i32) -> (i32, i32) {
    %c0_i32 = arith.constant 0 : i32
    %c0_i32_0 = arith.constant 0 : i32
    %c0_i32_1 = arith.constant 0 : i32
    return %c0_i32, %c0_i32_0 : i32, i32
  }
  func.func @transform_2(%arg0: i32) -> (i32, i32) {
    %c0_i32 = arith.constant 0 : i32
    %c0_i32_0 = arith.constant 0 : i32
    %c0_i32_1 = arith.constant 0 : i32
    return %c0_i32, %c0_i32_0 : i32, i32
  }
  func.func @transform_3(%arg0: i32) -> (i32, i32, i32) {
    %c0_i32 = arith.constant 0 : i32
    %c0_i32_0 = arith.constant 0 : i32
    %c0_i32_1 = arith.constant 0 : i32
    %c0_i32_2 = arith.constant 0 : i32
    return %c0_i32, %c0_i32_0, %c0_i32_1 : i32, i32, i32
  }
  func.func @transform_4(%arg0: i32) -> (i32, i32, i32) {
    %c0_i32 = arith.constant 0 : i32
    %c0_i32_0 = arith.constant 0 : i32
    %c0_i32_1 = arith.constant 0 : i32
    %c0_i32_2 = arith.constant 0 : i32
    return %c0_i32, %c0_i32_0, %c0_i32_1 : i32, i32, i32
  }
  func.func @transform_5(%arg0: i32) -> (i32, i32, i32) {
    %c0_i32 = arith.constant 0 : i32
    %c0_i32_0 = arith.constant 0 : i32
    %c0_i32_1 = arith.constant 0 : i32
    %c0_i32_2 = arith.constant 0 : i32
    return %c0_i32, %c0_i32_0, %c0_i32_1 : i32, i32, i32
  }
  func.func @transform_6(%arg0: i32) -> (i32, i32, i32) {
    %c0_i32 = arith.constant 0 : i32
    %c0_i32_0 = arith.constant 0 : i32
    %c0_i32_1 = arith.constant 0 : i32
    %c0_i32_2 = arith.constant 0 : i32
    return %c0_i32, %c0_i32_0, %c0_i32_1 : i32, i32, i32
  }
  func.func @transform_7(%arg0: i32) -> (i32, i32, i32) {
    %c0_i32 = arith.constant 0 : i32
    %c0_i32_0 = arith.constant 0 : i32
    %c0_i32_1 = arith.constant 0 : i32
    %c0_i32_2 = arith.constant 0 : i32
    return %c0_i32, %c0_i32_0, %c0_i32_1 : i32, i32, i32
  }
  func.func @transform_8(%arg0: i32) -> (i32, i32, i32) {
    %c0_i32 = arith.constant 0 : i32
    %c0_i32_0 = arith.constant 0 : i32
    %c0_i32_1 = arith.constant 0 : i32
    %c0_i32_2 = arith.constant 0 : i32
    return %c0_i32, %c0_i32_0, %c0_i32_1 : i32, i32, i32
  }
  func.func @transform_9(%arg0: i32) -> (i32, i32, i32) {
    %c0_i32 = arith.constant 0 : i32
    %c0_i32_0 = arith.constant 0 : i32
    %c0_i32_1 = arith.constant 0 : i32
    return %arg0, %c0_i32, %c0_i32_0 : i32, i32, i32
  }
}

</mosaic_0001>

<llo_original>
// kernel: tpu_custom_call.1
$region0: #{tpu_custom_call.1}
  #allocation0 [shape = 'u32[]', space=smem, size = 0x4, offset = 0x4, fixed_abs, tag = 'smem constant byte address 0x4 - core index']
  #allocation1 [shape = 'u32[144,128]{1,0:T(1,128)}', space=vmem, size = 0x12000, scoped, tag = 'internal scratch']
  %s0 = inlined_call_operand.hbm [shape: bf16[1,8,256], index: 0, kind: input, shape index: {}]
  %s1 = inlined_call_operand.hbm [shape: bf16[256,512], index: 1, kind: input, shape index: {}]
  %s2 = inlined_call_operand.hbm [shape: bf16[512,256], index: 2, kind: input, shape index: {}]
  %s3 = inlined_call_operand.hbm [shape: f32[4,8,256], index: 3, kind: input, shape index: {}]
  %s4 = inlined_call_operand.hbm [shape: f32[4,8,256], index: 4, kind: input, shape index: {}]
  %s5 = inlined_call_operand.hbm [shape: f32[8,8,256], index: 5, kind: input, shape index: {}]
  %s6 = inlined_call_operand.hbm [shape: f32[8,8,256], index: 6, kind: input, shape index: {}]
  %s7 = inlined_call_operand.hbm [shape: f32[8,8,256], index: 7, kind: input, shape index: {}]
  %s8 = inlined_call_operand.hbm [shape: f32[8,8,256], index: 8, kind: input, shape index: {}]
  %s9 = inlined_call_operand.hbm [shape: f32[1,16,256], index: 9, kind: output, shape index: {}]
  %s10 = sld [smem:[#allocation0]]
  $region82: #{tpu_custom_call.1} parent=0
    _
  %s12 = ssub.s32 1, %s10
  %s13 = scalar_select 0, %s12, %s10
  $region1: #{tpu_custom_call.1} parent=0
    #allocation2 [shape = 'u8[4096]{0}', space=vmem, size = 0x1000, scoped, tag = 'input window, operand 0, single buffered']
    #allocation3 [shape = 's32[1]{0}', space=sflag, size = 0x4, scoped, tag = 'scoped memory for tpu_custom_call.1']
    #allocation4 [shape = 's32[1]{0}', space=sflag, size = 0x4, scoped, tag = 'scoped memory for tpu_custom_call.1']
    #allocation5 [shape = 'u8[262144]{0}', space=vmem, size = 0x40000, scoped, tag = 'input window, operand 1, single buffered']
    #allocation6 [shape = 's32[1]{0}', space=sflag, size = 0x4, scoped, tag = 'scoped memory for tpu_custom_call.1']
    #allocation7 [shape = 'u8[262144]{0}', space=vmem, size = 0x40000, scoped, tag = 'input window, operand 2, single buffered']
    #allocation8 [shape = 'u8[32768]{0}', space=vmem, size = 0x8000, scoped, tag = 'input window, operand 3, single buffered']
    #allocation9 [shape = 's32[1]{0}', space=sflag, size = 0x4, scoped, tag = 'scoped memory for tpu_custom_call.1']
    #allocation10 [shape = 'u8[32768]{0}', space=vmem, size = 0x8000, scoped, tag = 'input window, operand 4, single buffered']
    #allocation11 [shape = 'u8[65536]{0}', space=vmem, size = 0x10000, scoped, tag = 'input window, operand 5, single buffered']
    #allocation12 [shape = 's32[1]{0}', space=sflag, size = 0x4, scoped, tag = 'scoped memory for tpu_custom_call.1']
    #allocation13 [shape = 'u8[65536]{0}', space=vmem, size = 0x10000, scoped, tag = 'input window, operand 6, single buffered']
    #allocation14 [shape = 'u8[65536]{0}', space=vmem, size = 0x10000, scoped, tag = 'input window, operand 7, single buffered']
    #allocation15 [shape = 's32[1]{0}', space=sflag, size = 0x4, scoped, tag = 'scoped memory for tpu_custom_call.1']
    #allocation16 [shape = 'u8[65536]{0}', space=vmem, size = 0x10000, scoped, tag = 'input window, operand 8, single buffered']
    #allocation17 [shape = 'u8[16384]{0}', space=vmem, size = 0x4000, scoped, tag = 'output window, operand 0, single buffered']
    %14 = vsyncpa [#allocation3], 0
    %15 = vsyncpa [#allocation6], 0
    %16 = vsyncpa [#allocation9], 0
    %17 = vsyncpa [#allocation12], 0
    %18 = vsyncpa [#allocation15], 0
    %19 = vsyncpa [#allocation4], 0
    // Predicated region
    $region2: #{tpu_custom_call.1} parent=1 // pred_check
      _
    $region3: #{tpu_custom_call.1} parent=1 // pred_check_branch
      %21 = sbr.rel (0) target = $region5
    $region4: #{tpu_custom_call.1} parent=1 // pred_region
      %s23 = ssub.s32 128, 128
      %24 = vsyncadd [#allocation3], %s23
      %s26 = sshll.u32 [#allocation2], 4
      %s27 = int_to_ptr.vmem [resolvable:$true] %s26
      %29 = dma.hbm_to_vmem [thread:$0]  %s0, 128, %s27, [#allocation3]
    $region5: #{tpu_custom_call.1} parent=1 // pred_fallthru
      _
    // Predicated region
    $region6: #{tpu_custom_call.1} parent=1 // pred_check
      _
    $region7: #{tpu_custom_call.1} parent=1 // pred_check_branch
      %31 = sbr.rel (0) target = $region9
    $region8: #{tpu_custom_call.1} parent=1 // pred_region
      %s33 = ssub.s32 8192, 8192
      %34 = vsyncadd [#allocation6], %s33
      %s35 = sshll.u32 [#allocation5], 4
      %s36 = int_to_ptr.vmem [resolvable:$true] %s35
      %41 = dma.hbm_to_vmem [thread:$0]  %s1, 8192, %s36, [#allocation6], 256, 256, 16
    $region9: #{tpu_custom_call.1} parent=1 // pred_fallthru
      _
    // Predicated region
    $region10: #{tpu_custom_call.1} parent=1 // pred_check
      _
    $region11: #{tpu_custom_call.1} parent=1 // pred_check_branch
      %43 = sbr.rel (0) target = $region13
    $region12: #{tpu_custom_call.1} parent=1 // pred_region
      %s45 = ssub.s32 8192, 8192
      %46 = vsyncadd [#allocation6], %s45
      %s47 = sshll.u32 [#allocation7], 4
      %s48 = int_to_ptr.vmem [resolvable:$true] %s47
      %53 = dma.hbm_to_vmem [thread:$0]  %s2, 8192, %s48, [#allocation6], 128, 128, 8
    $region13: #{tpu_custom_call.1} parent=1 // pred_fallthru
      _
    // Predicated region
    $region14: #{tpu_custom_call.1} parent=1 // pred_check
      _
    $region15: #{tpu_custom_call.1} parent=1 // pred_check_branch
      %55 = sbr.rel (0) target = $region17
    $region16: #{tpu_custom_call.1} parent=1 // pred_region
      %s57 = ssub.s32 1024, 1024
      %58 = vsyncadd [#allocation9], %s57
      %s59 = sshll.u32 [#allocation8], 4
      %s60 = int_to_ptr.vmem [resolvable:$true] %s59
      %65 = dma.hbm_to_vmem [thread:$0]  %s3, 1024, %s60, [#allocation9], 256, 256, 16
    $region17: #{tpu_custom_call.1} parent=1 // pred_fallthru
      _
    // Predicated region
    $region18: #{tpu_custom_call.1} parent=1 // pred_check
      _
    $region19: #{tpu_custom_call.1} parent=1 // pred_check_branch
      %67 = sbr.rel (0) target = $region21
    $region20: #{tpu_custom_call.1} parent=1 // pred_region
      %s69 = ssub.s32 1024, 1024
      %70 = vsyncadd [#allocation9], %s69
      %s71 = sshll.u32 [#allocation10], 4
      %s72 = int_to_ptr.vmem [resolvable:$true] %s71
      %77 = dma.hbm_to_vmem [thread:$0]  %s4, 1024, %s72, [#allocation9], 256, 256, 16
    $region21: #{tpu_custom_call.1} parent=1 // pred_fallthru
      _
    // Predicated region
    $region22: #{tpu_custom_call.1} parent=1 // pred_check
      _
    $region23: #{tpu_custom_call.1} parent=1 // pred_check_branch
      %79 = sbr.rel (0) target = $region25
    $region24: #{tpu_custom_call.1} parent=1 // pred_region
      %s81 = ssub.s32 2048, 2048
      %82 = vsyncadd [#allocation12], %s81
      %s83 = sshll.u32 [#allocation11], 4
      %s84 = int_to_ptr.vmem [resolvable:$true] %s83
      %89 = dma.hbm_to_vmem [thread:$0]  %s5, 2048, %s84, [#allocation12], 256, 256, 16
    $region25: #{tpu_custom_call.1} parent=1 // pred_fallthru
      _
    // Predicated region
    $region26: #{tpu_custom_call.1} parent=1 // pred_check
      _
    $region27: #{tpu_custom_call.1} parent=1 // pred_check_branch
      %91 = sbr.rel (0) target = $region29
    $region28: #{tpu_custom_call.1} parent=1 // pred_region
      %s93 = ssub.s32 2048, 2048
      %94 = vsyncadd [#allocation12], %s93
      %s95 = sshll.u32 [#allocation13], 4
      %s96 = int_to_ptr.vmem [resolvable:$true] %s95
      %101 = dma.hbm_to_vmem [thread:$0]  %s6, 2048, %s96, [#allocation12], 256, 256, 16
    $region29: #{tpu_custom_call.1} parent=1 // pred_fallthru
      _
    // Predicated region
    $region30: #{tpu_custom_call.1} parent=1 // pred_check
      _
    $region31: #{tpu_custom_call.1} parent=1 // pred_check_branch
      %103 = sbr.rel (0) target = $region33
    $region32: #{tpu_custom_call.1} parent=1 // pred_region
      %s105 = ssub.s32 2048, 2048
      %106 = vsyncadd [#allocation15], %s105
      %s107 = sshll.u32 [#allocation14], 4
      %s108 = int_to_ptr.vmem [resolvable:$true] %s107
      %113 = dma.hbm_to_vmem [thread:$0]  %s7, 2048, %s108, [#allocation15], 256, 256, 16
    $region33: #{tpu_custom_call.1} parent=1 // pred_fallthru
      _
    // Predicated region
    $region34: #{tpu_custom_call.1} parent=1 // pred_check
      _
    $region35: #{tpu_custom_call.1} parent=1 // pred_check_branch
      %115 = sbr.rel (0) target = $region37
    $region36: #{tpu_custom_call.1} parent=1 // pred_region
      %s117 = ssub.s32 2048, 2048
      %118 = vsyncadd [#allocation15], %s117
      %s119 = sshll.u32 [#allocation16], 4
      %s120 = int_to_ptr.vmem [resolvable:$true] %s119
      %125 = dma.hbm_to_vmem [thread:$0]  %s8, 2048, %s120, [#allocation15], 256, 256, 16
    $region37: #{tpu_custom_call.1} parent=1 // pred_fallthru
      _
    // Predicated region
    $region38: #{tpu_custom_call.1} parent=1 // pred_check
      _
    $region39: #{tpu_custom_call.1} parent=1 // pred_check_branch
      %127 = sbr.rel (0) target = $region41
    $region40: #{tpu_custom_call.1} parent=1 // pred_region
      %128 = dma.done [#allocation3], 128
    $region41: #{tpu_custom_call.1} parent=1 // pred_fallthru
      _
    // Predicated region
    $region42: #{tpu_custom_call.1} parent=1 // pred_check
      _
    $region43: #{tpu_custom_call.1} parent=1 // pred_check_branch
      %130 = sbr.rel (0) target = $region45
    $region44: #{tpu_custom_call.1} parent=1 // pred_region
      %131 = dma.done [#allocation6], 8192
    $region45: #{tpu_custom_call.1} parent=1 // pred_fallthru
      _
    // Predicated region
    $region46: #{tpu_custom_call.1} parent=1 // pred_check
      _
    $region47: #{tpu_custom_call.1} parent=1 // pred_check_branch
      %133 = sbr.rel (0) target = $region49
    $region48: #{tpu_custom_call.1} parent=1 // pred_region
      %134 = dma.done [#allocation6], 8192
    $region49: #{tpu_custom_call.1} parent=1 // pred_fallthru
      _
    // Predicated region
    $region50: #{tpu_custom_call.1} parent=1 // pred_check
      _
    $region51: #{tpu_custom_call.1} parent=1 // pred_check_branch
      %136 = sbr.rel (0) target = $region53
    $region52: #{tpu_custom_call.1} parent=1 // pred_region
      %137 = dma.done [#allocation9], 1024
    $region53: #{tpu_custom_call.1} parent=1 // pred_fallthru
      _
    // Predicated region
    $region54: #{tpu_custom_call.1} parent=1 // pred_check
      _
    $region55: #{tpu_custom_call.1} parent=1 // pred_check_branch
      %139 = sbr.rel (0) target = $region57
    $region56: #{tpu_custom_call.1} parent=1 // pred_region
      %140 = dma.done [#allocation9], 1024
    $region57: #{tpu_custom_call.1} parent=1 // pred_fallthru
      _
    // Predicated region
    $region58: #{tpu_custom_call.1} parent=1 // pred_check
      _
    $region59: #{tpu_custom_call.1} parent=1 // pred_check_branch
      %142 = sbr.rel (0) target = $region61
    $region60: #{tpu_custom_call.1} parent=1 // pred_region
      %143 = dma.done [#allocation12], 2048
    $region61: #{tpu_custom_call.1} parent=1 // pred_fallthru
      _
    // Predicated region
    $region62: #{tpu_custom_call.1} parent=1 // pred_check
      _
    $region63: #{tpu_custom_call.1} parent=1 // pred_check_branch
      %145 = sbr.rel (0) target = $region65
    $region64: #{tpu_custom_call.1} parent=1 // pred_region
      %146 = dma.done [#allocation12], 2048
    $region65: #{tpu_custom_call.1} parent=1 // pred_fallthru
      _
    // Predicated region
    $region66: #{tpu_custom_call.1} parent=1 // pred_check
      _
    $region67: #{tpu_custom_call.1} parent=1 // pred_check_branch
      %148 = sbr.rel (0) target = $region69
    $region68: #{tpu_custom_call.1} parent=1 // pred_region
      %149 = dma.done [#allocation15], 2048
    $region69: #{tpu_custom_call.1} parent=1 // pred_fallthru
      _
    // Predicated region
    $region70: #{tpu_custom_call.1} parent=1 // pred_check
      _
    $region71: #{tpu_custom_call.1} parent=1 // pred_check_branch
      %151 = sbr.rel (0) target = $region73
    $region72: #{tpu_custom_call.1} parent=1 // pred_region
      %152 = dma.done [#allocation15], 2048
    $region73: #{tpu_custom_call.1} parent=1 // pred_fallthru
      _
    %v153 = vld [vmem:[#allocation2] sm:$0xff]
    %v154 = vld [vmem:[#allocation5] sm:$0xff]
    %v155 = vld [vmem:[#allocation5 + $0x8] sm:$0xff]
    %v156 = vld [vmem:[#allocation5 + $0x10] sm:$0xff]
    %v157 = vld [vmem:[#allocation5 + $0x18] sm:$0xff]
    %v158 = vld [vmem:[#allocation5 + $0x20] sm:$0xff]
    %v159 = vld [vmem:[#allocation5 + $0x28] sm:$0xff]
    %v160 = vld [vmem:[#allocation5 + $0x30] sm:$0xff]
    %v161 = vld [vmem:[#allocation5 + $0x38] sm:$0xff]
    %v162 = vld [vmem:[#allocation5 + $0x40] sm:$0xff]
    %v163 = vld [vmem:[#allocation5 + $0x48] sm:$0xff]
    %v164 = vld [vmem:[#allocation5 + $0x50] sm:$0xff]
    %v165 = vld [vmem:[#allocation5 + $0x58] sm:$0xff]
    %v166 = vld [vmem:[#allocation5 + $0x60] sm:$0xff]
    %v167 = vld [vmem:[#allocation5 + $0x68] sm:$0xff]
    %v168 = vld [vmem:[#allocation5 + $0x70] sm:$0xff]
    %v169 = vld [vmem:[#allocation5 + $0x78] sm:$0xff]
    %v170 = vld [vmem:[#allocation5 + $0x80] sm:$0xff]
    %v171 = vld [vmem:[#allocation5 + $0x88] sm:$0xff]
    %v172 = vld [vmem:[#allocation5 + $0x90] sm:$0xff]
    %v173 = vld [vmem:[#allocation5 + $0x98] sm:$0xff]
    %v174 = vld [vmem:[#allocation5 + $0xa0] sm:$0xff]
    %v175 = vld [vmem:[#allocation5 + $0xa8] sm:$0xff]
    %v176 = vld [vmem:[#allocation5 + $0xb0] sm:$0xff]
    %v177 = vld [vmem:[#allocation5 + $0xb8] sm:$0xff]
    %v178 = vld [vmem:[#allocation5 + $0xc0] sm:$0xff]
    %v179 = vld [vmem:[#allocation5 + $0xc8] sm:$0xff]
    %v180 = vld [vmem:[#allocation5 + $0xd0] sm:$0xff]
    %v181 = vld [vmem:[#allocation5 + $0xd8] sm:$0xff]
    %v182 = vld [vmem:[#allocation5 + $0xe0] sm:$0xff]
    %v183 = vld [vmem:[#allocation5 + $0xe8] sm:$0xff]
    %v184 = vld [vmem:[#allocation5 + $0xf0] sm:$0xff]
    %v185 = vld [vmem:[#allocation5 + $0xf8] sm:$0xff]
    %v186 = vld [vmem:[#allocation5 + $0x100] sm:$0xff]
    %v187 = vld [vmem:[#allocation5 + $0x108] sm:$0xff]
    %v188 = vld [vmem:[#allocation5 + $0x110] sm:$0xff]
    %v189 = vld [vmem:[#allocation5 + $0x118] sm:$0xff]
    %v190 = vld [vmem:[#allocation5 + $0x120] sm:$0xff]
    %v191 = vld [vmem:[#allocation5 + $0x128] sm:$0xff]
    %v192 = vld [vmem:[#allocation5 + $0x130] sm:$0xff]
    %v193 = vld [vmem:[#allocation5 + $0x138] sm:$0xff]
    %v194 = vld [vmem:[#allocation5 + $0x140] sm:$0xff]
    %v195 = vld [vmem:[#allocation5 + $0x148] sm:$0xff]
    %v196 = vld [vmem:[#allocation5 + $0x150] sm:$0xff]
    %v197 = vld [vmem:[#allocation5 + $0x158] sm:$0xff]
    %v198 = vld [vmem:[#allocation5 + $0x160] sm:$0xff]
    %v199 = vld [vmem:[#allocation5 + $0x168] sm:$0xff]
    %v200 = vld [vmem:[#allocation5 + $0x170] sm:$0xff]
    %v201 = vld [vmem:[#allocation5 + $0x178] sm:$0xff]
    %v202 = vld [vmem:[#allocation5 + $0x180] sm:$0xff]
    %v203 = vld [vmem:[#allocation5 + $0x188] sm:$0xff]
    %v204 = vld [vmem:[#allocation5 + $0x190] sm:$0xff]
    %v205 = vld [vmem:[#allocation5 + $0x198] sm:$0xff]
    %v206 = vld [vmem:[#allocation5 + $0x1a0] sm:$0xff]
    %v207 = vld [vmem:[#allocation5 + $0x1a8] sm:$0xff]
    %v208 = vld [vmem:[#allocation5 + $0x1b0] sm:$0xff]
    %v209 = vld [vmem:[#allocation5 + $0x1b8] sm:$0xff]
    %v210 = vld [vmem:[#allocation5 + $0x1c0] sm:$0xff]
    %v211 = vld [vmem:[#allocation5 + $0x1c8] sm:$0xff]
    %v212 = vld [vmem:[#allocation5 + $0x1d0] sm:$0xff]
    %v213 = vld [vmem:[#allocation5 + $0x1d8] sm:$0xff]
    %v214 = vld [vmem:[#allocation5 + $0x1e0] sm:$0xff]
    %v215 = vld [vmem:[#allocation5 + $0x1e8] sm:$0xff]
    %v216 = vld [vmem:[#allocation5 + $0x1f0] sm:$0xff]
    %v217 = vld [vmem:[#allocation5 + $0x1f8] sm:$0xff]
    %v219 = vunpack.c.l.b16 %v153
    %v220 = vunpack.c.h.b16 %v153
    %v221 = vpack.c.b16 %v219, %v219
    %v222 = vpack.c.b16 %v220, %v220
    %v289 = vunpack.c.l.b16 %v154
    %v290 = vunpack.c.h.b16 %v154
    %v291 = vunpack.c.l.b16 %v155
    %v292 = vunpack.c.h.b16 %v155
    %v293 = vunpack.c.l.b16 %v156
    %v294 = vunpack.c.h.b16 %v156
    %v295 = vunpack.c.l.b16 %v157
    %v296 = vunpack.c.h.b16 %v157
    %v297 = vunpack.c.l.b16 %v158
    %v298 = vunpack.c.h.b16 %v158
    %v299 = vunpack.c.l.b16 %v159
    %v300 = vunpack.c.h.b16 %v159
    %v301 = vunpack.c.l.b16 %v160
    %v302 = vunpack.c.h.b16 %v160
    %v303 = vunpack.c.l.b16 %v161
    %v304 = vunpack.c.h.b16 %v161
    %v305 = vunpack.c.l.b16 %v162
    %v306 = vunpack.c.h.b16 %v162
    %v307 = vunpack.c.l.b16 %v163
    %v308 = vunpack.c.h.b16 %v163
    %v309 = vunpack.c.l.b16 %v164
    %v310 = vunpack.c.h.b16 %v164
    %v311 = vunpack.c.l.b16 %v165
    %v312 = vunpack.c.h.b16 %v165
    %v313 = vunpack.c.l.b16 %v166
    %v314 = vunpack.c.h.b16 %v166
    %v315 = vunpack.c.l.b16 %v167
    %v316 = vunpack.c.h.b16 %v167
    %v317 = vunpack.c.l.b16 %v168
    %v318 = vunpack.c.h.b16 %v168
    %v319 = vunpack.c.l.b16 %v169
    %v320 = vunpack.c.h.b16 %v169
    %v321 = vunpack.c.l.b16 %v170
    %v322 = vunpack.c.h.b16 %v170
    %v323 = vunpack.c.l.b16 %v171
    %v324 = vunpack.c.h.b16 %v171
    %v325 = vunpack.c.l.b16 %v172
    %v326 = vunpack.c.h.b16 %v172
    %v327 = vunpack.c.l.b16 %v173
    %v328 = vunpack.c.h.b16 %v173
    %v329 = vunpack.c.l.b16 %v174
    %v330 = vunpack.c.h.b16 %v174
    %v331 = vunpack.c.l.b16 %v175
    %v332 = vunpack.c.h.b16 %v175
    %v333 = vunpack.c.l.b16 %v176
    %v334 = vunpack.c.h.b16 %v176
    %v335 = vunpack.c.l.b16 %v177
    %v336 = vunpack.c.h.b16 %v177
    %v337 = vunpack.c.l.b16 %v178
    %v338 = vunpack.c.h.b16 %v178
    %v339 = vunpack.c.l.b16 %v179
    %v340 = vunpack.c.h.b16 %v179
    %v341 = vunpack.c.l.b16 %v180
    %v342 = vunpack.c.h.b16 %v180
    %v343 = vunpack.c.l.b16 %v181
    %v344 = vunpack.c.h.b16 %v181
    %v345 = vunpack.c.l.b16 %v182
    %v346 = vunpack.c.h.b16 %v182
    %v347 = vunpack.c.l.b16 %v183
    %v348 = vunpack.c.h.b16 %v183
    %v349 = vunpack.c.l.b16 %v184
    %v350 = vunpack.c.h.b16 %v184
    %v351 = vunpack.c.l.b16 %v185
    %v352 = vunpack.c.h.b16 %v185
    %v353 = vunpack.c.l.b16 %v186
    %v354 = vunpack.c.h.b16 %v186
    %v355 = vunpack.c.l.b16 %v187
    %v356 = vunpack.c.h.b16 %v187
    %v357 = vunpack.c.l.b16 %v188
    %v358 = vunpack.c.h.b16 %v188
    %v359 = vunpack.c.l.b16 %v189
    %v360 = vunpack.c.h.b16 %v189
    %v361 = vunpack.c.l.b16 %v190
    %v362 = vunpack.c.h.b16 %v190
    %v363 = vunpack.c.l.b16 %v191
    %v364 = vunpack.c.h.b16 %v191
    %v365 = vunpack.c.l.b16 %v192
    %v366 = vunpack.c.h.b16 %v192
    %v367 = vunpack.c.l.b16 %v193
    %v368 = vunpack.c.h.b16 %v193
    %v369 = vunpack.c.l.b16 %v194
    %v370 = vunpack.c.h.b16 %v194
    %v371 = vunpack.c.l.b16 %v195
    %v372 = vunpack.c.h.b16 %v195
    %v373 = vunpack.c.l.b16 %v196
    %v374 = vunpack.c.h.b16 %v196
    %v375 = vunpack.c.l.b16 %v197
    %v376 = vunpack.c.h.b16 %v197
    %v377 = vunpack.c.l.b16 %v198
    %v378 = vunpack.c.h.b16 %v198
    %v379 = vunpack.c.l.b16 %v199
    %v380 = vunpack.c.h.b16 %v199
    %v381 = vunpack.c.l.b16 %v200
    %v382 = vunpack.c.h.b16 %v200
    %v383 = vunpack.c.l.b16 %v201
    %v384 = vunpack.c.h.b16 %v201
    %v385 = vunpack.c.l.b16 %v202
    %v386 = vunpack.c.h.b16 %v202
    %v387 = vunpack.c.l.b16 %v203
    %v388 = vunpack.c.h.b16 %v203
    %v389 = vunpack.c.l.b16 %v204
    %v390 = vunpack.c.h.b16 %v204
    %v391 = vunpack.c.l.b16 %v205
    %v392 = vunpack.c.h.b16 %v205
    %v393 = vunpack.c.l.b16 %v206
    %v394 = vunpack.c.h.b16 %v206
    %v395 = vunpack.c.l.b16 %v207
    %v396 = vunpack.c.h.b16 %v207
    %v397 = vunpack.c.l.b16 %v208
    %v398 = vunpack.c.h.b16 %v208
    %v399 = vunpack.c.l.b16 %v209
    %v400 = vunpack.c.h.b16 %v209
    %v401 = vunpack.c.l.b16 %v210
    %v402 = vunpack.c.h.b16 %v210
    %v403 = vunpack.c.l.b16 %v211
    %v404 = vunpack.c.h.b16 %v211
    %v405 = vunpack.c.l.b16 %v212
    %v406 = vunpack.c.h.b16 %v212
    %v407 = vunpack.c.l.b16 %v213
    %v408 = vunpack.c.h.b16 %v213
    %v409 = vunpack.c.l.b16 %v214
    %v410 = vunpack.c.h.b16 %v214
    %v411 = vunpack.c.l.b16 %v215
    %v412 = vunpack.c.h.b16 %v215
    %v413 = vunpack.c.l.b16 %v216
    %v414 = vunpack.c.h.b16 %v216
    %v415 = vunpack.c.l.b16 %v217
    %v416 = vunpack.c.h.b16 %v217
    %v417 = vpack.c.b16 %v293, %v289
    %v418 = vpack.c.b16 %v294, %v290
    %v419 = vpack.c.b16 %v295, %v291
    %v420 = vpack.c.b16 %v296, %v292
    %v421 = vpack.c.b16 %v301, %v297
    %v422 = vpack.c.b16 %v302, %v298
    %v423 = vpack.c.b16 %v303, %v299
    %v424 = vpack.c.b16 %v304, %v300
    %v425 = vpack.c.b16 %v309, %v305
    %v426 = vpack.c.b16 %v310, %v306
    %v427 = vpack.c.b16 %v311, %v307
    %v428 = vpack.c.b16 %v312, %v308
    %v429 = vpack.c.b16 %v317, %v313
    %v430 = vpack.c.b16 %v318, %v314
    %v431 = vpack.c.b16 %v319, %v315
    %v432 = vpack.c.b16 %v320, %v316
    %v433 = vpack.c.b16 %v325, %v321
    %v434 = vpack.c.b16 %v326, %v322
    %v435 = vpack.c.b16 %v327, %v323
    %v436 = vpack.c.b16 %v328, %v324
    %v437 = vpack.c.b16 %v333, %v329
    %v438 = vpack.c.b16 %v334, %v330
    %v439 = vpack.c.b16 %v335, %v331
    %v440 = vpack.c.b16 %v336, %v332
    %v441 = vpack.c.b16 %v341, %v337
    %v442 = vpack.c.b16 %v342, %v338
    %v443 = vpack.c.b16 %v343, %v339
    %v444 = vpack.c.b16 %v344, %v340
    %v445 = vpack.c.b16 %v349, %v345
    %v446 = vpack.c.b16 %v350, %v346
    %v447 = vpack.c.b16 %v351, %v347
    %v448 = vpack.c.b16 %v352, %v348
    %v449 = vpack.c.b16 %v357, %v353
    %v450 = vpack.c.b16 %v358, %v354
    %v451 = vpack.c.b16 %v359, %v355
    %v452 = vpack.c.b16 %v360, %v356
    %v453 = vpack.c.b16 %v365, %v361
    %v454 = vpack.c.b16 %v366, %v362
    %v455 = vpack.c.b16 %v367, %v363
    %v456 = vpack.c.b16 %v368, %v364
    %v457 = vpack.c.b16 %v373, %v369
    %v458 = vpack.c.b16 %v374, %v370
    %v459 = vpack.c.b16 %v375, %v371
    %v460 = vpack.c.b16 %v376, %v372
    %v461 = vpack.c.b16 %v381, %v377
    %v462 = vpack.c.b16 %v382, %v378
    %v463 = vpack.c.b16 %v383, %v379
    %v464 = vpack.c.b16 %v384, %v380
    %v465 = vpack.c.b16 %v389, %v385
    %v466 = vpack.c.b16 %v390, %v386
    %v467 = vpack.c.b16 %v391, %v387
    %v468 = vpack.c.b16 %v392, %v388
    %v469 = vpack.c.b16 %v397, %v393
    %v470 = vpack.c.b16 %v398, %v394
    %v471 = vpack.c.b16 %v399, %v395
    %v472 = vpack.c.b16 %v400, %v396
    %v473 = vpack.c.b16 %v405, %v401
    %v474 = vpack.c.b16 %v406, %v402
    %v475 = vpack.c.b16 %v407, %v403
    %v476 = vpack.c.b16 %v408, %v404
    %v477 = vpack.c.b16 %v413, %v409
    %v478 = vpack.c.b16 %v414, %v410
    %v479 = vpack.c.b16 %v415, %v411
    %v480 = vpack.c.b16 %v416, %v412
    %545 = vmatprep.subr.bf16.mxu0 %v418
    %546 = vmatpush1.bf16.msra.mxu0 %v417
    %547 = vmatprep.subr.bf16.mxu0 %v422
    %548 = vmatpush1.bf16.msra.mxu0 %v421
    %549 = vmatprep.subr.bf16.mxu0 %v426
    %550 = vmatpush1.bf16.msra.mxu0 %v425
    %551 = vmatprep.subr.bf16.mxu0 %v430
    %552 = vmatpush1.bf16.msra.mxu0 %v429
    %553 = vmatprep.subr.bf16.mxu0 %v434
    %554 = vmatpush1.bf16.msra.mxu0 %v433
    %555 = vmatprep.subr.bf16.mxu0 %v438
    %556 = vmatpush1.bf16.msra.mxu0 %v437
    %557 = vmatprep.subr.bf16.mxu0 %v442
    %558 = vmatpush1.bf16.msra.mxu0 %v441
    %559 = vmatprep.subr.bf16.mxu0 %v446
    %560 = vmatpush1.bf16.msra.mxu0 %v445
    %561 = vmatprep.subr.bf16.mxu0 %v450
    %562 = vmatpush1.bf16.msra.mxu0 %v449
    %563 = vmatprep.subr.bf16.mxu0 %v454
    %564 = vmatpush1.bf16.msra.mxu0 %v453
    %565 = vmatprep.subr.bf16.mxu0 %v458
    %566 = vmatpush1.bf16.msra.mxu0 %v457
    %567 = vmatprep.subr.bf16.mxu0 %v462
    %568 = vmatpush1.bf16.msra.mxu0 %v461
    %569 = vmatprep.subr.bf16.mxu0 %v466
    %570 = vmatpush1.bf16.msra.mxu0 %v465
    %571 = vmatprep.subr.bf16.mxu0 %v470
    %572 = vmatpush1.bf16.msra.mxu0 %v469
    %573 = vmatprep.subr.bf16.mxu0 %v474
    %574 = vmatpush1.bf16.msra.mxu0 %v473
    %575 = vmatprep.subr.bf16.mxu0 %v478
    %576 = vmatpush1.bf16.msra.mxu0 %v477
    %577 = vmatprep.mubr.bf16.mxu0 %v222
    %578 = vmatmul.mubr.bf16.gmra.mrb[0].mxu0 %v221
    %v579 = vpop.f32.mrb[0].mxu0
    %v580 = vadd.f32 0.0, %v579
    %v581 = vpop.f32.mrb[0].mxu0
    %v582 = vadd.f32 0.0, %v581
    %v583 = vpop.f32.mrb[0].mxu0
    %v584 = vpop.f32.mrb[0].mxu0
    %585 = vdwg.mxu0
    %586 = vmatprep.subr.bf16.mxu0 %v420
    %587 = vmatpush1.bf16.msra.mxu0 %v419
    %588 = vmatprep.subr.bf16.mxu0 %v424
    %589 = vmatpush1.bf16.msra.mxu0 %v423
    %590 = vmatprep.subr.bf16.mxu0 %v428
    %591 = vmatpush1.bf16.msra.mxu0 %v427
    %592 = vmatprep.subr.bf16.mxu0 %v432
    %593 = vmatpush1.bf16.msra.mxu0 %v431
    %594 = vmatprep.subr.bf16.mxu0 %v436
    %595 = vmatpush1.bf16.msra.mxu0 %v435
    %596 = vmatprep.subr.bf16.mxu0 %v440
    %597 = vmatpush1.bf16.msra.mxu0 %v439
    %598 = vmatprep.subr.bf16.mxu0 %v444
    %599 = vmatpush1.bf16.msra.mxu0 %v443
    %600 = vmatprep.subr.bf16.mxu0 %v448
    %601 = vmatpush1.bf16.msra.mxu0 %v447
    %602 = vmatprep.subr.bf16.mxu0 %v452
    %603 = vmatpush1.bf16.msra.mxu0 %v451
    %604 = vmatprep.subr.bf16.mxu0 %v456
    %605 = vmatpush1.bf16.msra.mxu0 %v455
    %606 = vmatprep.subr.bf16.mxu0 %v460
    %607 = vmatpush1.bf16.msra.mxu0 %v459
    %608 = vmatprep.subr.bf16.mxu0 %v464
    %609 = vmatpush1.bf16.msra.mxu0 %v463
    %610 = vmatprep.subr.bf16.mxu0 %v468
    %611 = vmatpush1.bf16.msra.mxu0 %v467
    %612 = vmatprep.subr.bf16.mxu0 %v472
    %613 = vmatpush1.bf16.msra.mxu0 %v471
    %614 = vmatprep.subr.bf16.mxu0 %v476
    %615 = vmatpush1.bf16.msra.mxu0 %v475
    %616 = vmatprep.subr.bf16.mxu0 %v480
    %617 = vmatpush1.bf16.msra.mxu0 %v479
    %618 = vmatprep.mubr.bf16.mxu0 %v222
    %619 = vmatmul.mubr.bf16.gmra.mrb[0].mxu0 %v221
    %v620 = vpop.f32.mrb[0].mxu0
    %v621 = vadd.f32 0.0, %v620
    %v622 = vpop.f32.mrb[0].mxu0
    %v623 = vadd.f32 0.0, %v622
    %v624 = vpop.f32.mrb[0].mxu0
    %v625 = vpop.f32.mrb[0].mxu0
    %626 = vdwg.mxu0
    %v627 = vld [vmem:[#allocation8] sm:$0xff]
    %v628 = vld [vmem:[#allocation8 + $0x8] sm:$0xff]
    %v629 = vld [vmem:[#allocation10] sm:$0xff]
    %v630 = vld [vmem:[#allocation10 + $0x8] sm:$0xff]
    %v631 = vlaneseq
    %v632 = vshrl.u32 %v631, 7
    %v633 = vsub.s32 0, %v632
    %v634 = vrot.slane %v580, %v633
    %v635 = vlaneseq
    %v636 = vshrl.u32 %v635, 7
    %v637 = vsub.s32 0, %v636
    %v638 = vrot.slane %v582, %v637
    %v639 = vmul.f32 %v634, %v627
    %v640 = vmul.f32 %v638, %v628
    %v641 = vlaneseq
    %v642 = vshrl.u32 %v641, 7
    %v643 = vsub.s32 0, %v642
    %v644 = vrot.slane %v621, %v643
    %v645 = vlaneseq
    %v646 = vshrl.u32 %v645, 7
    %v647 = vsub.s32 0, %v646
    %v648 = vrot.slane %v623, %v647
    %v649 = vmul.f32 %v644, %v629
    %v650 = vmul.f32 %v648, %v630
    %v651 = vsub.f32 %v639, %v649
    %v652 = vsub.f32 %v640, %v650
    %v653 = vadd.f32 %v651, 0.0
    %v654 = vadd.f32 %v652, 0.0
    %v655 = vmul.f32 %v634, %v629
    %v656 = vmul.f32 %v638, %v630
    %v657 = vmul.f32 %v644, %v627
    %v658 = vmul.f32 %v648, %v628
    %v659 = vadd.f32 %v655, %v657
    %v660 = vadd.f32 %v656, %v658
    %v661 = vadd.f32 %v659, 0.0
    %v662 = vadd.f32 %v660, 0.0
    %s663 = scalar_lea.vmem [#allocation8], 16
    %v664 = vld [vmem:[%s663] sm:$0xff]
    %v665 = vld [vmem:[%s663 + $0x8] sm:$0xff]
    %s666 = scalar_lea.vmem [#allocation10], 16
    %v667 = vld [vmem:[%s666] sm:$0xff]
    %v668 = vld [vmem:[%s666 + $0x8] sm:$0xff]
    %v669 = vlaneseq
    %v670 = vshrl.u32 %v669, 7
    %v671 = vsub.s32 1, %v670
    %v672 = vrot.slane %v580, %v671
    %v673 = vlaneseq
    %v674 = vshrl.u32 %v673, 7
    %v675 = vsub.s32 1, %v674
    %v676 = vrot.slane %v582, %v675
    %v677 = vmul.f32 %v672, %v664
    %v678 = vmul.f32 %v676, %v665
    %v679 = vlaneseq
    %v680 = vshrl.u32 %v679, 7
    %v681 = vsub.s32 1, %v680
    %v682 = vrot.slane %v621, %v681
    %v683 = vlaneseq
    %v684 = vshrl.u32 %v683, 7
    %v685 = vsub.s32 1, %v684
    %v686 = vrot.slane %v623, %v685
    %v687 = vmul.f32 %v682, %v667
    %v688 = vmul.f32 %v686, %v668
    %v689 = vsub.f32 %v677, %v687
    %v690 = vsub.f32 %v678, %v688
    %v691 = vadd.f32 %v653, %v689
    %v692 = vadd.f32 %v654, %v690
    %v693 = vmul.f32 %v672, %v667
    %v694 = vmul.f32 %v676, %v668
    %v695 = vmul.f32 %v682, %v664
    %v696 = vmul.f32 %v686, %v665
    %v697 = vadd.f32 %v693, %v695
    %v698 = vadd.f32 %v694, %v696
    %v699 = vadd.f32 %v661, %v697
    %v700 = vadd.f32 %v662, %v698
    %s701 = scalar_lea.vmem [#allocation8], 32
    %v702 = vld [vmem:[%s701] sm:$0xff]
    %v703 = vld [vmem:[%s701 + $0x8] sm:$0xff]
    %s704 = scalar_lea.vmem [#allocation10], 32
    %v705 = vld [vmem:[%s704] sm:$0xff]
    %v706 = vld [vmem:[%s704 + $0x8] sm:$0xff]
    %v707 = vlaneseq
    %v708 = vshrl.u32 %v707, 7
    %v709 = vsub.s32 2, %v708
    %v710 = vrot.slane %v580, %v709
    %v711 = vlaneseq
    %v712 = vshrl.u32 %v711, 7
    %v713 = vsub.s32 2, %v712
    %v714 = vrot.slane %v582, %v713
    %v715 = vmul.f32 %v710, %v702
    %v716 = vmul.f32 %v714, %v703
    %v717 = vlaneseq
    %v718 = vshrl.u32 %v717, 7
    %v719 = vsub.s32 2, %v718
    %v720 = vrot.slane %v621, %v719
    %v721 = vlaneseq
    %v722 = vshrl.u32 %v721, 7
    %v723 = vsub.s32 2, %v722
    %v724 = vrot.slane %v623, %v723
    %v725 = vmul.f32 %v720, %v705
    %v726 = vmul.f32 %v724, %v706
    %v727 = vsub.f32 %v715, %v725
    %v728 = vsub.f32 %v716, %v726
    %v729 = vadd.f32 %v691, %v727
    %v730 = vadd.f32 %v692, %v728
    %v731 = vmul.f32 %v710, %v705
    %v732 = vmul.f32 %v714, %v706
    %v733 = vmul.f32 %v720, %v702
    %v734 = vmul.f32 %v724, %v703
    %v735 = vadd.f32 %v731, %v733
    %v736 = vadd.f32 %v732, %v734
    %v737 = vadd.f32 %v699, %v735
    %v738 = vadd.f32 %v700, %v736
    %s739 = scalar_lea.vmem [#allocation8], 48
    %v740 = vld [vmem:[%s739] sm:$0xff]
    %v741 = vld [vmem:[%s739 + $0x8] sm:$0xff]
    %s742 = scalar_lea.vmem [#allocation10], 48
    %v743 = vld [vmem:[%s742] sm:$0xff]
    %v744 = vld [vmem:[%s742 + $0x8] sm:$0xff]
    %v745 = vlaneseq
    %v746 = vshrl.u32 %v745, 7
    %v747 = vsub.s32 3, %v746
    %v748 = vrot.slane %v580, %v747
    %v749 = vlaneseq
    %v750 = vshrl.u32 %v749, 7
    %v751 = vsub.s32 3, %v750
    %v752 = vrot.slane %v582, %v751
    %v753 = vmul.f32 %v748, %v740
    %v754 = vmul.f32 %v752, %v741
    %v755 = vlaneseq
    %v756 = vshrl.u32 %v755, 7
    %v757 = vsub.s32 3, %v756
    %v758 = vrot.slane %v621, %v757
    %v759 = vlaneseq
    %v760 = vshrl.u32 %v759, 7
    %v761 = vsub.s32 3, %v760
    %v762 = vrot.slane %v623, %v761
    %v763 = vmul.f32 %v758, %v743
    %v764 = vmul.f32 %v762, %v744
    %v765 = vsub.f32 %v753, %v763
    %v766 = vsub.f32 %v754, %v764
    %v767 = vadd.f32 %v729, %v765
    %v768 = vadd.f32 %v730, %v766
    %v769 = vmul.f32 %v748, %v743
    %v770 = vmul.f32 %v752, %v744
    %v771 = vmul.f32 %v758, %v740
    %v772 = vmul.f32 %v762, %v741
    %v773 = vadd.f32 %v769, %v771
    %v774 = vadd.f32 %v770, %v772
    %v775 = vadd.f32 %v737, %v773
    %v776 = vadd.f32 %v738, %v774
    %v777 = vld [vmem:[#allocation11] sm:$0xff]
    %v778 = vld [vmem:[#allocation11 + $0x8] sm:$0xff]
    %v779 = vld [vmem:[#allocation13] sm:$0xff]
    %v780 = vld [vmem:[#allocation13 + $0x8] sm:$0xff]
    %v781 = vlaneseq
    %v782 = vshrl.u32 %v781, 7
    %v783 = vsub.s32 0, %v782
    %v784 = vrot.slane %v767, %v783
    %v785 = vlaneseq
    %v786 = vshrl.u32 %v785, 7
    %v787 = vsub.s32 0, %v786
    %v788 = vrot.slane %v768, %v787
    %v789 = vmul.f32 %v784, %v777
    %v790 = vmul.f32 %v788, %v778
    %v791 = vlaneseq
    %v792 = vshrl.u32 %v791, 7
    %v793 = vsub.s32 0, %v792
    %v794 = vrot.slane %v775, %v793
    %v795 = vlaneseq
    %v796 = vshrl.u32 %v795, 7
    %v797 = vsub.s32 0, %v796
    %v798 = vrot.slane %v776, %v797
    %v799 = vmul.f32 %v794, %v779
    %v800 = vmul.f32 %v798, %v780
    %v801 = vsub.f32 %v789, %v799
    %v802 = vsub.f32 %v790, %v800
    %v803 = vadd.f32 %v801, 0.0
    %v804 = vadd.f32 %v802, 0.0
    %v805 = vmul.f32 %v784, %v779
    %v806 = vmul.f32 %v788, %v780
    %v807 = vmul.f32 %v794, %v777
    %v808 = vmul.f32 %v798, %v778
    %v809 = vadd.f32 %v805, %v807
    %v810 = vadd.f32 %v806, %v808
    %v811 = vadd.f32 %v809, 0.0
    %v812 = vadd.f32 %v810, 0.0
    %s813 = scalar_lea.vmem [#allocation11], 16
    %v814 = vld [vmem:[%s813] sm:$0xff]
    %v815 = vld [vmem:[%s813 + $0x8] sm:$0xff]
    %s816 = scalar_lea.vmem [#allocation13], 16
    %v817 = vld [vmem:[%s816] sm:$0xff]
    %v818 = vld [vmem:[%s816 + $0x8] sm:$0xff]
    %v819 = vlaneseq
    %v820 = vshrl.u32 %v819, 7
    %v821 = vsub.s32 1, %v820
    %v822 = vrot.slane %v767, %v821
    %v823 = vlaneseq
    %v824 = vshrl.u32 %v823, 7
    %v825 = vsub.s32 1, %v824
    %v826 = vrot.slane %v768, %v825
    %v827 = vmul.f32 %v822, %v814
    %v828 = vmul.f32 %v826, %v815
    %v829 = vlaneseq
    %v830 = vshrl.u32 %v829, 7
    %v831 = vsub.s32 1, %v830
    %v832 = vrot.slane %v775, %v831
    %v833 = vlaneseq
    %v834 = vshrl.u32 %v833, 7
    %v835 = vsub.s32 1, %v834
    %v836 = vrot.slane %v776, %v835
    %v837 = vmul.f32 %v832, %v817
    %v838 = vmul.f32 %v836, %v818
    %v839 = vsub.f32 %v827, %v837
    %v840 = vsub.f32 %v828, %v838
    %v841 = vadd.f32 %v803, %v839
    %v842 = vadd.f32 %v804, %v840
    %v843 = vmul.f32 %v822, %v817
    %v844 = vmul.f32 %v826, %v818
    %v845 = vmul.f32 %v832, %v814
    %v846 = vmul.f32 %v836, %v815
    %v847 = vadd.f32 %v843, %v845
    %v848 = vadd.f32 %v844, %v846
    %v849 = vadd.f32 %v811, %v847
    %v850 = vadd.f32 %v812, %v848
    %s851 = scalar_lea.vmem [#allocation11], 32
    %v852 = vld [vmem:[%s851] sm:$0xff]
    %v853 = vld [vmem:[%s851 + $0x8] sm:$0xff]
    %s854 = scalar_lea.vmem [#allocation13], 32
    %v855 = vld [vmem:[%s854] sm:$0xff]
    %v856 = vld [vmem:[%s854 + $0x8] sm:$0xff]
    %v857 = vlaneseq
    %v858 = vshrl.u32 %v857, 7
    %v859 = vsub.s32 2, %v858
    %v860 = vrot.slane %v767, %v859
    %v861 = vlaneseq
    %v862 = vshrl.u32 %v861, 7
    %v863 = vsub.s32 2, %v862
    %v864 = vrot.slane %v768, %v863
    %v865 = vmul.f32 %v860, %v852
    %v866 = vmul.f32 %v864, %v853
    %v867 = vlaneseq
    %v868 = vshrl.u32 %v867, 7
    %v869 = vsub.s32 2, %v868
    %v870 = vrot.slane %v775, %v869
    %v871 = vlaneseq
    %v872 = vshrl.u32 %v871, 7
    %v873 = vsub.s32 2, %v872
    %v874 = vrot.slane %v776, %v873
    %v875 = vmul.f32 %v870, %v855
    %v876 = vmul.f32 %v874, %v856
    %v877 = vsub.f32 %v865, %v875
    %v878 = vsub.f32 %v866, %v876
    %v879 = vadd.f32 %v841, %v877
    %v880 = vadd.f32 %v842, %v878
    %v881 = vmul.f32 %v860, %v855
    %v882 = vmul.f32 %v864, %v856
    %v883 = vmul.f32 %v870, %v852
    %v884 = vmul.f32 %v874, %v853
    %v885 = vadd.f32 %v881, %v883
    %v886 = vadd.f32 %v882, %v884
    %v887 = vadd.f32 %v849, %v885
    %v888 = vadd.f32 %v850, %v886
    %s889 = scalar_lea.vmem [#allocation11], 48
    %v890 = vld [vmem:[%s889] sm:$0xff]
    %v891 = vld [vmem:[%s889 + $0x8] sm:$0xff]
    %s892 = scalar_lea.vmem [#allocation13], 48
    %v893 = vld [vmem:[%s892] sm:$0xff]
    %v894 = vld [vmem:[%s892 + $0x8] sm:$0xff]
    %v895 = vlaneseq
    %v896 = vshrl.u32 %v895, 7
    %v897 = vsub.s32 3, %v896
    %v898 = vrot.slane %v767, %v897
    %v899 = vlaneseq
    %v900 = vshrl.u32 %v899, 7
    %v901 = vsub.s32 3, %v900
    %v902 = vrot.slane %v768, %v901
    %v903 = vmul.f32 %v898, %v890
    %v904 = vmul.f32 %v902, %v891
    %v905 = vlaneseq
    %v906 = vshrl.u32 %v905, 7
    %v907 = vsub.s32 3, %v906
    %v908 = vrot.slane %v775, %v907
    %v909 = vlaneseq
    %v910 = vshrl.u32 %v909, 7
    %v911 = vsub.s32 3, %v910
    %v912 = vrot.slane %v776, %v911
    %v913 = vmul.f32 %v908, %v893
    %v914 = vmul.f32 %v912, %v894
    %v915 = vsub.f32 %v903, %v913
    %v916 = vsub.f32 %v904, %v914
    %v917 = vadd.f32 %v879, %v915
    %v918 = vadd.f32 %v880, %v916
    %v919 = vmul.f32 %v898, %v893
    %v920 = vmul.f32 %v902, %v894
    %v921 = vmul.f32 %v908, %v890
    %v922 = vmul.f32 %v912, %v891
    %v923 = vadd.f32 %v919, %v921
    %v924 = vadd.f32 %v920, %v922
    %v925 = vadd.f32 %v887, %v923
    %v926 = vadd.f32 %v888, %v924
    %s927 = scalar_lea.vmem [#allocation11], 64
    %v928 = vld [vmem:[%s927] sm:$0xff]
    %v929 = vld [vmem:[%s927 + $0x8] sm:$0xff]
    %s930 = scalar_lea.vmem [#allocation13], 64
    %v931 = vld [vmem:[%s930] sm:$0xff]
    %v932 = vld [vmem:[%s930 + $0x8] sm:$0xff]
    %v933 = vlaneseq
    %v934 = vshrl.u32 %v933, 7
    %v935 = vsub.s32 4, %v934
    %v936 = vrot.slane %v767, %v935
    %v937 = vlaneseq
    %v938 = vshrl.u32 %v937, 7
    %v939 = vsub.s32 4, %v938
    %v940 = vrot.slane %v768, %v939
    %v941 = vmul.f32 %v936, %v928
    %v942 = vmul.f32 %v940, %v929
    %v943 = vlaneseq
    %v944 = vshrl.u32 %v943, 7
    %v945 = vsub.s32 4, %v944
    %v946 = vrot.slane %v775, %v945
    %v947 = vlaneseq
    %v948 = vshrl.u32 %v947, 7
    %v949 = vsub.s32 4, %v948
    %v950 = vrot.slane %v776, %v949
    %v951 = vmul.f32 %v946, %v931
    %v952 = vmul.f32 %v950, %v932
    %v953 = vsub.f32 %v941, %v951
    %v954 = vsub.f32 %v942, %v952
    %v955 = vadd.f32 %v917, %v953
    %v956 = vadd.f32 %v918, %v954
    %v957 = vmul.f32 %v936, %v931
    %v958 = vmul.f32 %v940, %v932
    %v959 = vmul.f32 %v946, %v928
    %v960 = vmul.f32 %v950, %v929
    %v961 = vadd.f32 %v957, %v959
    %v962 = vadd.f32 %v958, %v960
    %v963 = vadd.f32 %v925, %v961
    %v964 = vadd.f32 %v926, %v962
    %s965 = scalar_lea.vmem [#allocation11], 80
    %v966 = vld [vmem:[%s965] sm:$0xff]
    %v967 = vld [vmem:[%s965 + $0x8] sm:$0xff]
    %s968 = scalar_lea.vmem [#allocation13], 80
    %v969 = vld [vmem:[%s968] sm:$0xff]
    %v970 = vld [vmem:[%s968 + $0x8] sm:$0xff]
    %v971 = vlaneseq
    %v972 = vshrl.u32 %v971, 7
    %v973 = vsub.s32 5, %v972
    %v974 = vrot.slane %v767, %v973
    %v975 = vlaneseq
    %v976 = vshrl.u32 %v975, 7
    %v977 = vsub.s32 5, %v976
    %v978 = vrot.slane %v768, %v977
    %v979 = vmul.f32 %v974, %v966
    %v980 = vmul.f32 %v978, %v967
    %v981 = vlaneseq
    %v982 = vshrl.u32 %v981, 7
    %v983 = vsub.s32 5, %v982
    %v984 = vrot.slane %v775, %v983
    %v985 = vlaneseq
    %v986 = vshrl.u32 %v985, 7
    %v987 = vsub.s32 5, %v986
    %v988 = vrot.slane %v776, %v987
    %v989 = vmul.f32 %v984, %v969
    %v990 = vmul.f32 %v988, %v970
    %v991 = vsub.f32 %v979, %v989
    %v992 = vsub.f32 %v980, %v990
    %v993 = vadd.f32 %v955, %v991
    %v994 = vadd.f32 %v956, %v992
    %v995 = vmul.f32 %v974, %v969
    %v996 = vmul.f32 %v978, %v970
    %v997 = vmul.f32 %v984, %v966
    %v998 = vmul.f32 %v988, %v967
    %v999 = vadd.f32 %v995, %v997
    %v1000 = vadd.f32 %v996, %v998
    %v1001 = vadd.f32 %v963, %v999
    %v1002 = vadd.f32 %v964, %v1000
    %s1003 = scalar_lea.vmem [#allocation11], 96
    %v1004 = vld [vmem:[%s1003] sm:$0xff]
    %v1005 = vld [vmem:[%s1003 + $0x8] sm:$0xff]
    %s1006 = scalar_lea.vmem [#allocation13], 96
    %v1007 = vld [vmem:[%s1006] sm:$0xff]
    %v1008 = vld [vmem:[%s1006 + $0x8] sm:$0xff]
    %v1009 = vlaneseq
    %v1010 = vshrl.u32 %v1009, 7
    %v1011 = vsub.s32 6, %v1010
    %v1012 = vrot.slane %v767, %v1011
    %v1013 = vlaneseq
    %v1014 = vshrl.u32 %v1013, 7
    %v1015 = vsub.s32 6, %v1014
    %v1016 = vrot.slane %v768, %v1015
    %v1017 = vmul.f32 %v1012, %v1004
    %v1018 = vmul.f32 %v1016, %v1005
    %v1019 = vlaneseq
    %v1020 = vshrl.u32 %v1019, 7
    %v1021 = vsub.s32 6, %v1020
    %v1022 = vrot.slane %v775, %v1021
    %v1023 = vlaneseq
    %v1024 = vshrl.u32 %v1023, 7
    %v1025 = vsub.s32 6, %v1024
    %v1026 = vrot.slane %v776, %v1025
    %v1027 = vmul.f32 %v1022, %v1007
    %v1028 = vmul.f32 %v1026, %v1008
    %v1029 = vsub.f32 %v1017, %v1027
    %v1030 = vsub.f32 %v1018, %v1028
    %v1031 = vadd.f32 %v993, %v1029
    %v1032 = vadd.f32 %v994, %v1030
    %v1033 = vmul.f32 %v1012, %v1007
    %v1034 = vmul.f32 %v1016, %v1008
    %v1035 = vmul.f32 %v1022, %v1004
    %v1036 = vmul.f32 %v1026, %v1005
    %v1037 = vadd.f32 %v1033, %v1035
    %v1038 = vadd.f32 %v1034, %v1036
    %v1039 = vadd.f32 %v1001, %v1037
    %v1040 = vadd.f32 %v1002, %v1038
    %s1041 = scalar_lea.vmem [#allocation11], 112
    %v1042 = vld [vmem:[%s1041] sm:$0xff]
    %v1043 = vld [vmem:[%s1041 + $0x8] sm:$0xff]
    %s1044 = scalar_lea.vmem [#allocation13], 112
    %v1045 = vld [vmem:[%s1044] sm:$0xff]
    %v1046 = vld [vmem:[%s1044 + $0x8] sm:$0xff]
    %v1047 = vlaneseq
    %v1048 = vshrl.u32 %v1047, 7
    %v1049 = vsub.s32 7, %v1048
    %v1050 = vrot.slane %v767, %v1049
    %v1051 = vlaneseq
    %v1052 = vshrl.u32 %v1051, 7
    %v1053 = vsub.s32 7, %v1052
    %v1054 = vrot.slane %v768, %v1053
    %v1055 = vmul.f32 %v1050, %v1042
    %v1056 = vmul.f32 %v1054, %v1043
    %v1057 = vlaneseq
    %v1058 = vshrl.u32 %v1057, 7
    %v1059 = vsub.s32 7, %v1058
    %v1060 = vrot.slane %v775, %v1059
    %v1061 = vlaneseq
    %v1062 = vshrl.u32 %v1061, 7
    %v1063 = vsub.s32 7, %v1062
    %v1064 = vrot.slane %v776, %v1063
    %v1065 = vmul.f32 %v1060, %v1045
    %v1066 = vmul.f32 %v1064, %v1046
    %v1067 = vsub.f32 %v1055, %v1065
    %v1068 = vsub.f32 %v1056, %v1066
    %v1069 = vadd.f32 %v1031, %v1067
    %v1070 = vadd.f32 %v1032, %v1068
    %v1071 = vmul.f32 %v1050, %v1045
    %v1072 = vmul.f32 %v1054, %v1046
    %v1073 = vmul.f32 %v1060, %v1042
    %v1074 = vmul.f32 %v1064, %v1043
    %v1075 = vadd.f32 %v1071, %v1073
    %v1076 = vadd.f32 %v1072, %v1074
    %v1077 = vadd.f32 %v1039, %v1075
    %v1078 = vadd.f32 %v1040, %v1076
    %v1079 = vld [vmem:[#allocation14] sm:$0xff]
    %v1080 = vld [vmem:[#allocation14 + $0x8] sm:$0xff]
    %v1081 = vld [vmem:[#allocation16] sm:$0xff]
    %v1082 = vld [vmem:[#allocation16 + $0x8] sm:$0xff]
    %v1083 = vlaneseq
    %v1084 = vshrl.u32 %v1083, 7
    %v1085 = vsub.s32 0, %v1084
    %v1086 = vrot.slane %v1069, %v1085
    %v1087 = vlaneseq
    %v1088 = vshrl.u32 %v1087, 7
    %v1089 = vsub.s32 0, %v1088
    %v1090 = vrot.slane %v1070, %v1089
    %v1091 = vmul.f32 %v1086, %v1079
    %v1092 = vmul.f32 %v1090, %v1080
    %v1093 = vlaneseq
    %v1094 = vshrl.u32 %v1093, 7
    %v1095 = vsub.s32 0, %v1094
    %v1096 = vrot.slane %v1077, %v1095
    %v1097 = vlaneseq
    %v1098 = vshrl.u32 %v1097, 7
    %v1099 = vsub.s32 0, %v1098
    %v1100 = vrot.slane %v1078, %v1099
    %v1101 = vmul.f32 %v1096, %v1081
    %v1102 = vmul.f32 %v1100, %v1082
    %v1103 = vsub.f32 %v1091, %v1101
    %v1104 = vsub.f32 %v1092, %v1102
    %v1105 = vadd.f32 %v1103, 0.0
    %v1106 = vadd.f32 %v1104, 0.0
    %v1107 = vmul.f32 %v1086, %v1081
    %v1108 = vmul.f32 %v1090, %v1082
    %v1109 = vmul.f32 %v1096, %v1079
    %v1110 = vmul.f32 %v1100, %v1080
    %v1111 = vadd.f32 %v1107, %v1109
    %v1112 = vadd.f32 %v1108, %v1110
    %v1113 = vadd.f32 %v1111, 0.0
    %v1114 = vadd.f32 %v1112, 0.0
    %s1115 = scalar_lea.vmem [#allocation14], 16
    %v1116 = vld [vmem:[%s1115] sm:$0xff]
    %v1117 = vld [vmem:[%s1115 + $0x8] sm:$0xff]
    %s1118 = scalar_lea.vmem [#allocation16], 16
    %v1119 = vld [vmem:[%s1118] sm:$0xff]
    %v1120 = vld [vmem:[%s1118 + $0x8] sm:$0xff]
    %v1121 = vlaneseq
    %v1122 = vshrl.u32 %v1121, 7
    %v1123 = vsub.s32 1, %v1122
    %v1124 = vrot.slane %v1069, %v1123
    %v1125 = vlaneseq
    %v1126 = vshrl.u32 %v1125, 7
    %v1127 = vsub.s32 1, %v1126
    %v1128 = vrot.slane %v1070, %v1127
    %v1129 = vmul.f32 %v1124, %v1116
    %v1130 = vmul.f32 %v1128, %v1117
    %v1131 = vlaneseq
    %v1132 = vshrl.u32 %v1131, 7
    %v1133 = vsub.s32 1, %v1132
    %v1134 = vrot.slane %v1077, %v1133
    %v1135 = vlaneseq
    %v1136 = vshrl.u32 %v1135, 7
    %v1137 = vsub.s32 1, %v1136
    %v1138 = vrot.slane %v1078, %v1137
    %v1139 = vmul.f32 %v1134, %v1119
    %v1140 = vmul.f32 %v1138, %v1120
    %v1141 = vsub.f32 %v1129, %v1139
    %v1142 = vsub.f32 %v1130, %v1140
    %v1143 = vadd.f32 %v1105, %v1141
    %v1144 = vadd.f32 %v1106, %v1142
    %v1145 = vmul.f32 %v1124, %v1119
    %v1146 = vmul.f32 %v1128, %v1120
    %v1147 = vmul.f32 %v1134, %v1116
    %v1148 = vmul.f32 %v1138, %v1117
    %v1149 = vadd.f32 %v1145, %v1147
    %v1150 = vadd.f32 %v1146, %v1148
    %v1151 = vadd.f32 %v1113, %v1149
    %v1152 = vadd.f32 %v1114, %v1150
    %s1153 = scalar_lea.vmem [#allocation14], 32
    %v1154 = vld [vmem:[%s1153] sm:$0xff]
    %v1155 = vld [vmem:[%s1153 + $0x8] sm:$0xff]
    %s1156 = scalar_lea.vmem [#allocation16], 32
    %v1157 = vld [vmem:[%s1156] sm:$0xff]
    %v1158 = vld [vmem:[%s1156 + $0x8] sm:$0xff]
    %v1159 = vlaneseq
    %v1160 = vshrl.u32 %v1159, 7
    %v1161 = vsub.s32 2, %v1160
    %v1162 = vrot.slane %v1069, %v1161
    %v1163 = vlaneseq
    %v1164 = vshrl.u32 %v1163, 7
    %v1165 = vsub.s32 2, %v1164
    %v1166 = vrot.slane %v1070, %v1165
    %v1167 = vmul.f32 %v1162, %v1154
    %v1168 = vmul.f32 %v1166, %v1155
    %v1169 = vlaneseq
    %v1170 = vshrl.u32 %v1169, 7
    %v1171 = vsub.s32 2, %v1170
    %v1172 = vrot.slane %v1077, %v1171
    %v1173 = vlaneseq
    %v1174 = vshrl.u32 %v1173, 7
    %v1175 = vsub.s32 2, %v1174
    %v1176 = vrot.slane %v1078, %v1175
    %v1177 = vmul.f32 %v1172, %v1157
    %v1178 = vmul.f32 %v1176, %v1158
    %v1179 = vsub.f32 %v1167, %v1177
    %v1180 = vsub.f32 %v1168, %v1178
    %v1181 = vadd.f32 %v1143, %v1179
    %v1182 = vadd.f32 %v1144, %v1180
    %v1183 = vmul.f32 %v1162, %v1157
    %v1184 = vmul.f32 %v1166, %v1158
    %v1185 = vmul.f32 %v1172, %v1154
    %v1186 = vmul.f32 %v1176, %v1155
    %v1187 = vadd.f32 %v1183, %v1185
    %v1188 = vadd.f32 %v1184, %v1186
    %v1189 = vadd.f32 %v1151, %v1187
    %v1190 = vadd.f32 %v1152, %v1188
    %s1191 = scalar_lea.vmem [#allocation14], 48
    %v1192 = vld [vmem:[%s1191] sm:$0xff]
    %v1193 = vld [vmem:[%s1191 + $0x8] sm:$0xff]
    %s1194 = scalar_lea.vmem [#allocation16], 48
    %v1195 = vld [vmem:[%s1194] sm:$0xff]
    %v1196 = vld [vmem:[%s1194 + $0x8] sm:$0xff]
    %v1197 = vlaneseq
    %v1198 = vshrl.u32 %v1197, 7
    %v1199 = vsub.s32 3, %v1198
    %v1200 = vrot.slane %v1069, %v1199
    %v1201 = vlaneseq
    %v1202 = vshrl.u32 %v1201, 7
    %v1203 = vsub.s32 3, %v1202
    %v1204 = vrot.slane %v1070, %v1203
    %v1205 = vmul.f32 %v1200, %v1192
    %v1206 = vmul.f32 %v1204, %v1193
    %v1207 = vlaneseq
    %v1208 = vshrl.u32 %v1207, 7
    %v1209 = vsub.s32 3, %v1208
    %v1210 = vrot.slane %v1077, %v1209
    %v1211 = vlaneseq
    %v1212 = vshrl.u32 %v1211, 7
    %v1213 = vsub.s32 3, %v1212
    %v1214 = vrot.slane %v1078, %v1213
    %v1215 = vmul.f32 %v1210, %v1195
    %v1216 = vmul.f32 %v1214, %v1196
    %v1217 = vsub.f32 %v1205, %v1215
    %v1218 = vsub.f32 %v1206, %v1216
    %v1219 = vadd.f32 %v1181, %v1217
    %v1220 = vadd.f32 %v1182, %v1218
    %v1221 = vmul.f32 %v1200, %v1195
    %v1222 = vmul.f32 %v1204, %v1196
    %v1223 = vmul.f32 %v1210, %v1192
    %v1224 = vmul.f32 %v1214, %v1193
    %v1225 = vadd.f32 %v1221, %v1223
    %v1226 = vadd.f32 %v1222, %v1224
    %v1227 = vadd.f32 %v1189, %v1225
    %v1228 = vadd.f32 %v1190, %v1226
    %s1229 = scalar_lea.vmem [#allocation14], 64
    %v1230 = vld [vmem:[%s1229] sm:$0xff]
    %v1231 = vld [vmem:[%s1229 + $0x8] sm:$0xff]
    %s1232 = scalar_lea.vmem [#allocation16], 64
    %v1233 = vld [vmem:[%s1232] sm:$0xff]
    %v1234 = vld [vmem:[%s1232 + $0x8] sm:$0xff]
    %v1235 = vlaneseq
    %v1236 = vshrl.u32 %v1235, 7
    %v1237 = vsub.s32 4, %v1236
    %v1238 = vrot.slane %v1069, %v1237
    %v1239 = vlaneseq
    %v1240 = vshrl.u32 %v1239, 7
    %v1241 = vsub.s32 4, %v1240
    %v1242 = vrot.slane %v1070, %v1241
    %v1243 = vmul.f32 %v1238, %v1230
    %v1244 = vmul.f32 %v1242, %v1231
    %v1245 = vlaneseq
    %v1246 = vshrl.u32 %v1245, 7
    %v1247 = vsub.s32 4, %v1246
    %v1248 = vrot.slane %v1077, %v1247
    %v1249 = vlaneseq
    %v1250 = vshrl.u32 %v1249, 7
    %v1251 = vsub.s32 4, %v1250
    %v1252 = vrot.slane %v1078, %v1251
    %v1253 = vmul.f32 %v1248, %v1233
    %v1254 = vmul.f32 %v1252, %v1234
    %v1255 = vsub.f32 %v1243, %v1253
    %v1256 = vsub.f32 %v1244, %v1254
    %v1257 = vadd.f32 %v1219, %v1255
    %v1258 = vadd.f32 %v1220, %v1256
    %v1259 = vmul.f32 %v1238, %v1233
    %v1260 = vmul.f32 %v1242, %v1234
    %v1261 = vmul.f32 %v1248, %v1230
    %v1262 = vmul.f32 %v1252, %v1231
    %v1263 = vadd.f32 %v1259, %v1261
    %v1264 = vadd.f32 %v1260, %v1262
    %v1265 = vadd.f32 %v1227, %v1263
    %v1266 = vadd.f32 %v1228, %v1264
    %s1267 = scalar_lea.vmem [#allocation14], 80
    %v1268 = vld [vmem:[%s1267] sm:$0xff]
    %v1269 = vld [vmem:[%s1267 + $0x8] sm:$0xff]
    %s1270 = scalar_lea.vmem [#allocation16], 80
    %v1271 = vld [vmem:[%s1270] sm:$0xff]
    %v1272 = vld [vmem:[%s1270 + $0x8] sm:$0xff]
    %v1273 = vlaneseq
    %v1274 = vshrl.u32 %v1273, 7
    %v1275 = vsub.s32 5, %v1274
    %v1276 = vrot.slane %v1069, %v1275
    %v1277 = vlaneseq
    %v1278 = vshrl.u32 %v1277, 7
    %v1279 = vsub.s32 5, %v1278
    %v1280 = vrot.slane %v1070, %v1279
    %v1281 = vmul.f32 %v1276, %v1268
    %v1282 = vmul.f32 %v1280, %v1269
    %v1283 = vlaneseq
    %v1284 = vshrl.u32 %v1283, 7
    %v1285 = vsub.s32 5, %v1284
    %v1286 = vrot.slane %v1077, %v1285
    %v1287 = vlaneseq
    %v1288 = vshrl.u32 %v1287, 7
    %v1289 = vsub.s32 5, %v1288
    %v1290 = vrot.slane %v1078, %v1289
    %v1291 = vmul.f32 %v1286, %v1271
    %v1292 = vmul.f32 %v1290, %v1272
    %v1293 = vsub.f32 %v1281, %v1291
    %v1294 = vsub.f32 %v1282, %v1292
    %v1295 = vadd.f32 %v1257, %v1293
    %v1296 = vadd.f32 %v1258, %v1294
    %v1297 = vmul.f32 %v1276, %v1271
    %v1298 = vmul.f32 %v1280, %v1272
    %v1299 = vmul.f32 %v1286, %v1268
    %v1300 = vmul.f32 %v1290, %v1269
    %v1301 = vadd.f32 %v1297, %v1299
    %v1302 = vadd.f32 %v1298, %v1300
    %v1303 = vadd.f32 %v1265, %v1301
    %v1304 = vadd.f32 %v1266, %v1302
    %s1305 = scalar_lea.vmem [#allocation14], 96
    %v1306 = vld [vmem:[%s1305] sm:$0xff]
    %v1307 = vld [vmem:[%s1305 + $0x8] sm:$0xff]
    %s1308 = scalar_lea.vmem [#allocation16], 96
    %v1309 = vld [vmem:[%s1308] sm:$0xff]
    %v1310 = vld [vmem:[%s1308 + $0x8] sm:$0xff]
    %v1311 = vlaneseq
    %v1312 = vshrl.u32 %v1311, 7
    %v1313 = vsub.s32 6, %v1312
    %v1314 = vrot.slane %v1069, %v1313
    %v1315 = vlaneseq
    %v1316 = vshrl.u32 %v1315, 7
    %v1317 = vsub.s32 6, %v1316
    %v1318 = vrot.slane %v1070, %v1317
    %v1319 = vmul.f32 %v1314, %v1306
    %v1320 = vmul.f32 %v1318, %v1307
    %v1321 = vlaneseq
    %v1322 = vshrl.u32 %v1321, 7
    %v1323 = vsub.s32 6, %v1322
    %v1324 = vrot.slane %v1077, %v1323
    %v1325 = vlaneseq
    %v1326 = vshrl.u32 %v1325, 7
    %v1327 = vsub.s32 6, %v1326
    %v1328 = vrot.slane %v1078, %v1327
    %v1329 = vmul.f32 %v1324, %v1309
    %v1330 = vmul.f32 %v1328, %v1310
    %v1331 = vsub.f32 %v1319, %v1329
    %v1332 = vsub.f32 %v1320, %v1330
    %v1333 = vadd.f32 %v1295, %v1331
    %v1334 = vadd.f32 %v1296, %v1332
    %v1335 = vmul.f32 %v1314, %v1309
    %v1336 = vmul.f32 %v1318, %v1310
    %v1337 = vmul.f32 %v1324, %v1306
    %v1338 = vmul.f32 %v1328, %v1307
    %v1339 = vadd.f32 %v1335, %v1337
    %v1340 = vadd.f32 %v1336, %v1338
    %v1341 = vadd.f32 %v1303, %v1339
    %v1342 = vadd.f32 %v1304, %v1340
    %s1343 = scalar_lea.vmem [#allocation14], 112
    %v1344 = vld [vmem:[%s1343] sm:$0xff]
    %v1345 = vld [vmem:[%s1343 + $0x8] sm:$0xff]
    %s1346 = scalar_lea.vmem [#allocation16], 112
    %v1347 = vld [vmem:[%s1346] sm:$0xff]
    %v1348 = vld [vmem:[%s1346 + $0x8] sm:$0xff]
    %v1349 = vlaneseq
    %v1350 = vshrl.u32 %v1349, 7
    %v1351 = vsub.s32 7, %v1350
    %v1352 = vrot.slane %v1069, %v1351
    %v1353 = vlaneseq
    %v1354 = vshrl.u32 %v1353, 7
    %v1355 = vsub.s32 7, %v1354
    %v1356 = vrot.slane %v1070, %v1355
    %v1357 = vmul.f32 %v1352, %v1344
    %v1358 = vmul.f32 %v1356, %v1345
    %v1359 = vlaneseq
    %v1360 = vshrl.u32 %v1359, 7
    %v1361 = vsub.s32 7, %v1360
    %v1362 = vrot.slane %v1077, %v1361
    %v1363 = vlaneseq
    %v1364 = vshrl.u32 %v1363, 7
    %v1365 = vsub.s32 7, %v1364
    %v1366 = vrot.slane %v1078, %v1365
    %v1367 = vmul.f32 %v1362, %v1347
    %v1368 = vmul.f32 %v1366, %v1348
    %v1369 = vsub.f32 %v1357, %v1367
    %v1370 = vsub.f32 %v1358, %v1368
    %v1371 = vadd.f32 %v1333, %v1369
    %v1372 = vadd.f32 %v1334, %v1370
    %v1373 = vmul.f32 %v1352, %v1347
    %v1374 = vmul.f32 %v1356, %v1348
    %v1375 = vmul.f32 %v1362, %v1344
    %v1376 = vmul.f32 %v1366, %v1345
    %v1377 = vadd.f32 %v1373, %v1375
    %v1378 = vadd.f32 %v1374, %v1376
    %v1379 = vadd.f32 %v1341, %v1377
    %v1380 = vadd.f32 %v1342, %v1378
    %v1381 = vlaneseq
    %v1382 = vshrl.u32 %v1381, 7
    %v1383 = vsub.s32 4, %v1382
    %v1384 = vrot.slane %v580, %v1383
    %v1385 = vlaneseq
    %v1386 = vshrl.u32 %v1385, 7
    %v1387 = vsub.s32 4, %v1386
    %v1388 = vrot.slane %v582, %v1387
    %v1389 = vmul.f32 %v1384, %v627
    %v1390 = vmul.f32 %v1388, %v628
    %v1391 = vlaneseq
    %v1392 = vshrl.u32 %v1391, 7
    %v1393 = vsub.s32 4, %v1392
    %v1394 = vrot.slane %v621, %v1393
    %v1395 = vlaneseq
    %v1396 = vshrl.u32 %v1395, 7
    %v1397 = vsub.s32 4, %v1396
    %v1398 = vrot.slane %v623, %v1397
    %v1399 = vmul.f32 %v1394, %v629
    %v1400 = vmul.f32 %v1398, %v630
    %v1401 = vsub.f32 %v1389, %v1399
    %v1402 = vsub.f32 %v1390, %v1400
    %v1403 = vadd.f32 %v1401, 0.0
    %v1404 = vadd.f32 %v1402, 0.0
    %v1405 = vmul.f32 %v1384, %v629
    %v1406 = vmul.f32 %v1388, %v630
    %v1407 = vmul.f32 %v1394, %v627
    %v1408 = vmul.f32 %v1398, %v628
    %v1409 = vadd.f32 %v1405, %v1407
    %v1410 = vadd.f32 %v1406, %v1408
    %v1411 = vadd.f32 %v1409, 0.0
    %v1412 = vadd.f32 %v1410, 0.0
    %v1413 = vlaneseq
    %v1414 = vshrl.u32 %v1413, 7
    %v1415 = vsub.s32 5, %v1414
    %v1416 = vrot.slane %v580, %v1415
    %v1417 = vlaneseq
    %v1418 = vshrl.u32 %v1417, 7
    %v1419 = vsub.s32 5, %v1418
    %v1420 = vrot.slane %v582, %v1419
    %v1421 = vmul.f32 %v1416, %v664
    %v1422 = vmul.f32 %v1420, %v665
    %v1423 = vlaneseq
    %v1424 = vshrl.u32 %v1423, 7
    %v1425 = vsub.s32 5, %v1424
    %v1426 = vrot.slane %v621, %v1425
    %v1427 = vlaneseq
    %v1428 = vshrl.u32 %v1427, 7
    %v1429 = vsub.s32 5, %v1428
    %v1430 = vrot.slane %v623, %v1429
    %v1431 = vmul.f32 %v1426, %v667
    %v1432 = vmul.f32 %v1430, %v668
    %v1433 = vsub.f32 %v1421, %v1431
    %v1434 = vsub.f32 %v1422, %v1432
    %v1435 = vadd.f32 %v1403, %v1433
    %v1436 = vadd.f32 %v1404, %v1434
    %v1437 = vmul.f32 %v1416, %v667
    %v1438 = vmul.f32 %v1420, %v668
    %v1439 = vmul.f32 %v1426, %v664
    %v1440 = vmul.f32 %v1430, %v665
    %v1441 = vadd.f32 %v1437, %v1439
    %v1442 = vadd.f32 %v1438, %v1440
    %v1443 = vadd.f32 %v1411, %v1441
    %v1444 = vadd.f32 %v1412, %v1442
    %v1445 = vlaneseq
    %v1446 = vshrl.u32 %v1445, 7
    %v1447 = vsub.s32 6, %v1446
    %v1448 = vrot.slane %v580, %v1447
    %v1449 = vlaneseq
    %v1450 = vshrl.u32 %v1449, 7
    %v1451 = vsub.s32 6, %v1450
    %v1452 = vrot.slane %v582, %v1451
    %v1453 = vmul.f32 %v1448, %v702
    %v1454 = vmul.f32 %v1452, %v703
    %v1455 = vlaneseq
    %v1456 = vshrl.u32 %v1455, 7
    %v1457 = vsub.s32 6, %v1456
    %v1458 = vrot.slane %v621, %v1457
    %v1459 = vlaneseq
    %v1460 = vshrl.u32 %v1459, 7
    %v1461 = vsub.s32 6, %v1460
    %v1462 = vrot.slane %v623, %v1461
    %v1463 = vmul.f32 %v1458, %v705
    %v1464 = vmul.f32 %v1462, %v706
    %v1465 = vsub.f32 %v1453, %v1463
    %v1466 = vsub.f32 %v1454, %v1464
    %v1467 = vadd.f32 %v1435, %v1465
    %v1468 = vadd.f32 %v1436, %v1466
    %v1469 = vmul.f32 %v1448, %v705
    %v1470 = vmul.f32 %v1452, %v706
    %v1471 = vmul.f32 %v1458, %v702
    %v1472 = vmul.f32 %v1462, %v703
    %v1473 = vadd.f32 %v1469, %v1471
    %v1474 = vadd.f32 %v1470, %v1472
    %v1475 = vadd.f32 %v1443, %v1473
    %v1476 = vadd.f32 %v1444, %v1474
    %v1477 = vlaneseq
    %v1478 = vshrl.u32 %v1477, 7
    %v1479 = vsub.s32 7, %v1478
    %v1480 = vrot.slane %v580, %v1479
    %v1481 = vlaneseq
    %v1482 = vshrl.u32 %v1481, 7
    %v1483 = vsub.s32 7, %v1482
    %v1484 = vrot.slane %v582, %v1483
    %v1485 = vmul.f32 %v1480, %v740
    %v1486 = vmul.f32 %v1484, %v741
    %v1487 = vlaneseq
    %v1488 = vshrl.u32 %v1487, 7
    %v1489 = vsub.s32 7, %v1488
    %v1490 = vrot.slane %v621, %v1489
    %v1491 = vlaneseq
    %v1492 = vshrl.u32 %v1491, 7
    %v1493 = vsub.s32 7, %v1492
    %v1494 = vrot.slane %v623, %v1493
    %v1495 = vmul.f32 %v1490, %v743
    %v1496 = vmul.f32 %v1494, %v744
    %v1497 = vsub.f32 %v1485, %v1495
    %v1498 = vsub.f32 %v1486, %v1496
    %v1499 = vadd.f32 %v1467, %v1497
    %v1500 = vadd.f32 %v1468, %v1498
    %v1501 = vmul.f32 %v1480, %v743
    %v1502 = vmul.f32 %v1484, %v744
    %v1503 = vmul.f32 %v1490, %v740
    %v1504 = vmul.f32 %v1494, %v741
    %v1505 = vadd.f32 %v1501, %v1503
    %v1506 = vadd.f32 %v1502, %v1504
    %v1507 = vadd.f32 %v1475, %v1505
    %v1508 = vadd.f32 %v1476, %v1506
    %v1509 = vlaneseq
    %v1510 = vshrl.u32 %v1509, 7
    %v1511 = vsub.s32 0, %v1510
    %v1512 = vrot.slane %v1499, %v1511
    %v1513 = vlaneseq
    %v1514 = vshrl.u32 %v1513, 7
    %v1515 = vsub.s32 0, %v1514
    %v1516 = vrot.slane %v1500, %v1515
    %v1517 = vmul.f32 %v1512, %v777
    %v1518 = vmul.f32 %v1516, %v778
    %v1519 = vlaneseq
    %v1520 = vshrl.u32 %v1519, 7
    %v1521 = vsub.s32 0, %v1520
    %v1522 = vrot.slane %v1507, %v1521
    %v1523 = vlaneseq
    %v1524 = vshrl.u32 %v1523, 7
    %v1525 = vsub.s32 0, %v1524
    %v1526 = vrot.slane %v1508, %v1525
    %v1527 = vmul.f32 %v1522, %v779
    %v1528 = vmul.f32 %v1526, %v780
    %v1529 = vsub.f32 %v1517, %v1527
    %v1530 = vsub.f32 %v1518, %v1528
    %v1531 = vadd.f32 %v1529, 0.0
    %v1532 = vadd.f32 %v1530, 0.0
    %v1533 = vmul.f32 %v1512, %v779
    %v1534 = vmul.f32 %v1516, %v780
    %v1535 = vmul.f32 %v1522, %v777
    %v1536 = vmul.f32 %v1526, %v778
    %v1537 = vadd.f32 %v1533, %v1535
    %v1538 = vadd.f32 %v1534, %v1536
    %v1539 = vadd.f32 %v1537, 0.0
    %v1540 = vadd.f32 %v1538, 0.0
    %v1541 = vlaneseq
    %v1542 = vshrl.u32 %v1541, 7
    %v1543 = vsub.s32 1, %v1542
    %v1544 = vrot.slane %v1499, %v1543
    %v1545 = vlaneseq
    %v1546 = vshrl.u32 %v1545, 7
    %v1547 = vsub.s32 1, %v1546
    %v1548 = vrot.slane %v1500, %v1547
    %v1549 = vmul.f32 %v1544, %v814
    %v1550 = vmul.f32 %v1548, %v815
    %v1551 = vlaneseq
    %v1552 = vshrl.u32 %v1551, 7
    %v1553 = vsub.s32 1, %v1552
    %v1554 = vrot.slane %v1507, %v1553
    %v1555 = vlaneseq
    %v1556 = vshrl.u32 %v1555, 7
    %v1557 = vsub.s32 1, %v1556
    %v1558 = vrot.slane %v1508, %v1557
    %v1559 = vmul.f32 %v1554, %v817
    %v1560 = vmul.f32 %v1558, %v818
    %v1561 = vsub.f32 %v1549, %v1559
    %v1562 = vsub.f32 %v1550, %v1560
    %v1563 = vadd.f32 %v1531, %v1561
    %v1564 = vadd.f32 %v1532, %v1562
    %v1565 = vmul.f32 %v1544, %v817
    %v1566 = vmul.f32 %v1548, %v818
    %v1567 = vmul.f32 %v1554, %v814
    %v1568 = vmul.f32 %v1558, %v815
    %v1569 = vadd.f32 %v1565, %v1567
    %v1570 = vadd.f32 %v1566, %v1568
    %v1571 = vadd.f32 %v1539, %v1569
    %v1572 = vadd.f32 %v1540, %v1570
    %v1573 = vlaneseq
    %v1574 = vshrl.u32 %v1573, 7
    %v1575 = vsub.s32 2, %v1574
    %v1576 = vrot.slane %v1499, %v1575
    %v1577 = vlaneseq
    %v1578 = vshrl.u32 %v1577, 7
    %v1579 = vsub.s32 2, %v1578
    %v1580 = vrot.slane %v1500, %v1579
    %v1581 = vmul.f32 %v1576, %v852
    %v1582 = vmul.f32 %v1580, %v853
    %v1583 = vlaneseq
    %v1584 = vshrl.u32 %v1583, 7
    %v1585 = vsub.s32 2, %v1584
    %v1586 = vrot.slane %v1507, %v1585
    %v1587 = vlaneseq
    %v1588 = vshrl.u32 %v1587, 7
    %v1589 = vsub.s32 2, %v1588
    %v1590 = vrot.slane %v1508, %v1589
    %v1591 = vmul.f32 %v1586, %v855
    %v1592 = vmul.f32 %v1590, %v856
    %v1593 = vsub.f32 %v1581, %v1591
    %v1594 = vsub.f32 %v1582, %v1592
    %v1595 = vadd.f32 %v1563, %v1593
    %v1596 = vadd.f32 %v1564, %v1594
    %v1597 = vmul.f32 %v1576, %v855
    %v1598 = vmul.f32 %v1580, %v856
    %v1599 = vmul.f32 %v1586, %v852
    %v1600 = vmul.f32 %v1590, %v853
    %v1601 = vadd.f32 %v1597, %v1599
    %v1602 = vadd.f32 %v1598, %v1600
    %v1603 = vadd.f32 %v1571, %v1601
    %v1604 = vadd.f32 %v1572, %v1602
    %v1605 = vlaneseq
    %v1606 = vshrl.u32 %v1605, 7
    %v1607 = vsub.s32 3, %v1606
    %v1608 = vrot.slane %v1499, %v1607
    %v1609 = vlaneseq
    %v1610 = vshrl.u32 %v1609, 7
    %v1611 = vsub.s32 3, %v1610
    %v1612 = vrot.slane %v1500, %v1611
    %v1613 = vmul.f32 %v1608, %v890
    %v1614 = vmul.f32 %v1612, %v891
    %v1615 = vlaneseq
    %v1616 = vshrl.u32 %v1615, 7
    %v1617 = vsub.s32 3, %v1616
    %v1618 = vrot.slane %v1507, %v1617
    %v1619 = vlaneseq
    %v1620 = vshrl.u32 %v1619, 7
    %v1621 = vsub.s32 3, %v1620
    %v1622 = vrot.slane %v1508, %v1621
    %v1623 = vmul.f32 %v1618, %v893
    %v1624 = vmul.f32 %v1622, %v894
    %v1625 = vsub.f32 %v1613, %v1623
    %v1626 = vsub.f32 %v1614, %v1624
    %v1627 = vadd.f32 %v1595, %v1625
    %v1628 = vadd.f32 %v1596, %v1626
    %v1629 = vmul.f32 %v1608, %v893
    %v1630 = vmul.f32 %v1612, %v894
    %v1631 = vmul.f32 %v1618, %v890
    %v1632 = vmul.f32 %v1622, %v891
    %v1633 = vadd.f32 %v1629, %v1631
    %v1634 = vadd.f32 %v1630, %v1632
    %v1635 = vadd.f32 %v1603, %v1633
    %v1636 = vadd.f32 %v1604, %v1634
    %v1637 = vlaneseq
    %v1638 = vshrl.u32 %v1637, 7
    %v1639 = vsub.s32 4, %v1638
    %v1640 = vrot.slane %v1499, %v1639
    %v1641 = vlaneseq
    %v1642 = vshrl.u32 %v1641, 7
    %v1643 = vsub.s32 4, %v1642
    %v1644 = vrot.slane %v1500, %v1643
    %v1645 = vmul.f32 %v1640, %v928
    %v1646 = vmul.f32 %v1644, %v929
    %v1647 = vlaneseq
    %v1648 = vshrl.u32 %v1647, 7
    %v1649 = vsub.s32 4, %v1648
    %v1650 = vrot.slane %v1507, %v1649
    %v1651 = vlaneseq
    %v1652 = vshrl.u32 %v1651, 7
    %v1653 = vsub.s32 4, %v1652
    %v1654 = vrot.slane %v1508, %v1653
    %v1655 = vmul.f32 %v1650, %v931
    %v1656 = vmul.f32 %v1654, %v932
    %v1657 = vsub.f32 %v1645, %v1655
    %v1658 = vsub.f32 %v1646, %v1656
    %v1659 = vadd.f32 %v1627, %v1657
    %v1660 = vadd.f32 %v1628, %v1658
    %v1661 = vmul.f32 %v1640, %v931
    %v1662 = vmul.f32 %v1644, %v932
    %v1663 = vmul.f32 %v1650, %v928
    %v1664 = vmul.f32 %v1654, %v929
    %v1665 = vadd.f32 %v1661, %v1663
    %v1666 = vadd.f32 %v1662, %v1664
    %v1667 = vadd.f32 %v1635, %v1665
    %v1668 = vadd.f32 %v1636, %v1666
    %v1669 = vlaneseq
    %v1670 = vshrl.u32 %v1669, 7
    %v1671 = vsub.s32 5, %v1670
    %v1672 = vrot.slane %v1499, %v1671
    %v1673 = vlaneseq
    %v1674 = vshrl.u32 %v1673, 7
    %v1675 = vsub.s32 5, %v1674
    %v1676 = vrot.slane %v1500, %v1675
    %v1677 = vmul.f32 %v1672, %v966
    %v1678 = vmul.f32 %v1676, %v967
    %v1679 = vlaneseq
    %v1680 = vshrl.u32 %v1679, 7
    %v1681 = vsub.s32 5, %v1680
    %v1682 = vrot.slane %v1507, %v1681
    %v1683 = vlaneseq
    %v1684 = vshrl.u32 %v1683, 7
    %v1685 = vsub.s32 5, %v1684
    %v1686 = vrot.slane %v1508, %v1685
    %v1687 = vmul.f32 %v1682, %v969
    %v1688 = vmul.f32 %v1686, %v970
    %v1689 = vsub.f32 %v1677, %v1687
    %v1690 = vsub.f32 %v1678, %v1688
    %v1691 = vadd.f32 %v1659, %v1689
    %v1692 = vadd.f32 %v1660, %v1690
    %v1693 = vmul.f32 %v1672, %v969
    %v1694 = vmul.f32 %v1676, %v970
    %v1695 = vmul.f32 %v1682, %v966
    %v1696 = vmul.f32 %v1686, %v967
    %v1697 = vadd.f32 %v1693, %v1695
    %v1698 = vadd.f32 %v1694, %v1696
    %v1699 = vadd.f32 %v1667, %v1697
    %v1700 = vadd.f32 %v1668, %v1698
    %v1701 = vlaneseq
    %v1702 = vshrl.u32 %v1701, 7
    %v1703 = vsub.s32 6, %v1702
    %v1704 = vrot.slane %v1499, %v1703
    %v1705 = vlaneseq
    %v1706 = vshrl.u32 %v1705, 7
    %v1707 = vsub.s32 6, %v1706
    %v1708 = vrot.slane %v1500, %v1707
    %v1709 = vmul.f32 %v1704, %v1004
    %v1710 = vmul.f32 %v1708, %v1005
    %v1711 = vlaneseq
    %v1712 = vshrl.u32 %v1711, 7
    %v1713 = vsub.s32 6, %v1712
    %v1714 = vrot.slane %v1507, %v1713
    %v1715 = vlaneseq
    %v1716 = vshrl.u32 %v1715, 7
    %v1717 = vsub.s32 6, %v1716
    %v1718 = vrot.slane %v1508, %v1717
    %v1719 = vmul.f32 %v1714, %v1007
    %v1720 = vmul.f32 %v1718, %v1008
    %v1721 = vsub.f32 %v1709, %v1719
    %v1722 = vsub.f32 %v1710, %v1720
    %v1723 = vadd.f32 %v1691, %v1721
    %v1724 = vadd.f32 %v1692, %v1722
    %v1725 = vmul.f32 %v1704, %v1007
    %v1726 = vmul.f32 %v1708, %v1008
    %v1727 = vmul.f32 %v1714, %v1004
    %v1728 = vmul.f32 %v1718, %v1005
    %v1729 = vadd.f32 %v1725, %v1727
    %v1730 = vadd.f32 %v1726, %v1728
    %v1731 = vadd.f32 %v1699, %v1729
    %v1732 = vadd.f32 %v1700, %v1730
    %v1733 = vlaneseq
    %v1734 = vshrl.u32 %v1733, 7
    %v1735 = vsub.s32 7, %v1734
    %v1736 = vrot.slane %v1499, %v1735
    %v1737 = vlaneseq
    %v1738 = vshrl.u32 %v1737, 7
    %v1739 = vsub.s32 7, %v1738
    %v1740 = vrot.slane %v1500, %v1739
    %v1741 = vmul.f32 %v1736, %v1042
    %v1742 = vmul.f32 %v1740, %v1043
    %v1743 = vlaneseq
    %v1744 = vshrl.u32 %v1743, 7
    %v1745 = vsub.s32 7, %v1744
    %v1746 = vrot.slane %v1507, %v1745
    %v1747 = vlaneseq
    %v1748 = vshrl.u32 %v1747, 7
    %v1749 = vsub.s32 7, %v1748
    %v1750 = vrot.slane %v1508, %v1749
    %v1751 = vmul.f32 %v1746, %v1045
    %v1752 = vmul.f32 %v1750, %v1046
    %v1753 = vsub.f32 %v1741, %v1751
    %v1754 = vsub.f32 %v1742, %v1752
    %v1755 = vadd.f32 %v1723, %v1753
    %v1756 = vadd.f32 %v1724, %v1754
    %v1757 = vmul.f32 %v1736, %v1045
    %v1758 = vmul.f32 %v1740, %v1046
    %v1759 = vmul.f32 %v1746, %v1042
    %v1760 = vmul.f32 %v1750, %v1043
    %v1761 = vadd.f32 %v1757, %v1759
    %v1762 = vadd.f32 %v1758, %v1760
    %v1763 = vadd.f32 %v1731, %v1761
    %v1764 = vadd.f32 %v1732, %v1762
    %v1765 = vlaneseq
    %v1766 = vshrl.u32 %v1765, 7
    %v1767 = vsub.s32 0, %v1766
    %v1768 = vrot.slane %v1755, %v1767
    %v1769 = vlaneseq
    %v1770 = vshrl.u32 %v1769, 7
    %v1771 = vsub.s32 0, %v1770
    %v1772 = vrot.slane %v1756, %v1771
    %v1773 = vmul.f32 %v1768, %v1079
    %v1774 = vmul.f32 %v1772, %v1080
    %v1775 = vlaneseq
    %v1776 = vshrl.u32 %v1775, 7
    %v1777 = vsub.s32 0, %v1776
    %v1778 = vrot.slane %v1763, %v1777
    %v1779 = vlaneseq
    %v1780 = vshrl.u32 %v1779, 7
    %v1781 = vsub.s32 0, %v1780
    %v1782 = vrot.slane %v1764, %v1781
    %v1783 = vmul.f32 %v1778, %v1081
    %v1784 = vmul.f32 %v1782, %v1082
    %v1785 = vsub.f32 %v1773, %v1783
    %v1786 = vsub.f32 %v1774, %v1784
    %v1787 = vadd.f32 %v1785, 0.0
    %v1788 = vadd.f32 %v1786, 0.0
    %v1789 = vmul.f32 %v1768, %v1081
    %v1790 = vmul.f32 %v1772, %v1082
    %v1791 = vmul.f32 %v1778, %v1079
    %v1792 = vmul.f32 %v1782, %v1080
    %v1793 = vadd.f32 %v1789, %v1791
    %v1794 = vadd.f32 %v1790, %v1792
    %v1795 = vadd.f32 %v1793, 0.0
    %v1796 = vadd.f32 %v1794, 0.0
    %v1797 = vlaneseq
    %v1798 = vshrl.u32 %v1797, 7
    %v1799 = vsub.s32 1, %v1798
    %v1800 = vrot.slane %v1755, %v1799
    %v1801 = vlaneseq
    %v1802 = vshrl.u32 %v1801, 7
    %v1803 = vsub.s32 1, %v1802
    %v1804 = vrot.slane %v1756, %v1803
    %v1805 = vmul.f32 %v1800, %v1116
    %v1806 = vmul.f32 %v1804, %v1117
    %v1807 = vlaneseq
    %v1808 = vshrl.u32 %v1807, 7
    %v1809 = vsub.s32 1, %v1808
    %v1810 = vrot.slane %v1763, %v1809
    %v1811 = vlaneseq
    %v1812 = vshrl.u32 %v1811, 7
    %v1813 = vsub.s32 1, %v1812
    %v1814 = vrot.slane %v1764, %v1813
    %v1815 = vmul.f32 %v1810, %v1119
    %v1816 = vmul.f32 %v1814, %v1120
    %v1817 = vsub.f32 %v1805, %v1815
    %v1818 = vsub.f32 %v1806, %v1816
    %v1819 = vadd.f32 %v1787, %v1817
    %v1820 = vadd.f32 %v1788, %v1818
    %v1821 = vmul.f32 %v1800, %v1119
    %v1822 = vmul.f32 %v1804, %v1120
    %v1823 = vmul.f32 %v1810, %v1116
    %v1824 = vmul.f32 %v1814, %v1117
    %v1825 = vadd.f32 %v1821, %v1823
    %v1826 = vadd.f32 %v1822, %v1824
    %v1827 = vadd.f32 %v1795, %v1825
    %v1828 = vadd.f32 %v1796, %v1826
    %v1829 = vlaneseq
    %v1830 = vshrl.u32 %v1829, 7
    %v1831 = vsub.s32 2, %v1830
    %v1832 = vrot.slane %v1755, %v1831
    %v1833 = vlaneseq
    %v1834 = vshrl.u32 %v1833, 7
    %v1835 = vsub.s32 2, %v1834
    %v1836 = vrot.slane %v1756, %v1835
    %v1837 = vmul.f32 %v1832, %v1154
    %v1838 = vmul.f32 %v1836, %v1155
    %v1839 = vlaneseq
    %v1840 = vshrl.u32 %v1839, 7
    %v1841 = vsub.s32 2, %v1840
    %v1842 = vrot.slane %v1763, %v1841
    %v1843 = vlaneseq
    %v1844 = vshrl.u32 %v1843, 7
    %v1845 = vsub.s32 2, %v1844
    %v1846 = vrot.slane %v1764, %v1845
    %v1847 = vmul.f32 %v1842, %v1157
    %v1848 = vmul.f32 %v1846, %v1158
    %v1849 = vsub.f32 %v1837, %v1847
    %v1850 = vsub.f32 %v1838, %v1848
    %v1851 = vadd.f32 %v1819, %v1849
    %v1852 = vadd.f32 %v1820, %v1850
    %v1853 = vmul.f32 %v1832, %v1157
    %v1854 = vmul.f32 %v1836, %v1158
    %v1855 = vmul.f32 %v1842, %v1154
    %v1856 = vmul.f32 %v1846, %v1155
    %v1857 = vadd.f32 %v1853, %v1855
    %v1858 = vadd.f32 %v1854, %v1856
    %v1859 = vadd.f32 %v1827, %v1857
    %v1860 = vadd.f32 %v1828, %v1858
    %v1861 = vlaneseq
    %v1862 = vshrl.u32 %v1861, 7
    %v1863 = vsub.s32 3, %v1862
    %v1864 = vrot.slane %v1755, %v1863
    %v1865 = vlaneseq
    %v1866 = vshrl.u32 %v1865, 7
    %v1867 = vsub.s32 3, %v1866
    %v1868 = vrot.slane %v1756, %v1867
    %v1869 = vmul.f32 %v1864, %v1192
    %v1870 = vmul.f32 %v1868, %v1193
    %v1871 = vlaneseq
    %v1872 = vshrl.u32 %v1871, 7
    %v1873 = vsub.s32 3, %v1872
    %v1874 = vrot.slane %v1763, %v1873
    %v1875 = vlaneseq
    %v1876 = vshrl.u32 %v1875, 7
    %v1877 = vsub.s32 3, %v1876
    %v1878 = vrot.slane %v1764, %v1877
    %v1879 = vmul.f32 %v1874, %v1195
    %v1880 = vmul.f32 %v1878, %v1196
    %v1881 = vsub.f32 %v1869, %v1879
    %v1882 = vsub.f32 %v1870, %v1880
    %v1883 = vadd.f32 %v1851, %v1881
    %v1884 = vadd.f32 %v1852, %v1882
    %v1885 = vmul.f32 %v1864, %v1195
    %v1886 = vmul.f32 %v1868, %v1196
    %v1887 = vmul.f32 %v1874, %v1192
    %v1888 = vmul.f32 %v1878, %v1193
    %v1889 = vadd.f32 %v1885, %v1887
    %v1890 = vadd.f32 %v1886, %v1888
    %v1891 = vadd.f32 %v1859, %v1889
    %v1892 = vadd.f32 %v1860, %v1890
    %v1893 = vlaneseq
    %v1894 = vshrl.u32 %v1893, 7
    %v1895 = vsub.s32 4, %v1894
    %v1896 = vrot.slane %v1755, %v1895
    %v1897 = vlaneseq
    %v1898 = vshrl.u32 %v1897, 7
    %v1899 = vsub.s32 4, %v1898
    %v1900 = vrot.slane %v1756, %v1899
    %v1901 = vmul.f32 %v1896, %v1230
    %v1902 = vmul.f32 %v1900, %v1231
    %v1903 = vlaneseq
    %v1904 = vshrl.u32 %v1903, 7
    %v1905 = vsub.s32 4, %v1904
    %v1906 = vrot.slane %v1763, %v1905
    %v1907 = vlaneseq
    %v1908 = vshrl.u32 %v1907, 7
    %v1909 = vsub.s32 4, %v1908
    %v1910 = vrot.slane %v1764, %v1909
    %v1911 = vmul.f32 %v1906, %v1233
    %v1912 = vmul.f32 %v1910, %v1234
    %v1913 = vsub.f32 %v1901, %v1911
    %v1914 = vsub.f32 %v1902, %v1912
    %v1915 = vadd.f32 %v1883, %v1913
    %v1916 = vadd.f32 %v1884, %v1914
    %v1917 = vmul.f32 %v1896, %v1233
    %v1918 = vmul.f32 %v1900, %v1234
    %v1919 = vmul.f32 %v1906, %v1230
    %v1920 = vmul.f32 %v1910, %v1231
    %v1921 = vadd.f32 %v1917, %v1919
    %v1922 = vadd.f32 %v1918, %v1920
    %v1923 = vadd.f32 %v1891, %v1921
    %v1924 = vadd.f32 %v1892, %v1922
    %v1925 = vlaneseq
    %v1926 = vshrl.u32 %v1925, 7
    %v1927 = vsub.s32 5, %v1926
    %v1928 = vrot.slane %v1755, %v1927
    %v1929 = vlaneseq
    %v1930 = vshrl.u32 %v1929, 7
    %v1931 = vsub.s32 5, %v1930
    %v1932 = vrot.slane %v1756, %v1931
    %v1933 = vmul.f32 %v1928, %v1268
    %v1934 = vmul.f32 %v1932, %v1269
    %v1935 = vlaneseq
    %v1936 = vshrl.u32 %v1935, 7
    %v1937 = vsub.s32 5, %v1936
    %v1938 = vrot.slane %v1763, %v1937
    %v1939 = vlaneseq
    %v1940 = vshrl.u32 %v1939, 7
    %v1941 = vsub.s32 5, %v1940
    %v1942 = vrot.slane %v1764, %v1941
    %v1943 = vmul.f32 %v1938, %v1271
    %v1944 = vmul.f32 %v1942, %v1272
    %v1945 = vsub.f32 %v1933, %v1943
    %v1946 = vsub.f32 %v1934, %v1944
    %v1947 = vadd.f32 %v1915, %v1945
    %v1948 = vadd.f32 %v1916, %v1946
    %v1949 = vmul.f32 %v1928, %v1271
    %v1950 = vmul.f32 %v1932, %v1272
    %v1951 = vmul.f32 %v1938, %v1268
    %v1952 = vmul.f32 %v1942, %v1269
    %v1953 = vadd.f32 %v1949, %v1951
    %v1954 = vadd.f32 %v1950, %v1952
    %v1955 = vadd.f32 %v1923, %v1953
    %v1956 = vadd.f32 %v1924, %v1954
    %v1957 = vlaneseq
    %v1958 = vshrl.u32 %v1957, 7
    %v1959 = vsub.s32 6, %v1958
    %v1960 = vrot.slane %v1755, %v1959
    %v1961 = vlaneseq
    %v1962 = vshrl.u32 %v1961, 7
    %v1963 = vsub.s32 6, %v1962
    %v1964 = vrot.slane %v1756, %v1963
    %v1965 = vmul.f32 %v1960, %v1306
    %v1966 = vmul.f32 %v1964, %v1307
    %v1967 = vlaneseq
    %v1968 = vshrl.u32 %v1967, 7
    %v1969 = vsub.s32 6, %v1968
    %v1970 = vrot.slane %v1763, %v1969
    %v1971 = vlaneseq
    %v1972 = vshrl.u32 %v1971, 7
    %v1973 = vsub.s32 6, %v1972
    %v1974 = vrot.slane %v1764, %v1973
    %v1975 = vmul.f32 %v1970, %v1309
    %v1976 = vmul.f32 %v1974, %v1310
    %v1977 = vsub.f32 %v1965, %v1975
    %v1978 = vsub.f32 %v1966, %v1976
    %v1979 = vadd.f32 %v1947, %v1977
    %v1980 = vadd.f32 %v1948, %v1978
    %v1981 = vmul.f32 %v1960, %v1309
    %v1982 = vmul.f32 %v1964, %v1310
    %v1983 = vmul.f32 %v1970, %v1306
    %v1984 = vmul.f32 %v1974, %v1307
    %v1985 = vadd.f32 %v1981, %v1983
    %v1986 = vadd.f32 %v1982, %v1984
    %v1987 = vadd.f32 %v1955, %v1985
    %v1988 = vadd.f32 %v1956, %v1986
    %v1989 = vlaneseq
    %v1990 = vshrl.u32 %v1989, 7
    %v1991 = vsub.s32 7, %v1990
    %v1992 = vrot.slane %v1755, %v1991
    %v1993 = vlaneseq
    %v1994 = vshrl.u32 %v1993, 7
    %v1995 = vsub.s32 7, %v1994
    %v1996 = vrot.slane %v1756, %v1995
    %v1997 = vmul.f32 %v1992, %v1344
    %v1998 = vmul.f32 %v1996, %v1345
    %v1999 = vlaneseq
    %v2000 = vshrl.u32 %v1999, 7
    %v2001 = vsub.s32 7, %v2000
    %v2002 = vrot.slane %v1763, %v2001
    %v2003 = vlaneseq
    %v2004 = vshrl.u32 %v2003, 7
    %v2005 = vsub.s32 7, %v2004
    %v2006 = vrot.slane %v1764, %v2005
    %v2007 = vmul.f32 %v2002, %v1347
    %v2008 = vmul.f32 %v2006, %v1348
    %v2009 = vsub.f32 %v1997, %v2007
    %v2010 = vsub.f32 %v1998, %v2008
    %v2011 = vadd.f32 %v1979, %v2009
    %v2012 = vadd.f32 %v1980, %v2010
    %v2013 = vmul.f32 %v1992, %v1347
    %v2014 = vmul.f32 %v1996, %v1348
    %v2015 = vmul.f32 %v2002, %v1344
    %v2016 = vmul.f32 %v2006, %v1345
    %v2017 = vadd.f32 %v2013, %v2015
    %v2018 = vadd.f32 %v2014, %v2016
    %v2019 = vadd.f32 %v1987, %v2017
    %v2020 = vadd.f32 %v1988, %v2018
    %v2021 = vpack.c.bf16 %v2011, %v1371
    %v2022 = vpack.c.bf16 %v2012, %v1372
    %v2023 = vpack.c.bf16 %v2019, %v1379
    %v2024 = vpack.c.bf16 %v2020, %v1380
    %v2025 = vld [vmem:[#allocation7] sm:$0xff]
    %v2026 = vld [vmem:[#allocation7 + $0x8] sm:$0xff]
    %v2027 = vld [vmem:[#allocation7 + $0x10] sm:$0xff]
    %v2028 = vld [vmem:[#allocation7 + $0x18] sm:$0xff]
    %v2029 = vld [vmem:[#allocation7 + $0x20] sm:$0xff]
    %v2030 = vld [vmem:[#allocation7 + $0x28] sm:$0xff]
    %v2031 = vld [vmem:[#allocation7 + $0x30] sm:$0xff]
    %v2032 = vld [vmem:[#allocation7 + $0x38] sm:$0xff]
    %v2033 = vld [vmem:[#allocation7 + $0x40] sm:$0xff]
    %v2034 = vld [vmem:[#allocation7 + $0x48] sm:$0xff]
    %v2035 = vld [vmem:[#allocation7 + $0x50] sm:$0xff]
    %v2036 = vld [vmem:[#allocation7 + $0x58] sm:$0xff]
    %v2037 = vld [vmem:[#allocation7 + $0x60] sm:$0xff]
    %v2038 = vld [vmem:[#allocation7 + $0x68] sm:$0xff]
    %v2039 = vld [vmem:[#allocation7 + $0x70] sm:$0xff]
    %v2040 = vld [vmem:[#allocation7 + $0x78] sm:$0xff]
    %v2041 = vld [vmem:[#allocation7 + $0x80] sm:$0xff]
    %v2042 = vld [vmem:[#allocation7 + $0x88] sm:$0xff]
    %v2043 = vld [vmem:[#allocation7 + $0x90] sm:$0xff]
    %v2044 = vld [vmem:[#allocation7 + $0x98] sm:$0xff]
    %v2045 = vld [vmem:[#allocation7 + $0xa0] sm:$0xff]
    %v2046 = vld [vmem:[#allocation7 + $0xa8] sm:$0xff]
    %v2047 = vld [vmem:[#allocation7 + $0xb0] sm:$0xff]
    %v2048 = vld [vmem:[#allocation7 + $0xb8] sm:$0xff]
    %v2049 = vld [vmem:[#allocation7 + $0xc0] sm:$0xff]
    %v2050 = vld [vmem:[#allocation7 + $0xc8] sm:$0xff]
    %v2051 = vld [vmem:[#allocation7 + $0xd0] sm:$0xff]
    %v2052 = vld [vmem:[#allocation7 + $0xd8] sm:$0xff]
    %v2053 = vld [vmem:[#allocation7 + $0xe0] sm:$0xff]
    %v2054 = vld [vmem:[#allocation7 + $0xe8] sm:$0xff]
    %v2055 = vld [vmem:[#allocation7 + $0xf0] sm:$0xff]
    %v2056 = vld [vmem:[#allocation7 + $0xf8] sm:$0xff]
    %v2057 = vld [vmem:[#allocation7 + $0x100] sm:$0xff]
    %v2058 = vld [vmem:[#allocation7 + $0x108] sm:$0xff]
    %v2059 = vld [vmem:[#allocation7 + $0x110] sm:$0xff]
    %v2060 = vld [vmem:[#allocation7 + $0x118] sm:$0xff]
    %v2061 = vld [vmem:[#allocation7 + $0x120] sm:$0xff]
    %v2062 = vld [vmem:[#allocation7 + $0x128] sm:$0xff]
    %v2063 = vld [vmem:[#allocation7 + $0x130] sm:$0xff]
    %v2064 = vld [vmem:[#allocation7 + $0x138] sm:$0xff]
    %v2065 = vld [vmem:[#allocation7 + $0x140] sm:$0xff]
    %v2066 = vld [vmem:[#allocation7 + $0x148] sm:$0xff]
    %v2067 = vld [vmem:[#allocation7 + $0x150] sm:$0xff]
    %v2068 = vld [vmem:[#allocation7 + $0x158] sm:$0xff]
    %v2069 = vld [vmem:[#allocation7 + $0x160] sm:$0xff]
    %v2070 = vld [vmem:[#allocation7 + $0x168] sm:$0xff]
    %v2071 = vld [vmem:[#allocation7 + $0x170] sm:$0xff]
    %v2072 = vld [vmem:[#allocation7 + $0x178] sm:$0xff]
    %v2073 = vld [vmem:[#allocation7 + $0x180] sm:$0xff]
    %v2074 = vld [vmem:[#allocation7 + $0x188] sm:$0xff]
    %v2075 = vld [vmem:[#allocation7 + $0x190] sm:$0xff]
    %v2076 = vld [vmem:[#allocation7 + $0x198] sm:$0xff]
    %v2077 = vld [vmem:[#allocation7 + $0x1a0] sm:$0xff]
    %v2078 = vld [vmem:[#allocation7 + $0x1a8] sm:$0xff]
    %v2079 = vld [vmem:[#allocation7 + $0x1b0] sm:$0xff]
    %v2080 = vld [vmem:[#allocation7 + $0x1b8] sm:$0xff]
    %v2081 = vld [vmem:[#allocation7 + $0x1c0] sm:$0xff]
    %v2082 = vld [vmem:[#allocation7 + $0x1c8] sm:$0xff]
    %v2083 = vld [vmem:[#allocation7 + $0x1d0] sm:$0xff]
    %v2084 = vld [vmem:[#allocation7 + $0x1d8] sm:$0xff]
    %v2085 = vld [vmem:[#allocation7 + $0x1e0] sm:$0xff]
    %v2086 = vld [vmem:[#allocation7 + $0x1e8] sm:$0xff]
    %v2087 = vld [vmem:[#allocation7 + $0x1f0] sm:$0xff]
    %v2088 = vld [vmem:[#allocation7 + $0x1f8] sm:$0xff]
    %v2153 = vunpack.c.l.b16 %v2025
    %v2154 = vunpack.c.h.b16 %v2025
    %v2155 = vunpack.c.l.b16 %v2026
    %v2156 = vunpack.c.h.b16 %v2026
    %v2157 = vunpack.c.l.b16 %v2027
    %v2158 = vunpack.c.h.b16 %v2027
    %v2159 = vunpack.c.l.b16 %v2028
    %v2160 = vunpack.c.h.b16 %v2028
    %v2161 = vunpack.c.l.b16 %v2029
    %v2162 = vunpack.c.h.b16 %v2029
    %v2163 = vunpack.c.l.b16 %v2030
    %v2164 = vunpack.c.h.b16 %v2030
    %v2165 = vunpack.c.l.b16 %v2031
    %v2166 = vunpack.c.h.b16 %v2031
    %v2167 = vunpack.c.l.b16 %v2032
    %v2168 = vunpack.c.h.b16 %v2032
    %v2169 = vunpack.c.l.b16 %v2033
    %v2170 = vunpack.c.h.b16 %v2033
    %v2171 = vunpack.c.l.b16 %v2034
    %v2172 = vunpack.c.h.b16 %v2034
    %v2173 = vunpack.c.l.b16 %v2035
    %v2174 = vunpack.c.h.b16 %v2035
    %v2175 = vunpack.c.l.b16 %v2036
    %v2176 = vunpack.c.h.b16 %v2036
    %v2177 = vunpack.c.l.b16 %v2037
    %v2178 = vunpack.c.h.b16 %v2037
    %v2179 = vunpack.c.l.b16 %v2038
    %v2180 = vunpack.c.h.b16 %v2038
    %v2181 = vunpack.c.l.b16 %v2039
    %v2182 = vunpack.c.h.b16 %v2039
    %v2183 = vunpack.c.l.b16 %v2040
    %v2184 = vunpack.c.h.b16 %v2040
    %v2185 = vunpack.c.l.b16 %v2041
    %v2186 = vunpack.c.h.b16 %v2041
    %v2187 = vunpack.c.l.b16 %v2042
    %v2188 = vunpack.c.h.b16 %v2042
    %v2189 = vunpack.c.l.b16 %v2043
    %v2190 = vunpack.c.h.b16 %v2043
    %v2191 = vunpack.c.l.b16 %v2044
    %v2192 = vunpack.c.h.b16 %v2044
    %v2193 = vunpack.c.l.b16 %v2045
    %v2194 = vunpack.c.h.b16 %v2045
    %v2195 = vunpack.c.l.b16 %v2046
    %v2196 = vunpack.c.h.b16 %v2046
    %v2197 = vunpack.c.l.b16 %v2047
    %v2198 = vunpack.c.h.b16 %v2047
    %v2199 = vunpack.c.l.b16 %v2048
    %v2200 = vunpack.c.h.b16 %v2048
    %v2201 = vunpack.c.l.b16 %v2049
    %v2202 = vunpack.c.h.b16 %v2049
    %v2203 = vunpack.c.l.b16 %v2050
    %v2204 = vunpack.c.h.b16 %v2050
    %v2205 = vunpack.c.l.b16 %v2051
    %v2206 = vunpack.c.h.b16 %v2051
    %v2207 = vunpack.c.l.b16 %v2052
    %v2208 = vunpack.c.h.b16 %v2052
    %v2209 = vunpack.c.l.b16 %v2053
    %v2210 = vunpack.c.h.b16 %v2053
    %v2211 = vunpack.c.l.b16 %v2054
    %v2212 = vunpack.c.h.b16 %v2054
    %v2213 = vunpack.c.l.b16 %v2055
    %v2214 = vunpack.c.h.b16 %v2055
    %v2215 = vunpack.c.l.b16 %v2056
    %v2216 = vunpack.c.h.b16 %v2056
    %v2217 = vunpack.c.l.b16 %v2057
    %v2218 = vunpack.c.h.b16 %v2057
    %v2219 = vunpack.c.l.b16 %v2058
    %v2220 = vunpack.c.h.b16 %v2058
    %v2221 = vunpack.c.l.b16 %v2059
    %v2222 = vunpack.c.h.b16 %v2059
    %v2223 = vunpack.c.l.b16 %v2060
    %v2224 = vunpack.c.h.b16 %v2060
    %v2225 = vunpack.c.l.b16 %v2061
    %v2226 = vunpack.c.h.b16 %v2061
    %v2227 = vunpack.c.l.b16 %v2062
    %v2228 = vunpack.c.h.b16 %v2062
    %v2229 = vunpack.c.l.b16 %v2063
    %v2230 = vunpack.c.h.b16 %v2063
    %v2231 = vunpack.c.l.b16 %v2064
    %v2232 = vunpack.c.h.b16 %v2064
    %v2233 = vunpack.c.l.b16 %v2065
    %v2234 = vunpack.c.h.b16 %v2065
    %v2235 = vunpack.c.l.b16 %v2066
    %v2236 = vunpack.c.h.b16 %v2066
    %v2237 = vunpack.c.l.b16 %v2067
    %v2238 = vunpack.c.h.b16 %v2067
    %v2239 = vunpack.c.l.b16 %v2068
    %v2240 = vunpack.c.h.b16 %v2068
    %v2241 = vunpack.c.l.b16 %v2069
    %v2242 = vunpack.c.h.b16 %v2069
    %v2243 = vunpack.c.l.b16 %v2070
    %v2244 = vunpack.c.h.b16 %v2070
    %v2245 = vunpack.c.l.b16 %v2071
    %v2246 = vunpack.c.h.b16 %v2071
    %v2247 = vunpack.c.l.b16 %v2072
    %v2248 = vunpack.c.h.b16 %v2072
    %v2249 = vunpack.c.l.b16 %v2073
    %v2250 = vunpack.c.h.b16 %v2073
    %v2251 = vunpack.c.l.b16 %v2074
    %v2252 = vunpack.c.h.b16 %v2074
    %v2253 = vunpack.c.l.b16 %v2075
    %v2254 = vunpack.c.h.b16 %v2075
    %v2255 = vunpack.c.l.b16 %v2076
    %v2256 = vunpack.c.h.b16 %v2076
    %v2257 = vunpack.c.l.b16 %v2077
    %v2258 = vunpack.c.h.b16 %v2077
    %v2259 = vunpack.c.l.b16 %v2078
    %v2260 = vunpack.c.h.b16 %v2078
    %v2261 = vunpack.c.l.b16 %v2079
    %v2262 = vunpack.c.h.b16 %v2079
    %v2263 = vunpack.c.l.b16 %v2080
    %v2264 = vunpack.c.h.b16 %v2080
    %v2265 = vunpack.c.l.b16 %v2081
    %v2266 = vunpack.c.h.b16 %v2081
    %v2267 = vunpack.c.l.b16 %v2082
    %v2268 = vunpack.c.h.b16 %v2082
    %v2269 = vunpack.c.l.b16 %v2083
    %v2270 = vunpack.c.h.b16 %v2083
    %v2271 = vunpack.c.l.b16 %v2084
    %v2272 = vunpack.c.h.b16 %v2084
    %v2273 = vunpack.c.l.b16 %v2085
    %v2274 = vunpack.c.h.b16 %v2085
    %v2275 = vunpack.c.l.b16 %v2086
    %v2276 = vunpack.c.h.b16 %v2086
    %v2277 = vunpack.c.l.b16 %v2087
    %v2278 = vunpack.c.h.b16 %v2087
    %v2279 = vunpack.c.l.b16 %v2088
    %v2280 = vunpack.c.h.b16 %v2088
    %v2281 = vpack.c.b16 %v2155, %v2153
    %v2282 = vpack.c.b16 %v2156, %v2154
    %v2283 = vpack.c.b16 %v2159, %v2157
    %v2284 = vpack.c.b16 %v2160, %v2158
    %v2285 = vpack.c.b16 %v2163, %v2161
    %v2286 = vpack.c.b16 %v2164, %v2162
    %v2287 = vpack.c.b16 %v2167, %v2165
    %v2288 = vpack.c.b16 %v2168, %v2166
    %v2289 = vpack.c.b16 %v2171, %v2169
    %v2290 = vpack.c.b16 %v2172, %v2170
    %v2291 = vpack.c.b16 %v2175, %v2173
    %v2292 = vpack.c.b16 %v2176, %v2174
    %v2293 = vpack.c.b16 %v2179, %v2177
    %v2294 = vpack.c.b16 %v2180, %v2178
    %v2295 = vpack.c.b16 %v2183, %v2181
    %v2296 = vpack.c.b16 %v2184, %v2182
    %v2297 = vpack.c.b16 %v2187, %v2185
    %v2298 = vpack.c.b16 %v2188, %v2186
    %v2299 = vpack.c.b16 %v2191, %v2189
    %v2300 = vpack.c.b16 %v2192, %v2190
    %v2301 = vpack.c.b16 %v2195, %v2193
    %v2302 = vpack.c.b16 %v2196, %v2194
    %v2303 = vpack.c.b16 %v2199, %v2197
    %v2304 = vpack.c.b16 %v2200, %v2198
    %v2305 = vpack.c.b16 %v2203, %v2201
    %v2306 = vpack.c.b16 %v2204, %v2202
    %v2307 = vpack.c.b16 %v2207, %v2205
    %v2308 = vpack.c.b16 %v2208, %v2206
    %v2309 = vpack.c.b16 %v2211, %v2209
    %v2310 = vpack.c.b16 %v2212, %v2210
    %v2311 = vpack.c.b16 %v2215, %v2213
    %v2312 = vpack.c.b16 %v2216, %v2214
    %v2313 = vpack.c.b16 %v2219, %v2217
    %v2314 = vpack.c.b16 %v2220, %v2218
    %v2315 = vpack.c.b16 %v2223, %v2221
    %v2316 = vpack.c.b16 %v2224, %v2222
    %v2317 = vpack.c.b16 %v2227, %v2225
    %v2318 = vpack.c.b16 %v2228, %v2226
    %v2319 = vpack.c.b16 %v2231, %v2229
    %v2320 = vpack.c.b16 %v2232, %v2230
    %v2321 = vpack.c.b16 %v2235, %v2233
    %v2322 = vpack.c.b16 %v2236, %v2234
    %v2323 = vpack.c.b16 %v2239, %v2237
    %v2324 = vpack.c.b16 %v2240, %v2238
    %v2325 = vpack.c.b16 %v2243, %v2241
    %v2326 = vpack.c.b16 %v2244, %v2242
    %v2327 = vpack.c.b16 %v2247, %v2245
    %v2328 = vpack.c.b16 %v2248, %v2246
    %v2329 = vpack.c.b16 %v2251, %v2249
    %v2330 = vpack.c.b16 %v2252, %v2250
    %v2331 = vpack.c.b16 %v2255, %v2253
    %v2332 = vpack.c.b16 %v2256, %v2254
    %v2333 = vpack.c.b16 %v2259, %v2257
    %v2334 = vpack.c.b16 %v2260, %v2258
    %v2335 = vpack.c.b16 %v2263, %v2261
    %v2336 = vpack.c.b16 %v2264, %v2262
    %v2337 = vpack.c.b16 %v2267, %v2265
    %v2338 = vpack.c.b16 %v2268, %v2266
    %v2339 = vpack.c.b16 %v2271, %v2269
    %v2340 = vpack.c.b16 %v2272, %v2270
    %v2341 = vpack.c.b16 %v2275, %v2273
    %v2342 = vpack.c.b16 %v2276, %v2274
    %v2343 = vpack.c.b16 %v2279, %v2277
    %v2344 = vpack.c.b16 %v2280, %v2278
    %2409 = vmatprep.subr.bf16.mxu0 %v2282
    %2410 = vmatpush1.bf16.msra.mxu0 %v2281
    %2411 = vmatprep.subr.bf16.mxu0 %v2284
    %2412 = vmatpush1.bf16.msra.mxu0 %v2283
    %2413 = vmatprep.subr.bf16.mxu0 %v2286
    %2414 = vmatpush1.bf16.msra.mxu0 %v2285
    %2415 = vmatprep.subr.bf16.mxu0 %v2288
    %2416 = vmatpush1.bf16.msra.mxu0 %v2287
    %2417 = vmatprep.subr.bf16.mxu0 %v2290
    %2418 = vmatpush1.bf16.msra.mxu0 %v2289
    %2419 = vmatprep.subr.bf16.mxu0 %v2292
    %2420 = vmatpush1.bf16.msra.mxu0 %v2291
    %2421 = vmatprep.subr.bf16.mxu0 %v2294
    %2422 = vmatpush1.bf16.msra.mxu0 %v2293
    %2423 = vmatprep.subr.bf16.mxu0 %v2296
    %2424 = vmatpush1.bf16.msra.mxu0 %v2295
    %2425 = vmatprep.subr.bf16.mxu0 %v2298
    %2426 = vmatpush1.bf16.msra.mxu0 %v2297
    %2427 = vmatprep.subr.bf16.mxu0 %v2300
    %2428 = vmatpush1.bf16.msra.mxu0 %v2299
    %2429 = vmatprep.subr.bf16.mxu0 %v2302
    %2430 = vmatpush1.bf16.msra.mxu0 %v2301
    %2431 = vmatprep.subr.bf16.mxu0 %v2304
    %2432 = vmatpush1.bf16.msra.mxu0 %v2303
    %2433 = vmatprep.subr.bf16.mxu0 %v2306
    %2434 = vmatpush1.bf16.msra.mxu0 %v2305
    %2435 = vmatprep.subr.bf16.mxu0 %v2308
    %2436 = vmatpush1.bf16.msra.mxu0 %v2307
    %2437 = vmatprep.subr.bf16.mxu0 %v2310
    %2438 = vmatpush1.bf16.msra.mxu0 %v2309
    %2439 = vmatprep.subr.bf16.mxu0 %v2312
    %2440 = vmatpush1.bf16.msra.mxu0 %v2311
    %2441 = vmatprep.mubr.bf16.mxu0 %v2022
    %2442 = vmatmul.mubr.bf16.gmra.mrb[0].mxu0 %v2021
    %v2443 = vpop.f32.mrb[0].mxu0
    %v2444 = vadd.f32 0.0, %v2443
    %v2445 = vpop.f32.mrb[0].mxu0
    %v2446 = vadd.f32 0.0, %v2445
    %v2447 = vpop.f32.mrb[0].mxu0
    %v2448 = vadd.f32 0.0, %v2447
    %v2449 = vpop.f32.mrb[0].mxu0
    %v2450 = vadd.f32 0.0, %v2449
    %2451 = vdwg.mxu0
    %2452 = vmatprep.subr.bf16.mxu0 %v2314
    %2453 = vmatpush1.bf16.msra.mxu0 %v2313
    %2454 = vmatprep.subr.bf16.mxu0 %v2316
    %2455 = vmatpush1.bf16.msra.mxu0 %v2315
    %2456 = vmatprep.subr.bf16.mxu0 %v2318
    %2457 = vmatpush1.bf16.msra.mxu0 %v2317
    %2458 = vmatprep.subr.bf16.mxu0 %v2320
    %2459 = vmatpush1.bf16.msra.mxu0 %v2319
    %2460 = vmatprep.subr.bf16.mxu0 %v2322
    %2461 = vmatpush1.bf16.msra.mxu0 %v2321
    %2462 = vmatprep.subr.bf16.mxu0 %v2324
    %2463 = vmatpush1.bf16.msra.mxu0 %v2323
    %2464 = vmatprep.subr.bf16.mxu0 %v2326
    %2465 = vmatpush1.bf16.msra.mxu0 %v2325
    %2466 = vmatprep.subr.bf16.mxu0 %v2328
    %2467 = vmatpush1.bf16.msra.mxu0 %v2327
    %2468 = vmatprep.subr.bf16.mxu0 %v2330
    %2469 = vmatpush1.bf16.msra.mxu0 %v2329
    %2470 = vmatprep.subr.bf16.mxu0 %v2332
    %2471 = vmatpush1.bf16.msra.mxu0 %v2331
    %2472 = vmatprep.subr.bf16.mxu0 %v2334
    %2473 = vmatpush1.bf16.msra.mxu0 %v2333
    %2474 = vmatprep.subr.bf16.mxu0 %v2336
    %2475 = vmatpush1.bf16.msra.mxu0 %v2335
    %2476 = vmatprep.subr.bf16.mxu0 %v2338
    %2477 = vmatpush1.bf16.msra.mxu0 %v2337
    %2478 = vmatprep.subr.bf16.mxu0 %v2340
    %2479 = vmatpush1.bf16.msra.mxu0 %v2339
    %2480 = vmatprep.subr.bf16.mxu0 %v2342
    %2481 = vmatpush1.bf16.msra.mxu0 %v2341
    %2482 = vmatprep.subr.bf16.mxu0 %v2344
    %2483 = vmatpush1.bf16.msra.mxu0 %v2343
    %2484 = vmatprep.mubr.bf16.mxu0 %v2024
    %2485 = vmatmul.mubr.bf16.gmra.mrb[0].mxu0 %v2023
    %v2486 = vpop.f32.mrb[0].mxu0
    %v2487 = vadd.f32 %v2444, %v2486
    %v2488 = vpop.f32.mrb[0].mxu0
    %v2489 = vadd.f32 %v2446, %v2488
    %v2490 = vpop.f32.mrb[0].mxu0
    %v2491 = vadd.f32 %v2448, %v2490
    %v2492 = vpop.f32.mrb[0].mxu0
    %v2493 = vadd.f32 %v2450, %v2492
    %2494 = vdwg.mxu0
    %2495 = vst [vmem:[#allocation17] sm:$0xff] %v2487
    %2496 = vst [vmem:[#allocation17 + $0x8] sm:$0xff] %v2489
    %2497 = vst [vmem:[#allocation17 + $0x10] sm:$0xff] %v2491
    %2498 = vst [vmem:[#allocation17 + $0x18] sm:$0xff] %v2493
    // Predicated region
    $region74: #{tpu_custom_call.1} parent=1 // pred_check
      _
    $region75: #{tpu_custom_call.1} parent=1 // pred_check_branch
      %2500 = sbr.rel (0) target = $region77
    $region76: #{tpu_custom_call.1} parent=1 // pred_region
      %s2502 = ssub.s32 512, 512
      %2503 = vsyncadd [#allocation4], %s2502
      %s2504 = sshll.u32 [#allocation17], 4
      %s2505 = int_to_ptr.vmem [resolvable:$true] %s2504
      %2510 = dma.vmem_to_hbm [thread:$0]  %s2505, 512, %s9, [#allocation4], 256, 256, 16
    $region77: #{tpu_custom_call.1} parent=1 // pred_fallthru
      _
    // Predicated region
    $region78: #{tpu_custom_call.1} parent=1 // pred_check
      _
    $region79: #{tpu_custom_call.1} parent=1 // pred_check_branch
      %2512 = sbr.rel (0) target = $region81
    $region80: #{tpu_custom_call.1} parent=1 // pred_region
      %2513 = dma.done [#allocation4], 512
    $region81: #{tpu_custom_call.1} parent=1 // pred_fallthru
      _
    %2514 = vsyncpa [#allocation3], 1
    %2515 = vsyncpa [#allocation6], 1
    %2516 = vsyncpa [#allocation9], 1
    %2517 = vsyncpa [#allocation12], 1
    %2518 = vsyncpa [#allocation15], 1
    %2519 = vsyncpa [#allocation4], 1

</llo_original>
